<compile_context>
chip_gen: v7x
topology: tpu7x:2x2x1
jax: 0.10.0
libtpu: 0.0.40
codegen_flags: <defaults>
</compile_context>

<pallas_src>
import jax
import jax.numpy as jnp
from jax.experimental import pallas as pl
from jax.experimental.pallas import tpu as pltpu


_M_TILE = 256   # Row tile for the two-pass path: (256 x <=768 lanes) f32 blocks,
                # double-buffered, fits comfortably in every generation's scoped
                # VMEM (including v7x's 64 MiB physical VMEM).
_BN_EPS = 1e-5


# -----------------------------------------------------------------------------
# In-kernel helpers
# -----------------------------------------------------------------------------
def _bn_scale_shift(col_sum, col_sumsq, row_count, n_groups, gamma, beta):
    """Combine per-column (sum, sum-of-squares) into per-channel training-mode
    BatchNorm statistics and return fused (scale, shift) vectors broadcast back
    to the packed column layout.  Columns are laid out as (group, channel) with
    `n_groups` repeats of the same channels (n_groups=4 for the sub-pixel-packed
    transposed-conv layers, 1 for the linear layers)."""
    nc = col_sum.shape[1]
    if n_groups > 1:
        co = nc // n_groups
        s = col_sum[:, 0:co]
        ss = col_sumsq[:, 0:co]
        for g in range(1, n_groups):
            s = s + col_sum[:, g * co:(g + 1) * co]
            ss = ss + col_sumsq[:, g * co:(g + 1) * co]
    else:
        s, ss = col_sum, col_sumsq
    cnt = float(row_count * n_groups)
    mean = s * (1.0 / cnt)
    var = ss * (1.0 / cnt) - mean * mean            # biased variance (PyTorch)
    inv = jax.lax.rsqrt(var + _BN_EPS)              # EUP rsqrt
    if n_groups > 1:
        mean = jnp.concatenate([mean] * n_groups, axis=1)
        inv = jnp.concatenate([inv] * n_groups, axis=1)
    scale = inv * gamma
    shift = beta - mean * scale
    return scale, shift


def _sigmoid_eup(y):
    # Sigmoid via the EUP tanh path; exactly bounded in [0, 1].
    return 0.5 * (jnp.tanh(0.5 * y) + 1.0)


# -----------------------------------------------------------------------------
# Kernels
# -----------------------------------------------------------------------------
def _make_fused_block_kernel(row_count, n_groups, has_tail):
    """Single-VMEM-block kernel: matmul + BatchNorm(training stats) + ReLU
    [+ fused 1x1-conv tail + bias + sigmoid]."""
    def kernel(*refs):
        i = 0
        x_ref = refs[i]; i += 1
        w_ref = refs[i]; i += 1
        g_ref = refs[i]; i += 1
        b_ref = refs[i]; i += 1
        if has_tail:
            wt_ref = refs[i]; i += 1
            bt_ref = refs[i]; i += 1
        o_ref = refs[i]

        y = jnp.dot(x_ref[...], w_ref[...], preferred_element_type=jnp.float32)
        scale, shift = _bn_scale_shift(
            jnp.sum(y, axis=0, keepdims=True),
            jnp.sum(y * y, axis=0, keepdims=True),
            row_count, n_groups, g_ref[...], b_ref[...])
        y = jnp.maximum(y * scale + shift, 0.0)
        if has_tail:
            y = jnp.dot(y, wt_ref[...], preferred_element_type=jnp.float32) + bt_ref[...]
            y = _sigmoid_eup(y)
        o_ref[...] = y.astype(o_ref.dtype)

    return kernel


def _matmul_stats_kernel(x_ref, w_ref, y_ref, st_ref):
    """Tiled pass 1: y-tile = x-tile @ w, plus per-column sum / sum-of-squares
    accumulated into a (2, NC) block that stays resident across the M axis."""
    @pl.when(pl.program_id(0) == 0)
    def _init():
        st_ref[...] = jnp.zeros_like(st_ref)

    y = jnp.dot(x_ref[...], w_ref[...], preferred_element_type=jnp.float32)
    y_ref[...] = y
    st_ref[...] += jnp.concatenate(
        [jnp.sum(y, axis=0, keepdims=True),
         jnp.sum(y * y, axis=0, keepdims=True)], axis=0)


def _make_norm_kernel(row_count, n_groups, has_tail):
    """Tiled pass 2: normalize + affine + ReLU [+ fused 1x1 tail + sigmoid]."""
    def kernel(*refs):
        i = 0
        y_ref = refs[i]; i += 1
        st_ref = refs[i]; i += 1
        g_ref = refs[i]; i += 1
        b_ref = refs[i]; i += 1
        if has_tail:
            wt_ref = refs[i]; i += 1
            bt_ref = refs[i]; i += 1
        o_ref = refs[i]

        scale, shift = _bn_scale_shift(st_ref[0:1, :], st_ref[1:2, :],
                                       row_count, n_groups, g_ref[...], b_ref[...])
        y = jnp.maximum(y_ref[...] * scale + shift, 0.0)
        if has_tail:
            y = jnp.dot(y, wt_ref[...], preferred_element_type=jnp.float32) + bt_ref[...]
            y = _sigmoid_eup(y)
        o_ref[...] = y.astype(o_ref.dtype)

    return kernel


# -----------------------------------------------------------------------------
# Fused op wrapper
# -----------------------------------------------------------------------------
def fused_matmul_bn_act(x, w, gamma, beta, *, n_groups,
                        w_tail=None, b_tail=None, m_tile=_M_TILE):
    """(X @ W) -> BatchNorm(training stats over rows; channels repeat every
    NC/n_groups columns) -> ReLU [-> @ w_tail + b_tail -> sigmoid].

    Small M: one fused VMEM block.  Large M: two tiled passes so the M axis is
    software-pipelined (and megacore-shardable in pass 2) while BN statistics
    stay exact via a cross-tile sum/sumsq accumulator."""
    M, K = x.shape
    NC = w.shape[1]
    has_tail = w_tail is not None
    out_cols = w_tail.shape[1] if has_tail else NC

    x = x.astype(jnp.float32)
    w = w.astype(jnp.float32)
    gamma = gamma.reshape(1, NC).astype(jnp.float32)
    beta = beta.reshape(1, NC).astype(jnp.float32)

    tail_args, tail_specs = [], []
    if has_tail:
        tail_args = [w_tail.astype(jnp.float32),
                     b_tail.reshape(1, out_cols).astype(jnp.float32)]
        tail_specs = [pl.BlockSpec((NC, out_cols), lambda i: (0, 0)),
                      pl.BlockSpec((1, out_cols), lambda i: (0, 0))]

    if M <= m_tile or M % m_tile != 0:
        # ---- single fused block (BN stats exact inside the block) ----
        kernel = _make_fused_block_kernel(M, n_groups, has_tail)
        return pl.pallas_call(
            kernel,
            out_shape=jax.ShapeDtypeStruct((M, out_cols), jnp.float32),
            grid=(1,),
            in_specs=[pl.BlockSpec((M, K), lambda i: (0, 0)),
                      pl.BlockSpec((K, NC), lambda i: (0, 0)),
                      pl.BlockSpec((1, NC), lambda i: (0, 0)),
                      pl.BlockSpec((1, NC), lambda i: (0, 0))] + tail_specs,
            out_specs=pl.BlockSpec((M, out_cols), lambda i: (0, 0)),
            compiler_params=pltpu.CompilerParams(
                dimension_semantics=("arbitrary",)),
        )(x, w, gamma, beta, *tail_args)

    n_tiles = M // m_tile

    # ---- pass 1: pipelined tiled matmul + BN statistics accumulator ----
    # (accumulator output keeps the same block across the axis -> "arbitrary")
    y_raw, stats = pl.pallas_call(
        _matmul_stats_kernel,
        out_shape=(jax.ShapeDtypeStruct((M, NC), jnp.float32),
                   jax.ShapeDtypeStruct((2, NC), jnp.float32)),
        grid=(n_tiles,),
        in_specs=[pl.BlockSpec((m_tile, K), lambda i: (i, 0)),
                  pl.BlockSpec((K, NC), lambda i: (0, 0))],
        out_specs=(pl.BlockSpec((m_tile, NC), lambda i: (i, 0)),
                   pl.BlockSpec((2, NC), lambda i: (0, 0))),
        compiler_params=pltpu.CompilerParams(
            dimension_semantics=("arbitrary",)),
    )(x, w)

    # ---- pass 2: rows independent -> "parallel" (shards across v7x's 2 TCs) ----
    kernel = _make_norm_kernel(M, n_groups, has_tail)
    return pl.pallas_call(
        kernel,
        out_shape=jax.ShapeDtypeStruct((M, out_cols), jnp.float32),
        grid=(n_tiles,),
        in_specs=[pl.BlockSpec((m_tile, NC), lambda i: (i, 0)),
                  pl.BlockSpec((2, NC), lambda i: (0, 0)),
                  pl.BlockSpec((1, NC), lambda i: (0, 0)),
                  pl.BlockSpec((1, NC), lambda i: (0, 0))] + tail_specs,
        out_specs=pl.BlockSpec((m_tile, out_cols), lambda i: (i, 0)),
        compiler_params=pltpu.CompilerParams(
            dimension_semantics=("parallel",)),
    )(y_raw, stats, gamma, beta, *tail_args)


# -----------------------------------------------------------------------------
# Plain-JAX glue: spectral norm (param setup), sub-pixel transposed-conv layout
# -----------------------------------------------------------------------------
def spectral_normalize(w, key, n_power_iterations=2, eps=1e-12):
    """PyTorch-style spectral norm on a Linear weight w of shape (out, in)."""
    out_dim, _ = w.shape
    u = jax.random.normal(key, (out_dim,), jnp.float32)
    u = u / (jnp.linalg.norm(u) + eps)
    v = None
    for _ in range(n_power_iterations):
        v = w.T @ u
        v = v / (jnp.linalg.norm(v) + eps)
        u = w @ v
        u = u / (jnp.linalg.norm(u) + eps)
    sigma = u @ (w @ v)
    return w / sigma


def im2col3x3(x_nhwc):
    """(N, H, W, C) -> (N*H*W, 9*C) patches of the 1-padded input; tap order is
    (ey, ex) major, channel minor -- matches make_subpixel_weight rows."""
    N, H, W, C = x_nhwc.shape
    xp = jnp.pad(x_nhwc, ((0, 0), (1, 1), (1, 1), (0, 0)))
    taps = [xp[:, ey:ey + H, ex:ex + W, :] for ey in range(3) for ex in range(3)]
    return jnp.concatenate(taps, axis=-1).reshape(N * H * W, 9 * C)


def make_subpixel_weight(w_t):
    """ConvTranspose2d(k=4, s=2, p=1) weight (Ci, Co, 4, 4) -> one (9*Ci, 4*Co)
    matrix.  Rows = 3x3 taps (ey, ex, ci) of the 1-padded, un-upsampled input;
    columns = (parity p = 2*ry + rx, co).  patches @ W yields all four
    sub-pixel output parities of the transposed convolution at once."""
    Ci, Co, k, _ = w_t.shape
    assert k == 4
    W = jnp.zeros((9 * Ci, 4 * Co), jnp.float32)
    for ry in range(2):
        for rx in range(2):
            p = 2 * ry + rx
            for dy in range(2):
                for dx in range(2):
                    ey, ex = ry + dy, rx + dx
                    kh, kw = 3 - (2 * dy + ry), 3 - (2 * dx + rx)
                    r0 = (ey * 3 + ex) * Ci
                    c0 = p * Co
                    W = W.at[r0:r0 + Ci, c0:c0 + Co].set(w_t[:, :, kh, kw])
    return W


def subpixel_to_nhwc(y, N, H, W, Co):
    """(N*H*W, 4*Co) with columns (parity, channel) -> (N, 2H, 2W, Co) NHWC."""
    y = y.reshape(N, H, W, 2, 2, Co)
    return y.transpose(0, 1, 3, 2, 4, 5).reshape(N, 2 * H, 2 * W, Co)


# -----------------------------------------------------------------------------
# Generator
# -----------------------------------------------------------------------------
def init_generator_params(key, inp_dim, mid_dim, out_dim):
    def idx_dim(i):
        return int(mid_dim * 1.6487 ** i)

    d3, d2, d1, d0 = idx_dim(3), idx_dim(2), idx_dim(1), idx_dim(0)
    ks = jax.random.split(key, 10)
    p = {"_dims": (d3, d2, d1, d0)}

    # ----- raw parameters (PyTorch layouts; also used by the lax reference) ---
    p["w1_sn"] = spectral_normalize(
        0.1 * jax.random.normal(ks[0], (inp_dim, inp_dim), jnp.float32), ks[1])
    p["b1"] = 0.05 * jax.random.normal(ks[2], (inp_dim,), jnp.float32)
    p["w2_sn"] = spectral_normalize(
        0.1 * jax.random.normal(ks[3], (d3 * 16, inp_dim), jnp.float32), ks[4])
    p["wt3_raw"] = 0.1 * jax.random.normal(ks[5], (d3, d2, 4, 4), jnp.float32)
    p["wt2_raw"] = 0.1 * jax.random.normal(ks[6], (d2, d1, 4, 4), jnp.float32)
    p["wt1_raw"] = 0.1 * jax.random.normal(ks[7], (d1, d0, 4, 4), jnp.float32)
    p["wc_raw"] = 0.1 * jax.random.normal(ks[8], (out_dim, d0, 1, 1), jnp.float32)
    p["bc_raw"] = 0.05 * jax.random.normal(ks[9], (out_dim,), jnp.float32)

    # ----- kernel-side weights, precomputed ONCE (never rebuilt per forward) --
    p["w1_mat"] = p["w1_sn"].T                          # (in, out)
    p["w2_mat"] = p["w2_sn"].T
    p["wt3_mat"] = make_subpixel_weight(p["wt3_raw"])   # (9*d3, 4*d2)
    p["wt2_mat"] = make_subpixel_weight(p["wt2_raw"])
    p["wt1_mat"] = make_subpixel_weight(p["wt1_raw"])
    # BatchNorm affine params, pre-tiled to the packed (parity, channel) columns.
    p["g1"], p["be1"] = jnp.ones((1, inp_dim), jnp.float32), jnp.zeros((1, inp_dim), jnp.float32)
    p["g2"], p["be2"] = jnp.ones((1, d3 * 16), jnp.float32), jnp.zeros((1, d3 * 16), jnp.float32)
    p["g3"], p["be3"] = jnp.ones((1, 4 * d2), jnp.float32), jnp.zeros((1, 4 * d2), jnp.float32)
    p["g4"], p["be4"] = jnp.ones((1, 4 * d1), jnp.float32), jnp.zeros((1, 4 * d1), jnp.float32)
    p["g5"], p["be5"] = jnp.ones((1, 4 * d0), jnp.float32), jnp.zeros((1, 4 * d0), jnp.float32)
    # Fused tail: block-diagonal 1x1-conv weight (same (d0 -> out_dim) projection
    # applied to each of the 4 parity groups) and parity-tiled bias.
    wc_mat = p["wc_raw"][:, :, 0, 0].T                  # (d0, out_dim)
    w_tail = jnp.zeros((4 * d0, 4 * out_dim), jnp.float32)
    for q in range(4):
        w_tail = w_tail.at[q * d0:(q + 1) * d0, q * out_dim:(q + 1) * out_dim].set(wc_mat)
    p["w_tail"] = w_tail
    p["b_tail"] = jnp.tile(p["bc_raw"].reshape(1, out_dim), (1, 4))
    return p


def generator_forward(params, x0):
    d3, d2, d1, d0 = params["_dims"]
    B = x0.shape[0]
    out_dim = params["b_tail"].shape[1] // 4

    # Linear(+spectral norm)+BN1d+ReLU blocks.  The first Linear's bias is
    # intentionally not applied: it is exactly cancelled by the following
    # BatchNorm's mean subtraction.
    x = fused_matmul_bn_act(x0, params["w1_mat"], params["g1"], params["be1"], n_groups=1)
    x = fused_matmul_bn_act(x, params["w2_mat"], params["g2"], params["be2"], n_groups=1)

    # flatten4: view(B, d3, 4, 4) is NCHW; convert once to NHWC and stay NHWC.
    x = x.reshape(B, d3, 4, 4).transpose(0, 2, 3, 1)             # (B, 4, 4, d3)

    # ConvTranspose2d(4,2,1)+BN2d+ReLU, sub-pixel formulation: one matmul on 3x3
    # patches of the un-upsampled input; the 4 output parities come out packed
    # along the lane axis and are interleaved back to NHWC afterwards.
    x = subpixel_to_nhwc(
        fused_matmul_bn_act(im2col3x3(x), params["wt3_mat"],
                            params["g3"], params["be3"], n_groups=4),
        B, 4, 4, d2)                                             # (B, 8, 8, d2)
    x = subpixel_to_nhwc(
        fused_matmul_bn_act(im2col3x3(x), params["wt2_mat"],
                            params["g4"], params["be4"], n_groups=4),
        B, 8, 8, d1)                                             # (B, 16, 16, d1)
    # Last ConvT block fused with the final 1x1 Conv + bias + Sigmoid (tail).
    y = fused_matmul_bn_act(im2col3x3(x), params["wt1_mat"],
                            params["g5"], params["be5"], n_groups=4,
                            w_tail=params["w_tail"], b_tail=params["b_tail"])
    x = subpixel_to_nhwc(y, B, 16, 16, out_dim)                  # (B, 32, 32, out)
    return x.transpose(0, 3, 1, 2)                               # NCHW boundary


# -----------------------------------------------------------------------------
# Plain-lax reference (correctness cross-check only)
# -----------------------------------------------------------------------------
def _reference_forward(params, x0):
    hp = jax.lax.Precision.HIGHEST

    def bn(y, axes):
        mean = jnp.mean(y, axis=axes, keepdims=True)
        var = jnp.mean((y - mean) ** 2, axis=axes, keepdims=True)
        return (y - mean) * jax.lax.rsqrt(var + _BN_EPS)

    d3 = params["_dims"][0]
    B = x0.shape[0]
    y = jnp.dot(x0, params["w1_sn"].T, precision=hp) + params["b1"]
    y = jnp.maximum(bn(y, (0,)), 0.0)
    y = jnp.dot(y, params["w2_sn"].T, precision=hp)
    y = jnp.maximum(bn(y, (0,)), 0.0)
    x = y.reshape(B, d3, 4, 4)
    for w_t in (params["wt3_raw"], params["wt2_raw"], params["wt1_raw"]):
        w_conv = jnp.flip(w_t, axis=(2, 3)).transpose(1, 0, 2, 3)
        x = jax.lax.conv_general_dilated(
            x, w_conv, window_strides=(1, 1), padding=((2, 2), (2, 2)),
            lhs_dilation=(2, 2), dimension_numbers=("NCHW", "OIHW", "NCHW"),
            precision=hp)
        x = jnp.maximum(bn(x, (0, 2, 3)), 0.0)
    x = jax.lax.conv_general_dilated(
        x, params["wc_raw"], window_strides=(1, 1), padding=((0, 0), (0, 0)),
        dimension_numbers=("NCHW", "OIHW", "NCHW"), precision=hp)
    x = x + params["bc_raw"].reshape(1, -1, 1, 1)
    return jax.nn.sigmoid(x)


if __name__ == "__main__":
    key = jax.random.PRNGKey(0)
    k_param, k_in = jax.random.split(key)

    B, INP_DIM, MID_DIM, OUT_DIM = 4, 32, 8, 3
    params = init_generator_params(k_param, INP_DIM, MID_DIM, OUT_DIM)
    x0 = jax.random.normal(k_in, (B, INP_DIM), jnp.float32)

    fwd = jax.jit(lambda x: generator_forward(params, x))
    out = jax.block_until_ready(fwd(x0))

    assert out.shape == (B, OUT_DIM, 32, 32), out.shape
    assert bool(jnp.all(jnp.isfinite(out)))
    assert bool(jnp.all((out >= 0.0) & (out <= 1.0)))            # sigmoid range

    # Cross-check the whole Pallas path (sub-pixel transposed conv, fused and
    # two-pass tiled BN, fused 1x1+sigmoid tail) against a plain-lax reference.
    ref = jax.block_until_ready(_reference_forward(params, x0))
    max_err = float(jnp.max(jnp.abs(out - ref)))
    assert max_err < 5e-2, max_err

    print("KERNEL_OK")
</pallas_src>

<mosaic_0001>
module attributes {stable_mosaic.version = 11 : i64} {
  func.func @kernel(%arg0: i32, %arg1: memref<4x32xf32, #tpu.memory_space<vmem>>, %arg2: memref<32x32xf32, #tpu.memory_space<vmem>>, %arg3: memref<1x32xf32, #tpu.memory_space<vmem>>, %arg4: memref<1x32xf32, #tpu.memory_space<vmem>>, %arg5: memref<4x32xf32, #tpu.memory_space<vmem>>) attributes {dimension_semantics = [#tpu.dimension_semantics<arbitrary>], iteration_bounds = array<i64: 1>, scalar_prefetch = 0 : i64, scratch_operands = 0 : i64, tpu.core_type = #tpu.core_type<tc>, window_params = [{pipeline_mode = #tpu.pipeline_mode<synchronous>, transform_indices = @transform_0, window_bounds = array<i64: 4, 32>}, {pipeline_mode = #tpu.pipeline_mode<synchronous>, transform_indices = @transform_1, window_bounds = array<i64: 32, 32>}, {pipeline_mode = #tpu.pipeline_mode<synchronous>, transform_indices = @transform_2, window_bounds = array<i64: 1, 32>}, {pipeline_mode = #tpu.pipeline_mode<synchronous>, transform_indices = @transform_3, window_bounds = array<i64: 1, 32>}, {pipeline_mode = #tpu.pipeline_mode<synchronous>, transform_indices = @transform_4, window_bounds = array<i64: 4, 32>}]} {
    %c0 = arith.constant 0 : index
    %c0_0 = arith.constant 0 : index
    %0 = vector.load %arg1[%c0, %c0_0] : memref<4x32xf32, #tpu.memory_space<vmem>>, vector<4x32xf32>
    %c0_1 = arith.constant 0 : index
    %c0_2 = arith.constant 0 : index
    %1 = vector.load %arg2[%c0_1, %c0_2] : memref<32x32xf32, #tpu.memory_space<vmem>>, vector<32x32xf32>
    %cst = arith.constant dense<0.000000e+00> : vector<4x32xf32>
    %2 = tpu.matmul %0, %1, %cst {dimension_numbers = #tpu.dot_dimension_numbers<[1], [0], [0], [1], [0, 0, 1, 1], [], []>} : vector<4x32xf32>, vector<32x32xf32>, vector<4x32xf32> -> vector<4x32xf32>
    %cst_3 = arith.constant dense<0.000000e+00> : vector<32xf32>
    %3 = vector.multi_reduction <add>, %2, %cst_3 [0] : vector<4x32xf32> to vector<32xf32>
    %4 = vector.shape_cast %3 : vector<32xf32> to vector<1x32xf32>
    %5 = arith.mulf %2, %2 : vector<4x32xf32>
    %cst_4 = arith.constant dense<0.000000e+00> : vector<32xf32>
    %6 = vector.multi_reduction <add>, %5, %cst_4 [0] : vector<4x32xf32> to vector<32xf32>
    %7 = vector.shape_cast %6 : vector<32xf32> to vector<1x32xf32>
    %c0_5 = arith.constant 0 : index
    %c0_6 = arith.constant 0 : index
    %8 = vector.load %arg3[%c0_5, %c0_6] : memref<1x32xf32, #tpu.memory_space<vmem>>, vector<1x32xf32>
    %c0_7 = arith.constant 0 : index
    %c0_8 = arith.constant 0 : index
    %9 = vector.load %arg4[%c0_7, %c0_8] : memref<1x32xf32, #tpu.memory_space<vmem>>, vector<1x32xf32>
    %cst_9 = arith.constant 2.500000e-01 : f32
    %10 = vector.broadcast %cst_9 : f32 to vector<1x32xf32>
    %11 = arith.mulf %4, %10 : vector<1x32xf32>
    %cst_10 = arith.constant 2.500000e-01 : f32
    %12 = vector.broadcast %cst_10 : f32 to vector<1x32xf32>
    %13 = arith.mulf %7, %12 : vector<1x32xf32>
    %14 = arith.mulf %11, %11 : vector<1x32xf32>
    %15 = arith.subf %13, %14 : vector<1x32xf32>
    %cst_11 = arith.constant 9.99999974E-6 : f32
    %16 = vector.broadcast %cst_11 : f32 to vector<1x32xf32>
    %17 = arith.addf %15, %16 : vector<1x32xf32>
    %18 = math.rsqrt %17 : vector<1x32xf32>
    %19 = arith.mulf %18, %8 : vector<1x32xf32>
    %20 = arith.mulf %11, %19 : vector<1x32xf32>
    %21 = arith.subf %9, %20 : vector<1x32xf32>
    %22 = vector.broadcast %19 : vector<1x32xf32> to vector<4x32xf32>
    %23 = arith.mulf %2, %22 : vector<4x32xf32>
    %24 = vector.broadcast %21 : vector<1x32xf32> to vector<4x32xf32>
    %25 = arith.addf %23, %24 : vector<4x32xf32>
    %cst_12 = arith.constant 0.000000e+00 : f32
    %26 = vector.broadcast %cst_12 : f32 to vector<4x32xf32>
    %27 = arith.maximumf %25, %26 : vector<4x32xf32>
    %c0_13 = arith.constant 0 : index
    %c0_14 = arith.constant 0 : index
    %28 = vector.load %arg5[%c0_13, %c0_14] : memref<4x32xf32, #tpu.memory_space<vmem>>, vector<4x32xf32>
    tpu.vector_store %arg5[%c0_13, %c0_14], %27 {strides = array<i32>} : memref<4x32xf32, #tpu.memory_space<vmem>>, vector<4x32xf32>,
    return
  }
  func.func @transform_0(%arg0: i32) -> (i32, i32) {
    %c0_i32 = arith.constant 0 : i32
    %c0_i32_0 = arith.constant 0 : i32
    %c0_i32_1 = arith.constant 0 : i32
    return %c0_i32, %c0_i32_0 : i32, i32
  }
  func.func @transform_1(%arg0: i32) -> (i32, i32) {
    %c0_i32 = arith.constant 0 : i32
    %c0_i32_0 = arith.constant 0 : i32
    %c0_i32_1 = arith.constant 0 : i32
    return %c0_i32, %c0_i32_0 : i32, i32
  }
  func.func @transform_2(%arg0: i32) -> (i32, i32) {
    %c0_i32 = arith.constant 0 : i32
    %c0_i32_0 = arith.constant 0 : i32
    %c0_i32_1 = arith.constant 0 : i32
    return %c0_i32, %c0_i32_0 : i32, i32
  }
  func.func @transform_3(%arg0: i32) -> (i32, i32) {
    %c0_i32 = arith.constant 0 : i32
    %c0_i32_0 = arith.constant 0 : i32
    %c0_i32_1 = arith.constant 0 : i32
    return %c0_i32, %c0_i32_0 : i32, i32
  }
  func.func @transform_4(%arg0: i32) -> (i32, i32) {
    %c0_i32 = arith.constant 0 : i32
    %c0_i32_0 = arith.constant 0 : i32
    %c0_i32_1 = arith.constant 0 : i32
    return %c0_i32, %c0_i32_0 : i32, i32
  }
}

module attributes {stable_mosaic.version = 11 : i64} {
  func.func @kernel(%arg0: i32, %arg1: memref<4x32xf32, #tpu.memory_space<vmem>>, %arg2: memref<32x560xf32, #tpu.memory_space<vmem>>, %arg3: memref<1x560xf32, #tpu.memory_space<vmem>>, %arg4: memref<1x560xf32, #tpu.memory_space<vmem>>, %arg5: memref<4x560xf32, #tpu.memory_space<vmem>>) attributes {dimension_semantics = [#tpu.dimension_semantics<arbitrary>], iteration_bounds = array<i64: 1>, scalar_prefetch = 0 : i64, scratch_operands = 0 : i64, tpu.core_type = #tpu.core_type<tc>, window_params = [{pipeline_mode = #tpu.pipeline_mode<synchronous>, transform_indices = @transform_0, window_bounds = array<i64: 4, 32>}, {pipeline_mode = #tpu.pipeline_mode<synchronous>, transform_indices = @transform_1, window_bounds = array<i64: 32, 560>}, {pipeline_mode = #tpu.pipeline_mode<synchronous>, transform_indices = @transform_2, window_bounds = array<i64: 1, 560>}, {pipeline_mode = #tpu.pipeline_mode<synchronous>, transform_indices = @transform_3, window_bounds = array<i64: 1, 560>}, {pipeline_mode = #tpu.pipeline_mode<synchronous>, transform_indices = @transform_4, window_bounds = array<i64: 4, 560>}]} {
    %c0 = arith.constant 0 : index
    %c0_0 = arith.constant 0 : index
    %0 = vector.load %arg1[%c0, %c0_0] : memref<4x32xf32, #tpu.memory_space<vmem>>, vector<4x32xf32>
    %c0_1 = arith.constant 0 : index
    %c0_2 = arith.constant 0 : index
    %1 = vector.load %arg2[%c0_1, %c0_2] : memref<32x560xf32, #tpu.memory_space<vmem>>, vector<32x560xf32>
    %cst = arith.constant dense<0.000000e+00> : vector<4x560xf32>
    %2 = tpu.matmul %0, %1, %cst {dimension_numbers = #tpu.dot_dimension_numbers<[1], [0], [0], [1], [0, 0, 1, 1], [], []>} : vector<4x32xf32>, vector<32x560xf32>, vector<4x560xf32> -> vector<4x560xf32>
    %cst_3 = arith.constant dense<0.000000e+00> : vector<560xf32>
    %3 = vector.multi_reduction <add>, %2, %cst_3 [0] : vector<4x560xf32> to vector<560xf32>
    %4 = vector.shape_cast %3 : vector<560xf32> to vector<1x560xf32>
    %5 = arith.mulf %2, %2 : vector<4x560xf32>
    %cst_4 = arith.constant dense<0.000000e+00> : vector<560xf32>
    %6 = vector.multi_reduction <add>, %5, %cst_4 [0] : vector<4x560xf32> to vector<560xf32>
    %7 = vector.shape_cast %6 : vector<560xf32> to vector<1x560xf32>
    %c0_5 = arith.constant 0 : index
    %c0_6 = arith.constant 0 : index
    %8 = vector.load %arg3[%c0_5, %c0_6] : memref<1x560xf32, #tpu.memory_space<vmem>>, vector<1x560xf32>
    %c0_7 = arith.constant 0 : index
    %c0_8 = arith.constant 0 : index
    %9 = vector.load %arg4[%c0_7, %c0_8] : memref<1x560xf32, #tpu.memory_space<vmem>>, vector<1x560xf32>
    %cst_9 = arith.constant 2.500000e-01 : f32
    %10 = vector.broadcast %cst_9 : f32 to vector<1x560xf32>
    %11 = arith.mulf %4, %10 : vector<1x560xf32>
    %cst_10 = arith.constant 2.500000e-01 : f32
    %12 = vector.broadcast %cst_10 : f32 to vector<1x560xf32>
    %13 = arith.mulf %7, %12 : vector<1x560xf32>
    %14 = arith.mulf %11, %11 : vector<1x560xf32>
    %15 = arith.subf %13, %14 : vector<1x560xf32>
    %cst_11 = arith.constant 9.99999974E-6 : f32
    %16 = vector.broadcast %cst_11 : f32 to vector<1x560xf32>
    %17 = arith.addf %15, %16 : vector<1x560xf32>
    %18 = math.rsqrt %17 : vector<1x560xf32>
    %19 = arith.mulf %18, %8 : vector<1x560xf32>
    %20 = arith.mulf %11, %19 : vector<1x560xf32>
    %21 = arith.subf %9, %20 : vector<1x560xf32>
    %22 = vector.broadcast %19 : vector<1x560xf32> to vector<4x560xf32>
    %23 = arith.mulf %2, %22 : vector<4x560xf32>
    %24 = vector.broadcast %21 : vector<1x560xf32> to vector<4x560xf32>
    %25 = arith.addf %23, %24 : vector<4x560xf32>
    %cst_12 = arith.constant 0.000000e+00 : f32
    %26 = vector.broadcast %cst_12 : f32 to vector<4x560xf32>
    %27 = arith.maximumf %25, %26 : vector<4x560xf32>
    %c0_13 = arith.constant 0 : index
    %c0_14 = arith.constant 0 : index
    %28 = vector.load %arg5[%c0_13, %c0_14] : memref<4x560xf32, #tpu.memory_space<vmem>>, vector<4x560xf32>
    tpu.vector_store %arg5[%c0_13, %c0_14], %27 {strides = array<i32>} : memref<4x560xf32, #tpu.memory_space<vmem>>, vector<4x560xf32>,
    return
  }
  func.func @transform_0(%arg0: i32) -> (i32, i32) {
    %c0_i32 = arith.constant 0 : i32
    %c0_i32_0 = arith.constant 0 : i32
    %c0_i32_1 = arith.constant 0 : i32
    return %c0_i32, %c0_i32_0 : i32, i32
  }
  func.func @transform_1(%arg0: i32) -> (i32, i32) {
    %c0_i32 = arith.constant 0 : i32
    %c0_i32_0 = arith.constant 0 : i32
    %c0_i32_1 = arith.constant 0 : i32
    return %c0_i32, %c0_i32_0 : i32, i32
  }
  func.func @transform_2(%arg0: i32) -> (i32, i32) {
    %c0_i32 = arith.constant 0 : i32
    %c0_i32_0 = arith.constant 0 : i32
    %c0_i32_1 = arith.constant 0 : i32
    return %c0_i32, %c0_i32_0 : i32, i32
  }
  func.func @transform_3(%arg0: i32) -> (i32, i32) {
    %c0_i32 = arith.constant 0 : i32
    %c0_i32_0 = arith.constant 0 : i32
    %c0_i32_1 = arith.constant 0 : i32
    return %c0_i32, %c0_i32_0 : i32, i32
  }
  func.func @transform_4(%arg0: i32) -> (i32, i32) {
    %c0_i32 = arith.constant 0 : i32
    %c0_i32_0 = arith.constant 0 : i32
    %c0_i32_1 = arith.constant 0 : i32
    return %c0_i32, %c0_i32_0 : i32, i32
  }
}

module attributes {stable_mosaic.version = 11 : i64} {
  func.func @kernel(%arg0: i32, %arg1: memref<64x315xf32, #tpu.memory_space<vmem>>, %arg2: memref<315x84xf32, #tpu.memory_space<vmem>>, %arg3: memref<1x84xf32, #tpu.memory_space<vmem>>, %arg4: memref<1x84xf32, #tpu.memory_space<vmem>>, %arg5: memref<64x84xf32, #tpu.memory_space<vmem>>) attributes {dimension_semantics = [#tpu.dimension_semantics<arbitrary>], iteration_bounds = array<i64: 1>, scalar_prefetch = 0 : i64, scratch_operands = 0 : i64, tpu.core_type = #tpu.core_type<tc>, window_params = [{pipeline_mode = #tpu.pipeline_mode<synchronous>, transform_indices = @transform_0, window_bounds = array<i64: 64, 315>}, {pipeline_mode = #tpu.pipeline_mode<synchronous>, transform_indices = @transform_1, window_bounds = array<i64: 315, 84>}, {pipeline_mode = #tpu.pipeline_mode<synchronous>, transform_indices = @transform_2, window_bounds = array<i64: 1, 84>}, {pipeline_mode = #tpu.pipeline_mode<synchronous>, transform_indices = @transform_3, window_bounds = array<i64: 1, 84>}, {pipeline_mode = #tpu.pipeline_mode<synchronous>, transform_indices = @transform_4, window_bounds = array<i64: 64, 84>}]} {
    %c0 = arith.constant 0 : index
    %c0_0 = arith.constant 0 : index
    %0 = vector.load %arg1[%c0, %c0_0] : memref<64x315xf32, #tpu.memory_space<vmem>>, vector<64x315xf32>
    %c0_1 = arith.constant 0 : index
    %c0_2 = arith.constant 0 : index
    %1 = vector.load %arg2[%c0_1, %c0_2] : memref<315x84xf32, #tpu.memory_space<vmem>>, vector<315x84xf32>
    %cst = arith.constant dense<0.000000e+00> : vector<64x84xf32>
    %2 = tpu.matmul %0, %1, %cst {dimension_numbers = #tpu.dot_dimension_numbers<[1], [0], [0], [1], [0, 0, 1, 1], [], []>} : vector<64x315xf32>, vector<315x84xf32>, vector<64x84xf32> -> vector<64x84xf32>
    %cst_3 = arith.constant dense<0.000000e+00> : vector<84xf32>
    %3 = vector.multi_reduction <add>, %2, %cst_3 [0] : vector<64x84xf32> to vector<84xf32>
    %4 = vector.shape_cast %3 : vector<84xf32> to vector<1x84xf32>
    %5 = arith.mulf %2, %2 : vector<64x84xf32>
    %cst_4 = arith.constant dense<0.000000e+00> : vector<84xf32>
    %6 = vector.multi_reduction <add>, %5, %cst_4 [0] : vector<64x84xf32> to vector<84xf32>
    %7 = vector.shape_cast %6 : vector<84xf32> to vector<1x84xf32>
    %c0_5 = arith.constant 0 : index
    %c0_6 = arith.constant 0 : index
    %8 = vector.load %arg3[%c0_5, %c0_6] : memref<1x84xf32, #tpu.memory_space<vmem>>, vector<1x84xf32>
    %c0_7 = arith.constant 0 : index
    %c0_8 = arith.constant 0 : index
    %9 = vector.load %arg4[%c0_7, %c0_8] : memref<1x84xf32, #tpu.memory_space<vmem>>, vector<1x84xf32>
    %10 = vector.extract_strided_slice %4 {offsets = [0, 0], sizes = [1, 21], strides = [1, 1]} : vector<1x84xf32> to vector<1x21xf32>
    %11 = vector.extract_strided_slice %7 {offsets = [0, 0], sizes = [1, 21], strides = [1, 1]} : vector<1x84xf32> to vector<1x21xf32>
    %12 = vector.extract_strided_slice %4 {offsets = [0, 21], sizes = [1, 21], strides = [1, 1]} : vector<1x84xf32> to vector<1x21xf32>
    %13 = arith.addf %10, %12 : vector<1x21xf32>
    %14 = vector.extract_strided_slice %7 {offsets = [0, 21], sizes = [1, 21], strides = [1, 1]} : vector<1x84xf32> to vector<1x21xf32>
    %15 = arith.addf %11, %14 : vector<1x21xf32>
    %16 = vector.extract_strided_slice %4 {offsets = [0, 42], sizes = [1, 21], strides = [1, 1]} : vector<1x84xf32> to vector<1x21xf32>
    %17 = arith.addf %13, %16 : vector<1x21xf32>
    %18 = vector.extract_strided_slice %7 {offsets = [0, 42], sizes = [1, 21], strides = [1, 1]} : vector<1x84xf32> to vector<1x21xf32>
    %19 = arith.addf %15, %18 : vector<1x21xf32>
    %20 = vector.extract_strided_slice %4 {offsets = [0, 63], sizes = [1, 21], strides = [1, 1]} : vector<1x84xf32> to vector<1x21xf32>
    %21 = arith.addf %17, %20 : vector<1x21xf32>
    %22 = vector.extract_strided_slice %7 {offsets = [0, 63], sizes = [1, 21], strides = [1, 1]} : vector<1x84xf32> to vector<1x21xf32>
    %23 = arith.addf %19, %22 : vector<1x21xf32>
    %cst_9 = arith.constant 3.906250e-03 : f32
    %24 = vector.broadcast %cst_9 : f32 to vector<1x21xf32>
    %25 = arith.mulf %21, %24 : vector<1x21xf32>
    %cst_10 = arith.constant 3.906250e-03 : f32
    %26 = vector.broadcast %cst_10 : f32 to vector<1x21xf32>
    %27 = arith.mulf %23, %26 : vector<1x21xf32>
    %28 = arith.mulf %25, %25 : vector<1x21xf32>
    %29 = arith.subf %27, %28 : vector<1x21xf32>
    %cst_11 = arith.constant 9.99999974E-6 : f32
    %30 = vector.broadcast %cst_11 : f32 to vector<1x21xf32>
    %31 = arith.addf %29, %30 : vector<1x21xf32>
    %32 = math.rsqrt %31 : vector<1x21xf32>
    %33 = tpu.concatenate %25, %25, %25, %25 in 1 : vector<1x21xf32>, vector<1x21xf32>, vector<1x21xf32>, vector<1x21xf32> -> vector<1x84xf32>
    %34 = tpu.concatenate %32, %32, %32, %32 in 1 : vector<1x21xf32>, vector<1x21xf32>, vector<1x21xf32>, vector<1x21xf32> -> vector<1x84xf32>
    %35 = arith.mulf %34, %8 : vector<1x84xf32>
    %36 = arith.mulf %33, %35 : vector<1x84xf32>
    %37 = arith.subf %9, %36 : vector<1x84xf32>
    %38 = vector.broadcast %35 : vector<1x84xf32> to vector<64x84xf32>
    %39 = arith.mulf %2, %38 : vector<64x84xf32>
    %40 = vector.broadcast %37 : vector<1x84xf32> to vector<64x84xf32>
    %41 = arith.addf %39, %40 : vector<64x84xf32>
    %cst_12 = arith.constant 0.000000e+00 : f32
    %42 = vector.broadcast %cst_12 : f32 to vector<64x84xf32>
    %43 = arith.maximumf %41, %42 : vector<64x84xf32>
    %c0_13 = arith.constant 0 : index
    %c0_14 = arith.constant 0 : index
    %44 = vector.load %arg5[%c0_13, %c0_14] : memref<64x84xf32, #tpu.memory_space<vmem>>, vector<64x84xf32>
    tpu.vector_store %arg5[%c0_13, %c0_14], %43 {strides = array<i32>} : memref<64x84xf32, #tpu.memory_space<vmem>>, vector<64x84xf32>,
    return
  }
  func.func @transform_0(%arg0: i32) -> (i32, i32) {
    %c0_i32 = arith.constant 0 : i32
    %c0_i32_0 = arith.constant 0 : i32
    %c0_i32_1 = arith.constant 0 : i32
    return %c0_i32, %c0_i32_0 : i32, i32
  }
  func.func @transform_1(%arg0: i32) -> (i32, i32) {
    %c0_i32 = arith.constant 0 : i32
    %c0_i32_0 = arith.constant 0 : i32
    %c0_i32_1 = arith.constant 0 : i32
    return %c0_i32, %c0_i32_0 : i32, i32
  }
  func.func @transform_2(%arg0: i32) -> (i32, i32) {
    %c0_i32 = arith.constant 0 : i32
    %c0_i32_0 = arith.constant 0 : i32
    %c0_i32_1 = arith.constant 0 : i32
    return %c0_i32, %c0_i32_0 : i32, i32
  }
  func.func @transform_3(%arg0: i32) -> (i32, i32) {
    %c0_i32 = arith.constant 0 : i32
    %c0_i32_0 = arith.constant 0 : i32
    %c0_i32_1 = arith.constant 0 : i32
    return %c0_i32, %c0_i32_0 : i32, i32
  }
  func.func @transform_4(%arg0: i32) -> (i32, i32) {
    %c0_i32 = arith.constant 0 : i32
    %c0_i32_0 = arith.constant 0 : i32
    %c0_i32_1 = arith.constant 0 : i32
    return %c0_i32, %c0_i32_0 : i32, i32
  }
}

module attributes {stable_mosaic.version = 11 : i64} {
  func.func @kernel(%arg0: i32, %arg1: memref<256x189xf32, #tpu.memory_space<vmem>>, %arg2: memref<189x52xf32, #tpu.memory_space<vmem>>, %arg3: memref<1x52xf32, #tpu.memory_space<vmem>>, %arg4: memref<1x52xf32, #tpu.memory_space<vmem>>, %arg5: memref<256x52xf32, #tpu.memory_space<vmem>>) attributes {dimension_semantics = [#tpu.dimension_semantics<arbitrary>], iteration_bounds = array<i64: 1>, scalar_prefetch = 0 : i64, scratch_operands = 0 : i64, tpu.core_type = #tpu.core_type<tc>, window_params = [{pipeline_mode = #tpu.pipeline_mode<synchronous>, transform_indices = @transform_0, window_bounds = array<i64: 256, 189>}, {pipeline_mode = #tpu.pipeline_mode<synchronous>, transform_indices = @transform_1, window_bounds = array<i64: 189, 52>}, {pipeline_mode = #tpu.pipeline_mode<synchronous>, transform_indices = @transform_2, window_bounds = array<i64: 1, 52>}, {pipeline_mode = #tpu.pipeline_mode<synchronous>, transform_indices = @transform_3, window_bounds = array<i64: 1, 52>}, {pipeline_mode = #tpu.pipeline_mode<synchronous>, transform_indices = @transform_4, window_bounds = array<i64: 256, 52>}]} {
    %c0 = arith.constant 0 : index
    %c0_0 = arith.constant 0 : index
    %0 = vector.load %arg1[%c0, %c0_0] : memref<256x189xf32, #tpu.memory_space<vmem>>, vector<256x189xf32>
    %c0_1 = arith.constant 0 : index
    %c0_2 = arith.constant 0 : index
    %1 = vector.load %arg2[%c0_1, %c0_2] : memref<189x52xf32, #tpu.memory_space<vmem>>, vector<189x52xf32>
    %cst = arith.constant dense<0.000000e+00> : vector<256x52xf32>
    %2 = tpu.matmul %0, %1, %cst {dimension_numbers = #tpu.dot_dimension_numbers<[1], [0], [0], [1], [0, 0, 1, 1], [], []>} : vector<256x189xf32>, vector<189x52xf32>, vector<256x52xf32> -> vector<256x52xf32>
    %cst_3 = arith.constant dense<0.000000e+00> : vector<52xf32>
    %3 = vector.multi_reduction <add>, %2, %cst_3 [0] : vector<256x52xf32> to vector<52xf32>
    %4 = vector.shape_cast %3 : vector<52xf32> to vector<1x52xf32>
    %5 = arith.mulf %2, %2 : vector<256x52xf32>
    %cst_4 = arith.constant dense<0.000000e+00> : vector<52xf32>
    %6 = vector.multi_reduction <add>, %5, %cst_4 [0] : vector<256x52xf32> to vector<52xf32>
    %7 = vector.shape_cast %6 : vector<52xf32> to vector<1x52xf32>
    %c0_5 = arith.constant 0 : index
    %c0_6 = arith.constant 0 : index
    %8 = vector.load %arg3[%c0_5, %c0_6] : memref<1x52xf32, #tpu.memory_space<vmem>>, vector<1x52xf32>
    %c0_7 = arith.constant 0 : index
    %c0_8 = arith.constant 0 : index
    %9 = vector.load %arg4[%c0_7, %c0_8] : memref<1x52xf32, #tpu.memory_space<vmem>>, vector<1x52xf32>
    %10 = vector.extract_strided_slice %4 {offsets = [0, 0], sizes = [1, 13], strides = [1, 1]} : vector<1x52xf32> to vector<1x13xf32>
    %11 = vector.extract_strided_slice %7 {offsets = [0, 0], sizes = [1, 13], strides = [1, 1]} : vector<1x52xf32> to vector<1x13xf32>
    %12 = vector.extract_strided_slice %4 {offsets = [0, 13], sizes = [1, 13], strides = [1, 1]} : vector<1x52xf32> to vector<1x13xf32>
    %13 = arith.addf %10, %12 : vector<1x13xf32>
    %14 = vector.extract_strided_slice %7 {offsets = [0, 13], sizes = [1, 13], strides = [1, 1]} : vector<1x52xf32> to vector<1x13xf32>
    %15 = arith.addf %11, %14 : vector<1x13xf32>
    %16 = vector.extract_strided_slice %4 {offsets = [0, 26], sizes = [1, 13], strides = [1, 1]} : vector<1x52xf32> to vector<1x13xf32>
    %17 = arith.addf %13, %16 : vector<1x13xf32>
    %18 = vector.extract_strided_slice %7 {offsets = [0, 26], sizes = [1, 13], strides = [1, 1]} : vector<1x52xf32> to vector<1x13xf32>
    %19 = arith.addf %15, %18 : vector<1x13xf32>
    %20 = vector.extract_strided_slice %4 {offsets = [0, 39], sizes = [1, 13], strides = [1, 1]} : vector<1x52xf32> to vector<1x13xf32>
    %21 = arith.addf %17, %20 : vector<1x13xf32>
    %22 = vector.extract_strided_slice %7 {offsets = [0, 39], sizes = [1, 13], strides = [1, 1]} : vector<1x52xf32> to vector<1x13xf32>
    %23 = arith.addf %19, %22 : vector<1x13xf32>
    %cst_9 = arith.constant 9.765625E-4 : f32
    %24 = vector.broadcast %cst_9 : f32 to vector<1x13xf32>
    %25 = arith.mulf %21, %24 : vector<1x13xf32>
    %cst_10 = arith.constant 9.765625E-4 : f32
    %26 = vector.broadcast %cst_10 : f32 to vector<1x13xf32>
    %27 = arith.mulf %23, %26 : vector<1x13xf32>
    %28 = arith.mulf %25, %25 : vector<1x13xf32>
    %29 = arith.subf %27, %28 : vector<1x13xf32>
    %cst_11 = arith.constant 9.99999974E-6 : f32
    %30 = vector.broadcast %cst_11 : f32 to vector<1x13xf32>
    %31 = arith.addf %29, %30 : vector<1x13xf32>
    %32 = math.rsqrt %31 : vector<1x13xf32>
    %33 = tpu.concatenate %25, %25, %25, %25 in 1 : vector<1x13xf32>, vector<1x13xf32>, vector<1x13xf32>, vector<1x13xf32> -> vector<1x52xf32>
    %34 = tpu.concatenate %32, %32, %32, %32 in 1 : vector<1x13xf32>, vector<1x13xf32>, vector<1x13xf32>, vector<1x13xf32> -> vector<1x52xf32>
    %35 = arith.mulf %34, %8 : vector<1x52xf32>
    %36 = arith.mulf %33, %35 : vector<1x52xf32>
    %37 = arith.subf %9, %36 : vector<1x52xf32>
    %38 = vector.broadcast %35 : vector<1x52xf32> to vector<256x52xf32>
    %39 = arith.mulf %2, %38 : vector<256x52xf32>
    %40 = vector.broadcast %37 : vector<1x52xf32> to vector<256x52xf32>
    %41 = arith.addf %39, %40 : vector<256x52xf32>
    %cst_12 = arith.constant 0.000000e+00 : f32
    %42 = vector.broadcast %cst_12 : f32 to vector<256x52xf32>
    %43 = arith.maximumf %41, %42 : vector<256x52xf32>
    %c0_13 = arith.constant 0 : index
    %c0_14 = arith.constant 0 : index
    %44 = vector.load %arg5[%c0_13, %c0_14] : memref<256x52xf32, #tpu.memory_space<vmem>>, vector<256x52xf32>
    tpu.vector_store %arg5[%c0_13, %c0_14], %43 {strides = array<i32>} : memref<256x52xf32, #tpu.memory_space<vmem>>, vector<256x52xf32>,
    return
  }
  func.func @transform_0(%arg0: i32) -> (i32, i32) {
    %c0_i32 = arith.constant 0 : i32
    %c0_i32_0 = arith.constant 0 : i32
    %c0_i32_1 = arith.constant 0 : i32
    return %c0_i32, %c0_i32_0 : i32, i32
  }
  func.func @transform_1(%arg0: i32) -> (i32, i32) {
    %c0_i32 = arith.constant 0 : i32
    %c0_i32_0 = arith.constant 0 : i32
    %c0_i32_1 = arith.constant 0 : i32
    return %c0_i32, %c0_i32_0 : i32, i32
  }
  func.func @transform_2(%arg0: i32) -> (i32, i32) {
    %c0_i32 = arith.constant 0 : i32
    %c0_i32_0 = arith.constant 0 : i32
    %c0_i32_1 = arith.constant 0 : i32
    return %c0_i32, %c0_i32_0 : i32, i32
  }
  func.func @transform_3(%arg0: i32) -> (i32, i32) {
    %c0_i32 = arith.constant 0 : i32
    %c0_i32_0 = arith.constant 0 : i32
    %c0_i32_1 = arith.constant 0 : i32
    return %c0_i32, %c0_i32_0 : i32, i32
  }
  func.func @transform_4(%arg0: i32) -> (i32, i32) {
    %c0_i32 = arith.constant 0 : i32
    %c0_i32_0 = arith.constant 0 : i32
    %c0_i32_1 = arith.constant 0 : i32
    return %c0_i32, %c0_i32_0 : i32, i32
  }
}

module attributes {stable_mosaic.version = 11 : i64} {
  func.func @_matmul_stats_kernel(%arg0: i32, %arg1: memref<256x117xf32, #tpu.memory_space<vmem>>, %arg2: memref<117x32xf32, #tpu.memory_space<vmem>>, %arg3: memref<256x32xf32, #tpu.memory_space<vmem>>, %arg4: memref<2x32xf32, #tpu.memory_space<vmem>>) attributes {dimension_semantics = [#tpu.dimension_semantics<arbitrary>], iteration_bounds = array<i64: 4>, scalar_prefetch = 0 : i64, scratch_operands = 0 : i64, tpu.core_type = #tpu.core_type<tc>, window_params = [{transform_indices = @transform_0, window_bounds = array<i64: 256, 117>}, {pipeline_mode = #tpu.pipeline_mode<synchronous>, transform_indices = @transform_1, window_bounds = array<i64: 117, 32>}, {transform_indices = @transform_2, window_bounds = array<i64: 256, 32>}, {pipeline_mode = #tpu.pipeline_mode<synchronous>, transform_indices = @transform_3, window_bounds = array<i64: 2, 32>}]} {
    %c0_i32 = arith.constant 0 : i32
    %0 = arith.cmpi eq, %arg0, %c0_i32 : i32
    %1 = arith.extui %0 : i1 to i32
    %c0_i32_0 = arith.constant 0 : i32
    %2 = arith.cmpi ne, %1, %c0_i32_0 : i32
    scf.if %2 {
      %cst_12 = arith.constant 0.000000e+00 : f32
      %16 = vector.broadcast %cst_12 : f32 to vector<2x32xf32>
      %c0_13 = arith.constant 0 : index
      %c0_14 = arith.constant 0 : index
      %17 = vector.load %arg4[%c0_13, %c0_14] : memref<2x32xf32, #tpu.memory_space<vmem>>, vector<2x32xf32>
      tpu.vector_store %arg4[%c0_13, %c0_14], %16 {strides = array<i32>} : memref<2x32xf32, #tpu.memory_space<vmem>>, vector<2x32xf32>,
    } else {
    }
    %c0 = arith.constant 0 : index
    %c0_1 = arith.constant 0 : index
    %3 = vector.load %arg1[%c0, %c0_1] : memref<256x117xf32, #tpu.memory_space<vmem>>, vector<256x117xf32>
    %c0_2 = arith.constant 0 : index
    %c0_3 = arith.constant 0 : index
    %4 = vector.load %arg2[%c0_2, %c0_3] : memref<117x32xf32, #tpu.memory_space<vmem>>, vector<117x32xf32>
    %cst = arith.constant dense<0.000000e+00> : vector<256x32xf32>
    %5 = tpu.matmul %3, %4, %cst {dimension_numbers = #tpu.dot_dimension_numbers<[1], [0], [0], [1], [0, 0, 1, 1], [], []>} : vector<256x117xf32>, vector<117x32xf32>, vector<256x32xf32> -> vector<256x32xf32>
    %c0_4 = arith.constant 0 : index
    %c0_5 = arith.constant 0 : index
    %6 = vector.load %arg3[%c0_4, %c0_5] : memref<256x32xf32, #tpu.memory_space<vmem>>, vector<256x32xf32>
    tpu.vector_store %arg3[%c0_4, %c0_5], %5 {strides = array<i32>} : memref<256x32xf32, #tpu.memory_space<vmem>>, vector<256x32xf32>,
    %c0_6 = arith.constant 0 : index
    %c0_7 = arith.constant 0 : index
    %7 = vector.load %arg4[%c0_6, %c0_7] : memref<2x32xf32, #tpu.memory_space<vmem>>, vector<2x32xf32>
    %cst_8 = arith.constant dense<0.000000e+00> : vector<32xf32>
    %8 = vector.multi_reduction <add>, %5, %cst_8 [0] : vector<256x32xf32> to vector<32xf32>
    %9 = vector.shape_cast %8 : vector<32xf32> to vector<1x32xf32>
    %10 = arith.mulf %5, %5 : vector<256x32xf32>
    %cst_9 = arith.constant dense<0.000000e+00> : vector<32xf32>
    %11 = vector.multi_reduction <add>, %10, %cst_9 [0] : vector<256x32xf32> to vector<32xf32>
    %12 = vector.shape_cast %11 : vector<32xf32> to vector<1x32xf32>
    %13 = tpu.concatenate %9, %12 in 0 : vector<1x32xf32>, vector<1x32xf32> -> vector<2x32xf32>
    %14 = arith.addf %7, %13 : vector<2x32xf32>
    %c0_10 = arith.constant 0 : index
    %c0_11 = arith.constant 0 : index
    %15 = vector.load %arg4[%c0_10, %c0_11] : memref<2x32xf32, #tpu.memory_space<vmem>>, vector<2x32xf32>
    tpu.vector_store %arg4[%c0_10, %c0_11], %14 {strides = array<i32>} : memref<2x32xf32, #tpu.memory_space<vmem>>, vector<2x32xf32>,
    return
  }
  func.func @transform_0(%arg0: i32) -> (i32, i32) {
    %c0_i32 = arith.constant 0 : i32
    %c0_i32_0 = arith.constant 0 : i32
    return %arg0, %c0_i32 : i32, i32
  }
  func.func @transform_1(%arg0: i32) -> (i32, i32) {
    %c0_i32 = arith.constant 0 : i32
    %c0_i32_0 = arith.constant 0 : i32
    %c0_i32_1 = arith.constant 0 : i32
    return %c0_i32, %c0_i32_0 : i32, i32
  }
  func.func @transform_2(%arg0: i32) -> (i32, i32) {
    %c0_i32 = arith.constant 0 : i32
    %c0_i32_0 = arith.constant 0 : i32
    return %arg0, %c0_i32 : i32, i32
  }
  func.func @transform_3(%arg0: i32) -> (i32, i32) {
    %c0_i32 = arith.constant 0 : i32
    %c0_i32_0 = arith.constant 0 : i32
    %c0_i32_1 = arith.constant 0 : i32
    return %c0_i32, %c0_i32_0 : i32, i32
  }
}

module attributes {stable_mosaic.version = 11 : i64} {
  func.func @kernel(%arg0: i32, %arg1: memref<256x32xf32, #tpu.memory_space<vmem>>, %arg2: memref<2x32xf32, #tpu.memory_space<vmem>>, %arg3: memref<1x32xf32, #tpu.memory_space<vmem>>, %arg4: memref<1x32xf32, #tpu.memory_space<vmem>>, %arg5: memref<32x12xf32, #tpu.memory_space<vmem>>, %arg6: memref<1x12xf32, #tpu.memory_space<vmem>>, %arg7: memref<256x12xf32, #tpu.memory_space<vmem>>) attributes {dimension_semantics = [#tpu.dimension_semantics<parallel>], iteration_bounds = array<i64: 4>, scalar_prefetch = 0 : i64, scratch_operands = 0 : i64, tpu.core_type = #tpu.core_type<tc>, window_params = [{transform_indices = @transform_0, window_bounds = array<i64: 256, 32>}, {pipeline_mode = #tpu.pipeline_mode<synchronous>, transform_indices = @transform_1, window_bounds = array<i64: 2, 32>}, {pipeline_mode = #tpu.pipeline_mode<synchronous>, transform_indices = @transform_2, window_bounds = array<i64: 1, 32>}, {pipeline_mode = #tpu.pipeline_mode<synchronous>, transform_indices = @transform_3, window_bounds = array<i64: 1, 32>}, {pipeline_mode = #tpu.pipeline_mode<synchronous>, transform_indices = @transform_4, window_bounds = array<i64: 32, 12>}, {pipeline_mode = #tpu.pipeline_mode<synchronous>, transform_indices = @transform_5, window_bounds = array<i64: 1, 12>}, {transform_indices = @transform_6, window_bounds = array<i64: 256, 12>}]} {
    %c0 = arith.constant 0 : index
    %c0_0 = arith.constant 0 : index
    %0 = vector.load %arg2[%c0, %c0_0] : memref<2x32xf32, #tpu.memory_space<vmem>>, vector<1x32xf32>
    %c1 = arith.constant 1 : index
    %c0_1 = arith.constant 0 : index
    %1 = vector.load %arg2[%c1, %c0_1] : memref<2x32xf32, #tpu.memory_space<vmem>>, vector<1x32xf32>
    %c0_2 = arith.constant 0 : index
    %c0_3 = arith.constant 0 : index
    %2 = vector.load %arg3[%c0_2, %c0_3] : memref<1x32xf32, #tpu.memory_space<vmem>>, vector<1x32xf32>
    %c0_4 = arith.constant 0 : index
    %c0_5 = arith.constant 0 : index
    %3 = vector.load %arg4[%c0_4, %c0_5] : memref<1x32xf32, #tpu.memory_space<vmem>>, vector<1x32xf32>
    %4 = vector.extract_strided_slice %0 {offsets = [0, 0], sizes = [1, 8], strides = [1, 1]} : vector<1x32xf32> to vector<1x8xf32>
    %5 = vector.extract_strided_slice %1 {offsets = [0, 0], sizes = [1, 8], strides = [1, 1]} : vector<1x32xf32> to vector<1x8xf32>
    %6 = vector.extract_strided_slice %0 {offsets = [0, 8], sizes = [1, 8], strides = [1, 1]} : vector<1x32xf32> to vector<1x8xf32>
    %7 = arith.addf %4, %6 : vector<1x8xf32>
    %8 = vector.extract_strided_slice %1 {offsets = [0, 8], sizes = [1, 8], strides = [1, 1]} : vector<1x32xf32> to vector<1x8xf32>
    %9 = arith.addf %5, %8 : vector<1x8xf32>
    %10 = vector.extract_strided_slice %0 {offsets = [0, 16], sizes = [1, 8], strides = [1, 1]} : vector<1x32xf32> to vector<1x8xf32>
    %11 = arith.addf %7, %10 : vector<1x8xf32>
    %12 = vector.extract_strided_slice %1 {offsets = [0, 16], sizes = [1, 8], strides = [1, 1]} : vector<1x32xf32> to vector<1x8xf32>
    %13 = arith.addf %9, %12 : vector<1x8xf32>
    %14 = vector.extract_strided_slice %0 {offsets = [0, 24], sizes = [1, 8], strides = [1, 1]} : vector<1x32xf32> to vector<1x8xf32>
    %15 = arith.addf %11, %14 : vector<1x8xf32>
    %16 = vector.extract_strided_slice %1 {offsets = [0, 24], sizes = [1, 8], strides = [1, 1]} : vector<1x32xf32> to vector<1x8xf32>
    %17 = arith.addf %13, %16 : vector<1x8xf32>
    %cst = arith.constant 2.44140625E-4 : f32
    %18 = vector.broadcast %cst : f32 to vector<1x8xf32>
    %19 = arith.mulf %15, %18 : vector<1x8xf32>
    %cst_6 = arith.constant 2.44140625E-4 : f32
    %20 = vector.broadcast %cst_6 : f32 to vector<1x8xf32>
    %21 = arith.mulf %17, %20 : vector<1x8xf32>
    %22 = arith.mulf %19, %19 : vector<1x8xf32>
    %23 = arith.subf %21, %22 : vector<1x8xf32>
    %cst_7 = arith.constant 9.99999974E-6 : f32
    %24 = vector.broadcast %cst_7 : f32 to vector<1x8xf32>
    %25 = arith.addf %23, %24 : vector<1x8xf32>
    %26 = math.rsqrt %25 : vector<1x8xf32>
    %27 = tpu.concatenate %19, %19, %19, %19 in 1 : vector<1x8xf32>, vector<1x8xf32>, vector<1x8xf32>, vector<1x8xf32> -> vector<1x32xf32>
    %28 = tpu.concatenate %26, %26, %26, %26 in 1 : vector<1x8xf32>, vector<1x8xf32>, vector<1x8xf32>, vector<1x8xf32> -> vector<1x32xf32>
    %29 = arith.mulf %28, %2 : vector<1x32xf32>
    %30 = arith.mulf %27, %29 : vector<1x32xf32>
    %31 = arith.subf %3, %30 : vector<1x32xf32>
    %c0_8 = arith.constant 0 : index
    %c0_9 = arith.constant 0 : index
    %32 = vector.load %arg1[%c0_8, %c0_9] : memref<256x32xf32, #tpu.memory_space<vmem>>, vector<256x32xf32>
    %33 = vector.broadcast %29 : vector<1x32xf32> to vector<256x32xf32>
    %34 = arith.mulf %32, %33 : vector<256x32xf32>
    %35 = vector.broadcast %31 : vector<1x32xf32> to vector<256x32xf32>
    %36 = arith.addf %34, %35 : vector<256x32xf32>
    %cst_10 = arith.constant 0.000000e+00 : f32
    %37 = vector.broadcast %cst_10 : f32 to vector<256x32xf32>
    %38 = arith.maximumf %36, %37 : vector<256x32xf32>
    %c0_11 = arith.constant 0 : index
    %c0_12 = arith.constant 0 : index
    %39 = vector.load %arg5[%c0_11, %c0_12] : memref<32x12xf32, #tpu.memory_space<vmem>>, vector<32x12xf32>
    %cst_13 = arith.constant dense<0.000000e+00> : vector<256x12xf32>
    %40 = tpu.matmul %38, %39, %cst_13 {dimension_numbers = #tpu.dot_dimension_numbers<[1], [0], [0], [1], [0, 0, 1, 1], [], []>} : vector<256x32xf32>, vector<32x12xf32>, vector<256x12xf32> -> vector<256x12xf32>
    %c0_14 = arith.constant 0 : index
    %c0_15 = arith.constant 0 : index
    %41 = vector.load %arg6[%c0_14, %c0_15] : memref<1x12xf32, #tpu.memory_space<vmem>>, vector<1x12xf32>
    %42 = vector.broadcast %41 : vector<1x12xf32> to vector<256x12xf32>
    %43 = arith.addf %40, %42 : vector<256x12xf32>
    %cst_16 = arith.constant 5.000000e-01 : f32
    %44 = vector.broadcast %cst_16 : f32 to vector<256x12xf32>
    %45 = arith.mulf %44, %43 : vector<256x12xf32>
    %46 = math.tanh %45 : vector<256x12xf32>
    %cst_17 = arith.constant 1.000000e+00 : f32
    %47 = vector.broadcast %cst_17 : f32 to vector<256x12xf32>
    %48 = arith.addf %46, %47 : vector<256x12xf32>
    %cst_18 = arith.constant 5.000000e-01 : f32
    %49 = vector.broadcast %cst_18 : f32 to vector<256x12xf32>
    %50 = arith.mulf %49, %48 : vector<256x12xf32>
    %c0_19 = arith.constant 0 : index
    %c0_20 = arith.constant 0 : index
    %51 = vector.load %arg7[%c0_19, %c0_20] : memref<256x12xf32, #tpu.memory_space<vmem>>, vector<256x12xf32>
    tpu.vector_store %arg7[%c0_19, %c0_20], %50 {strides = array<i32>} : memref<256x12xf32, #tpu.memory_space<vmem>>, vector<256x12xf32>,
    return
  }
  func.func @transform_0(%arg0: i32) -> (i32, i32) {
    %c0_i32 = arith.constant 0 : i32
    %c0_i32_0 = arith.constant 0 : i32
    return %arg0, %c0_i32 : i32, i32
  }
  func.func @transform_1(%arg0: i32) -> (i32, i32) {
    %c0_i32 = arith.constant 0 : i32
    %c0_i32_0 = arith.constant 0 : i32
    %c0_i32_1 = arith.constant 0 : i32
    return %c0_i32, %c0_i32_0 : i32, i32
  }
  func.func @transform_2(%arg0: i32) -> (i32, i32) {
    %c0_i32 = arith.constant 0 : i32
    %c0_i32_0 = arith.constant 0 : i32
    %c0_i32_1 = arith.constant 0 : i32
    return %c0_i32, %c0_i32_0 : i32, i32
  }
  func.func @transform_3(%arg0: i32) -> (i32, i32) {
    %c0_i32 = arith.constant 0 : i32
    %c0_i32_0 = arith.constant 0 : i32
    %c0_i32_1 = arith.constant 0 : i32
    return %c0_i32, %c0_i32_0 : i32, i32
  }
  func.func @transform_4(%arg0: i32) -> (i32, i32) {
    %c0_i32 = arith.constant 0 : i32
    %c0_i32_0 = arith.constant 0 : i32
    %c0_i32_1 = arith.constant 0 : i32
    return %c0_i32, %c0_i32_0 : i32, i32
  }
  func.func @transform_5(%arg0: i32) -> (i32, i32) {
    %c0_i32 = arith.constant 0 : i32
    %c0_i32_0 = arith.constant 0 : i32
    %c0_i32_1 = arith.constant 0 : i32
    return %c0_i32, %c0_i32_0 : i32, i32
  }
  func.func @transform_6(%arg0: i32) -> (i32, i32) {
    %c0_i32 = arith.constant 0 : i32
    %c0_i32_0 = arith.constant 0 : i32
    return %arg0, %c0_i32 : i32, i32
  }
}

</mosaic_0001>

<llo_original>
// kernel: _lambda_.7
$region0: #{_lambda_.7}
  #allocation0 [shape = 'u32[]', space=smem, size = 0x4, offset = 0x4, fixed_abs, tag = 'smem constant byte address 0x4 - core index']
  #allocation1 [shape = 'u32[144,128]{1,0:T(1,128)}', space=vmem, size = 0x12000, scoped, tag = 'internal scratch']
  %s0 = inlined_call_operand.vmem [shape: f32[4,32], index: 0, kind: input, shape index: {}]
  %s1 = inlined_call_operand.hbm [shape: f32[32,560], index: 1, kind: input, shape index: {}]
  %s2 = inlined_call_operand.vmem [shape: f32[1,560], index: 2, kind: input, shape index: {}]
  %s3 = inlined_call_operand.vmem [shape: f32[1,560], index: 3, kind: input, shape index: {}]
  %s4 = inlined_call_operand.vmem [shape: f32[4,560], index: 4, kind: output, shape index: {}]
  %s5 = sld [smem:[#allocation0]]
  $region30: #{_lambda_.7} parent=0
    _
  %s7 = ssub.s32 1, %s5
  %s8 = scalar_select 0, %s7, %s5
  $region1: #{_lambda_.7} parent=0
    #allocation2 [shape = 'u8[81920]{0}', space=vmem, size = 0x14000, scoped, tag = 'input window, operand 1, single buffered']
    #allocation3 [shape = 's32[1]{0}', space=sflag, size = 0x4, scoped, tag = 'scoped memory for _lambda_.7']
    %9 = vsyncpa [#allocation3], 0
    // Predicated region
    $region2: #{_lambda_.7} parent=1 // pred_check
      _
    $region3: #{_lambda_.7} parent=1 // pred_check_branch
      %11 = sbr.rel (0) target = $region5
    $region4: #{_lambda_.7} parent=1 // pred_region
      _
    $region5: #{_lambda_.7} parent=1 // pred_fallthru
      _
    // Predicated region
    $region6: #{_lambda_.7} parent=1 // pred_check
      _
    $region7: #{_lambda_.7} parent=1 // pred_check_branch
      %13 = sbr.rel (0) target = $region9
    $region8: #{_lambda_.7} parent=1 // pred_region
      %s15 = ssub.s32 2560, 2560
      %16 = vsyncadd [#allocation3], %s15
      %s17 = sshll.u32 [#allocation2], 4
      %s18 = int_to_ptr.vmem [resolvable:$true] %s17
      %23 = dma.hbm_to_vmem [thread:$0]  %s1, 2560, %s18, [#allocation3], 640, 640, 40
    $region9: #{_lambda_.7} parent=1 // pred_fallthru
      _
    // Predicated region
    $region10: #{_lambda_.7} parent=1 // pred_check
      _
    $region11: #{_lambda_.7} parent=1 // pred_check_branch
      %25 = sbr.rel (0) target = $region13
    $region12: #{_lambda_.7} parent=1 // pred_region
      _
    $region13: #{_lambda_.7} parent=1 // pred_fallthru
      _
    // Predicated region
    $region14: #{_lambda_.7} parent=1 // pred_check
      _
    $region15: #{_lambda_.7} parent=1 // pred_check_branch
      %27 = sbr.rel (0) target = $region17
    $region16: #{_lambda_.7} parent=1 // pred_region
      _
    $region17: #{_lambda_.7} parent=1 // pred_fallthru
      _
    // Predicated region
    $region18: #{_lambda_.7} parent=1 // pred_check
      _
    $region19: #{_lambda_.7} parent=1 // pred_check_branch
      %29 = sbr.rel (0) target = $region21
    $region20: #{_lambda_.7} parent=1 // pred_region
      %30 = dma.done [#allocation3], 2560
    $region21: #{_lambda_.7} parent=1 // pred_fallthru
      _
    %v31 = vld [vmem:[%s0] sm:$0xf]
    %v32 = vld [vmem:[#allocation2] sm:$0xff]
    %v33 = vld [vmem:[#allocation2 + $0x8] sm:$0xff]
    %v34 = vld [vmem:[#allocation2 + $0x10] sm:$0xff]
    %v35 = vld [vmem:[#allocation2 + $0x18] sm:$0xff]
    %v36 = vld [vmem:[#allocation2 + $0x20] sm:$0xff]
    %v37 = vld [vmem:[#allocation2 + $0x28] sm:$0xff]
    %v38 = vld [vmem:[#allocation2 + $0x30] sm:$0xff]
    %v39 = vld [vmem:[#allocation2 + $0x38] sm:$0xff]
    %v40 = vld [vmem:[#allocation2 + $0x40] sm:$0xff]
    %v41 = vld [vmem:[#allocation2 + $0x48] sm:$0xff]
    %v42 = vld [vmem:[#allocation2 + $0x50] sm:$0xff]
    %v43 = vld [vmem:[#allocation2 + $0x58] sm:$0xff]
    %v44 = vld [vmem:[#allocation2 + $0x60] sm:$0xff]
    %v45 = vld [vmem:[#allocation2 + $0x68] sm:$0xff]
    %v46 = vld [vmem:[#allocation2 + $0x70] sm:$0xff]
    %v47 = vld [vmem:[#allocation2 + $0x78] sm:$0xff]
    %v48 = vld [vmem:[#allocation2 + $0x80] sm:$0xff]
    %v49 = vld [vmem:[#allocation2 + $0x88] sm:$0xff]
    %v50 = vld [vmem:[#allocation2 + $0x90] sm:$0xff]
    %v51 = vld [vmem:[#allocation2 + $0x98] sm:$0xff]
    %vm52 = vcmask 261120
    %v54 = vsel %vm52, %v31, 0
    %56 = vmatprep.subr.mxu0 %v33
    %57 = vmatpush1.msra.mxu0 %v32
    %58 = vmatprep.subr.mxu0 %v38
    %59 = vmatpush1.msra.mxu0 %v37
    %60 = vmatprep.subr.mxu0 %v43
    %61 = vmatpush1.msra.mxu0 %v42
    %62 = vmatprep.subr.mxu0 %v48
    %63 = vmatpush1.msra.mxu0 %v47
    %64 = vmatprep.subr.mxu0 0.0
    %65 = vmatpush1.msra.mxu0 0.0
    %66 = vmatprep.subr.mxu0 0.0
    %67 = vmatpush1.msra.mxu0 0.0
    %68 = vmatprep.subr.mxu0 0.0
    %69 = vmatpush1.msra.mxu0 0.0
    %70 = vmatprep.subr.mxu0 0.0
    %71 = vmatpush1.msra.mxu0 0.0
    %72 = vmatprep.subr.mxu0 0.0
    %73 = vmatpush1.msra.mxu0 0.0
    %74 = vmatprep.subr.mxu0 0.0
    %75 = vmatpush1.msra.mxu0 0.0
    %76 = vmatprep.subr.mxu0 0.0
    %77 = vmatpush1.msra.mxu0 0.0
    %78 = vmatprep.subr.mxu0 0.0
    %79 = vmatpush1.msra.mxu0 0.0
    %80 = vmatprep.subr.mxu0 0.0
    %81 = vmatpush1.msra.mxu0 0.0
    %82 = vmatprep.subr.mxu0 0.0
    %83 = vmatpush1.msra.mxu0 0.0
    %84 = vmatprep.subr.mxu0 0.0
    %85 = vmatpush1.msra.mxu0 0.0
    %86 = vmatprep.subr.mxu0 0.0
    %87 = vmatpush1.msra.mxu0 0.0
    %88 = vmatprep.subr.mxu0 0.0
    %89 = vmatpush1.msra.mxu0 0.0
    %90 = vmatprep.subr.mxu0 0.0
    %91 = vmatpush1.msra.mxu0 0.0
    %92 = vmatprep.subr.mxu0 0.0
    %93 = vmatpush1.msra.mxu0 0.0
    %94 = vmatprep.subr.mxu0 0.0
    %95 = vmatpush1.msra.mxu0 0.0
    %96 = vmatprep.subr.mxu0 0.0
    %97 = vmatpush1.msra.mxu0 0.0
    %98 = vmatprep.subr.mxu0 0.0
    %99 = vmatpush1.msra.mxu0 0.0
    %100 = vmatprep.subr.mxu0 0.0
    %101 = vmatpush1.msra.mxu0 0.0
    %102 = vmatprep.subr.mxu0 0.0
    %103 = vmatpush1.msra.mxu0 0.0
    %104 = vmatprep.subr.mxu0 0.0
    %105 = vmatpush1.msra.mxu0 0.0
    %106 = vmatprep.subr.mxu0 0.0
    %107 = vmatpush1.msra.mxu0 0.0
    %108 = vmatprep.subr.mxu0 0.0
    %109 = vmatpush1.msra.mxu0 0.0
    %110 = vmatprep.subr.mxu0 0.0
    %111 = vmatpush1.msra.mxu0 0.0
    %112 = vmatprep.subr.mxu0 0.0
    %113 = vmatpush1.msra.mxu0 0.0
    %114 = vmatprep.subr.mxu0 0.0
    %115 = vmatpush1.msra.mxu0 0.0
    %116 = vmatprep.subr.mxu0 0.0
    %117 = vmatpush1.msra.mxu0 0.0
    %118 = vmatprep.subr.mxu0 0.0
    %119 = vmatpush1.msra.mxu0 0.0
    %120 = vmatprep.mubr.f32.mxu0 0.0
    %121 = vmatmul.mubr.f32.gmra.mrb[0].mxu0 %v54
    %v122 = vpop.f32.mrb[0].mxu0
    %v123 = vadd.f32 0.0, %v122
    %v124 = vpop.f32.mrb[0].mxu0
    %v125 = vadd.f32 0.0, %v124
    %126 = vdwg.mxu0
    %127 = vmatprep.subr.mxu0 %v35
    %128 = vmatpush1.msra.mxu0 %v34
    %129 = vmatprep.subr.mxu0 %v40
    %130 = vmatpush1.msra.mxu0 %v39
    %131 = vmatprep.subr.mxu0 %v45
    %132 = vmatpush1.msra.mxu0 %v44
    %133 = vmatprep.subr.mxu0 %v50
    %134 = vmatpush1.msra.mxu0 %v49
    %135 = vmatprep.subr.mxu0 0.0
    %136 = vmatpush1.msra.mxu0 0.0
    %137 = vmatprep.subr.mxu0 0.0
    %138 = vmatpush1.msra.mxu0 0.0
    %139 = vmatprep.subr.mxu0 0.0
    %140 = vmatpush1.msra.mxu0 0.0
    %141 = vmatprep.subr.mxu0 0.0
    %142 = vmatpush1.msra.mxu0 0.0
    %143 = vmatprep.subr.mxu0 0.0
    %144 = vmatpush1.msra.mxu0 0.0
    %145 = vmatprep.subr.mxu0 0.0
    %146 = vmatpush1.msra.mxu0 0.0
    %147 = vmatprep.subr.mxu0 0.0
    %148 = vmatpush1.msra.mxu0 0.0
    %149 = vmatprep.subr.mxu0 0.0
    %150 = vmatpush1.msra.mxu0 0.0
    %151 = vmatprep.subr.mxu0 0.0
    %152 = vmatpush1.msra.mxu0 0.0
    %153 = vmatprep.subr.mxu0 0.0
    %154 = vmatpush1.msra.mxu0 0.0
    %155 = vmatprep.subr.mxu0 0.0
    %156 = vmatpush1.msra.mxu0 0.0
    %157 = vmatprep.subr.mxu0 0.0
    %158 = vmatpush1.msra.mxu0 0.0
    %159 = vmatprep.subr.mxu0 0.0
    %160 = vmatpush1.msra.mxu0 0.0
    %161 = vmatprep.subr.mxu0 0.0
    %162 = vmatpush1.msra.mxu0 0.0
    %163 = vmatprep.subr.mxu0 0.0
    %164 = vmatpush1.msra.mxu0 0.0
    %165 = vmatprep.subr.mxu0 0.0
    %166 = vmatpush1.msra.mxu0 0.0
    %167 = vmatprep.subr.mxu0 0.0
    %168 = vmatpush1.msra.mxu0 0.0
    %169 = vmatprep.subr.mxu0 0.0
    %170 = vmatpush1.msra.mxu0 0.0
    %171 = vmatprep.subr.mxu0 0.0
    %172 = vmatpush1.msra.mxu0 0.0
    %173 = vmatprep.subr.mxu0 0.0
    %174 = vmatpush1.msra.mxu0 0.0
    %175 = vmatprep.subr.mxu0 0.0
    %176 = vmatpush1.msra.mxu0 0.0
    %177 = vmatprep.subr.mxu0 0.0
    %178 = vmatpush1.msra.mxu0 0.0
    %179 = vmatprep.subr.mxu0 0.0
    %180 = vmatpush1.msra.mxu0 0.0
    %181 = vmatprep.subr.mxu0 0.0
    %182 = vmatpush1.msra.mxu0 0.0
    %183 = vmatprep.subr.mxu0 0.0
    %184 = vmatpush1.msra.mxu0 0.0
    %185 = vmatprep.subr.mxu0 0.0
    %186 = vmatpush1.msra.mxu0 0.0
    %187 = vmatprep.subr.mxu0 0.0
    %188 = vmatpush1.msra.mxu0 0.0
    %189 = vmatprep.subr.mxu0 0.0
    %190 = vmatpush1.msra.mxu0 0.0
    %191 = vmatprep.mubr.f32.mxu0 0.0
    %192 = vmatmul.mubr.f32.gmra.mrb[0].mxu0 %v54
    %v193 = vpop.f32.mrb[0].mxu0
    %v194 = vadd.f32 0.0, %v193
    %v195 = vpop.f32.mrb[0].mxu0
    %v196 = vadd.f32 0.0, %v195
    %197 = vdwg.mxu0
    %198 = vmatprep.subr.mxu0 0.0
    %199 = vmatpush1.msra.mxu0 %v36
    %200 = vmatprep.subr.mxu0 0.0
    %201 = vmatpush1.msra.mxu0 %v41
    %202 = vmatprep.subr.mxu0 0.0
    %203 = vmatpush1.msra.mxu0 %v46
    %204 = vmatprep.subr.mxu0 0.0
    %205 = vmatpush1.msra.mxu0 %v51
    %206 = vmatprep.subr.mxu0 0.0
    %207 = vmatpush1.msra.mxu0 0.0
    %208 = vmatprep.subr.mxu0 0.0
    %209 = vmatpush1.msra.mxu0 0.0
    %210 = vmatprep.subr.mxu0 0.0
    %211 = vmatpush1.msra.mxu0 0.0
    %212 = vmatprep.subr.mxu0 0.0
    %213 = vmatpush1.msra.mxu0 0.0
    %214 = vmatprep.subr.mxu0 0.0
    %215 = vmatpush1.msra.mxu0 0.0
    %216 = vmatprep.subr.mxu0 0.0
    %217 = vmatpush1.msra.mxu0 0.0
    %218 = vmatprep.subr.mxu0 0.0
    %219 = vmatpush1.msra.mxu0 0.0
    %220 = vmatprep.subr.mxu0 0.0
    %221 = vmatpush1.msra.mxu0 0.0
    %222 = vmatprep.subr.mxu0 0.0
    %223 = vmatpush1.msra.mxu0 0.0
    %224 = vmatprep.subr.mxu0 0.0
    %225 = vmatpush1.msra.mxu0 0.0
    %226 = vmatprep.subr.mxu0 0.0
    %227 = vmatpush1.msra.mxu0 0.0
    %228 = vmatprep.subr.mxu0 0.0
    %229 = vmatpush1.msra.mxu0 0.0
    %230 = vmatprep.subr.mxu0 0.0
    %231 = vmatpush1.msra.mxu0 0.0
    %232 = vmatprep.subr.mxu0 0.0
    %233 = vmatpush1.msra.mxu0 0.0
    %234 = vmatprep.subr.mxu0 0.0
    %235 = vmatpush1.msra.mxu0 0.0
    %236 = vmatprep.subr.mxu0 0.0
    %237 = vmatpush1.msra.mxu0 0.0
    %238 = vmatprep.subr.mxu0 0.0
    %239 = vmatpush1.msra.mxu0 0.0
    %240 = vmatprep.subr.mxu0 0.0
    %241 = vmatpush1.msra.mxu0 0.0
    %242 = vmatprep.subr.mxu0 0.0
    %243 = vmatpush1.msra.mxu0 0.0
    %244 = vmatprep.subr.mxu0 0.0
    %245 = vmatpush1.msra.mxu0 0.0
    %246 = vmatprep.subr.mxu0 0.0
    %247 = vmatpush1.msra.mxu0 0.0
    %248 = vmatprep.subr.mxu0 0.0
    %249 = vmatpush1.msra.mxu0 0.0
    %250 = vmatprep.subr.mxu0 0.0
    %251 = vmatpush1.msra.mxu0 0.0
    %252 = vmatprep.subr.mxu0 0.0
    %253 = vmatpush1.msra.mxu0 0.0
    %254 = vmatprep.subr.mxu0 0.0
    %255 = vmatpush1.msra.mxu0 0.0
    %256 = vmatprep.subr.mxu0 0.0
    %257 = vmatpush1.msra.mxu0 0.0
    %258 = vmatprep.subr.mxu0 0.0
    %259 = vmatpush1.msra.mxu0 0.0
    %260 = vmatprep.subr.mxu0 0.0
    %261 = vmatpush1.msra.mxu0 0.0
    %262 = vmatprep.mubr.f32.mxu0 0.0
    %263 = vmatmul.mubr.f32.gmra.mrb[0].mxu0 %v54
    %v264 = vpop.f32.mrb[0].mxu0
    %v265 = vadd.f32 0.0, %v264
    %v266 = vpop.f32.mrb[0].mxu0
    %267 = vdwg.mxu0
    %vm268 = vcmask 1043456
    %v269 = vsel %vm268, %v123, 0.0
    %v270 = vrot.slane %v269, 4
    %v271 = vadd.f32 %v269, %v270
    %v272 = vrot.slane %v271, 2
    %v273 = vadd.f32 %v271, %v272
    %v274 = vrot.slane %v273, 1
    %v275 = vadd.f32 %v273, %v274
    %v276 = vsel %vm268, %v125, 0.0
    %v277 = vrot.slane %v276, 4
    %v278 = vadd.f32 %v276, %v277
    %v279 = vrot.slane %v278, 2
    %v280 = vadd.f32 %v278, %v279
    %v281 = vrot.slane %v280, 1
    %v282 = vadd.f32 %v280, %v281
    %v283 = vsel %vm268, %v194, 0.0
    %v284 = vrot.slane %v283, 4
    %v285 = vadd.f32 %v283, %v284
    %v286 = vrot.slane %v285, 2
    %v287 = vadd.f32 %v285, %v286
    %v288 = vrot.slane %v287, 1
    %v289 = vadd.f32 %v287, %v288
    %v290 = vsel %vm268, %v196, 0.0
    %v291 = vrot.slane %v290, 4
    %v292 = vadd.f32 %v290, %v291
    %v293 = vrot.slane %v292, 2
    %v294 = vadd.f32 %v292, %v293
    %v295 = vrot.slane %v294, 1
    %v296 = vadd.f32 %v294, %v295
    %vm297 = vcmask 388096
    %v298 = vsel %vm297, %v265, 0.0
    %v299 = vrot.slane %v298, 4
    %v300 = vadd.f32 %v298, %v299
    %v301 = vrot.slane %v300, 2
    %v302 = vadd.f32 %v300, %v301
    %v303 = vrot.slane %v302, 1
    %v304 = vadd.f32 %v302, %v303
    %v305 = vmul.f32 %v123, %v123
    %v306 = vmul.f32 %v125, %v125
    %v307 = vmul.f32 %v194, %v194
    %v308 = vmul.f32 %v196, %v196
    %v309 = vmul.f32 %v265, %v265
    %v310 = vsel %vm268, %v305, 0.0
    %v311 = vrot.slane %v310, 4
    %v312 = vadd.f32 %v310, %v311
    %v313 = vrot.slane %v312, 2
    %v314 = vadd.f32 %v312, %v313
    %v315 = vrot.slane %v314, 1
    %v316 = vadd.f32 %v314, %v315
    %v317 = vsel %vm268, %v306, 0.0
    %v318 = vrot.slane %v317, 4
    %v319 = vadd.f32 %v317, %v318
    %v320 = vrot.slane %v319, 2
    %v321 = vadd.f32 %v319, %v320
    %v322 = vrot.slane %v321, 1
    %v323 = vadd.f32 %v321, %v322
    %v324 = vsel %vm268, %v307, 0.0
    %v325 = vrot.slane %v324, 4
    %v326 = vadd.f32 %v324, %v325
    %v327 = vrot.slane %v326, 2
    %v328 = vadd.f32 %v326, %v327
    %v329 = vrot.slane %v328, 1
    %v330 = vadd.f32 %v328, %v329
    %v331 = vsel %vm268, %v308, 0.0
    %v332 = vrot.slane %v331, 4
    %v333 = vadd.f32 %v331, %v332
    %v334 = vrot.slane %v333, 2
    %v335 = vadd.f32 %v333, %v334
    %v336 = vrot.slane %v335, 1
    %v337 = vadd.f32 %v335, %v336
    %v338 = vsel %vm297, %v309, 0.0
    %v339 = vrot.slane %v338, 4
    %v340 = vadd.f32 %v338, %v339
    %v341 = vrot.slane %v340, 2
    %v342 = vadd.f32 %v340, %v341
    %v343 = vrot.slane %v342, 1
    %v344 = vadd.f32 %v342, %v343
    %v345 = vld [vmem:[%s2] sm:$0x1f]
    %v346 = vld [vmem:[%s3] sm:$0x1f]
    %v347 = vmul.f32 %v275, 0.25
    %v348 = vmul.f32 %v282, 0.25
    %v349 = vmul.f32 %v289, 0.25
    %v350 = vmul.f32 %v296, 0.25
    %v351 = vmul.f32 %v304, 0.25
    %v352 = vmul.f32 %v316, 0.25
    %v353 = vmul.f32 %v323, 0.25
    %v354 = vmul.f32 %v330, 0.25
    %v355 = vmul.f32 %v337, 0.25
    %v356 = vmul.f32 %v344, 0.25
    %v357 = vmul.f32 %v347, %v347
    %v358 = vmul.f32 %v348, %v348
    %v359 = vmul.f32 %v349, %v349
    %v360 = vmul.f32 %v350, %v350
    %v361 = vmul.f32 %v351, %v351
    %v362 = vsub.f32 %v352, %v357
    %v363 = vsub.f32 %v353, %v358
    %v364 = vsub.f32 %v354, %v359
    %v365 = vsub.f32 %v355, %v360
    %v366 = vsub.f32 %v356, %v361
    %v367 = vadd.f32 %v362, 1e-05
    %v368 = vadd.f32 %v363, 1e-05
    %v369 = vadd.f32 %v364, 1e-05
    %v370 = vadd.f32 %v365, 1e-05
    %v371 = vadd.f32 %v366, 1e-05
    %v372 = vrsqrt.pop %v367
    %v373 = vrsqrt.pop %v368
    %v374 = vrsqrt.pop %v369
    %v375 = vrsqrt.pop %v370
    %v376 = vrsqrt.pop %v371
    %v378 = vlaneseq
    %v379 = vshrl.u32 %v378, 7
    %v380 = vsub.s32 0, %v379
    %v381 = vrot.slane %v345, %v380
    %v382 = vlaneseq
    %v383 = vshrl.u32 %v382, 7
    %v384 = vsub.s32 1, %v383
    %v385 = vrot.slane %v345, %v384
    %v386 = vlaneseq
    %v387 = vshrl.u32 %v386, 7
    %v388 = vsub.s32 2, %v387
    %v389 = vrot.slane %v345, %v388
    %v390 = vlaneseq
    %v391 = vshrl.u32 %v390, 7
    %v392 = vsub.s32 3, %v391
    %v393 = vrot.slane %v345, %v392
    %v394 = vlaneseq
    %v395 = vshrl.u32 %v394, 7
    %v396 = vsub.s32 4, %v395
    %v397 = vrot.slane %v345, %v396
    %v403 = vmul.f32 %v372, %v381
    %v404 = vmul.f32 %v373, %v385
    %v405 = vmul.f32 %v374, %v389
    %v406 = vmul.f32 %v375, %v393
    %v407 = vmul.f32 %v376, %v397
    %v408 = vmul.f32 %v347, %v403
    %v409 = vmul.f32 %v348, %v404
    %v410 = vmul.f32 %v349, %v405
    %v411 = vmul.f32 %v350, %v406
    %v412 = vmul.f32 %v351, %v407
    %v418 = vcombine.low %v408, %v409
    %v419 = vcombine.low %v410, %v411
    %v421 = vunpack.c.l.s4 1966171168
    %v422 = vunpack.c.0.s8 %v421
    %v423 = vlaneseq
    %v424 = vshrl.u32 %v423, 7
    %v425 = vsub.s32 %v422, %v424
    %v426 = vrot.slane %v418, %v425
    %v428 = vunpack.c.l.s4 1966171168
    %v429 = vunpack.c.0.s8 %v428
    %v430 = vlaneseq
    %v431 = vshrl.u32 %v430, 7
    %v432 = vsub.s32 %v429, %v431
    %v433 = vrot.slane %v419, %v432
    %v435 = vunpack.c.l.s4 1966171168
    %v436 = vunpack.c.0.s8 %v435
    %v437 = vlaneseq
    %v438 = vshrl.u32 %v437, 7
    %v439 = vsub.s32 %v436, %v438
    %v440 = vrot.slane %v412, %v439
    %v441 = vcombine.low %v426, %v433
    %v443 = vunpack.c.l.s4 1966171168
    %v444 = vunpack.c.0.s8 %v443
    %v445 = vlaneseq
    %v446 = vshrl.u32 %v445, 7
    %v447 = vsub.s32 %v444, %v446
    %v448 = vrot.slane %v441, %v447
    %v450 = vunpack.c.l.s4 1966171168
    %v451 = vunpack.c.0.s8 %v450
    %v452 = vlaneseq
    %v453 = vshrl.u32 %v452, 7
    %v454 = vsub.s32 %v451, %v453
    %v455 = vrot.slane %v440, %v454
    %v456 = vcombine.low %v448, %v455
    %v458 = vsub.f32 %v346, %v456
    %v459 = vlaneseq
    %v460 = vshrl.u32 %v459, 7
    %v461 = vsub.s32 0, %v460
    %v462 = vrot.slane %v403, %v461
    %v463 = vlaneseq
    %v464 = vshrl.u32 %v463, 7
    %v465 = vsub.s32 0, %v464
    %v466 = vrot.slane %v404, %v465
    %v467 = vlaneseq
    %v468 = vshrl.u32 %v467, 7
    %v469 = vsub.s32 0, %v468
    %v470 = vrot.slane %v405, %v469
    %v471 = vlaneseq
    %v472 = vshrl.u32 %v471, 7
    %v473 = vsub.s32 0, %v472
    %v474 = vrot.slane %v406, %v473
    %v475 = vlaneseq
    %v476 = vshrl.u32 %v475, 7
    %v477 = vsub.s32 0, %v476
    %v478 = vrot.slane %v407, %v477
    %v479 = vmul.f32 %v123, %v462
    %v480 = vmul.f32 %v125, %v466
    %v481 = vmul.f32 %v194, %v470
    %v482 = vmul.f32 %v196, %v474
    %v483 = vmul.f32 %v265, %v478
    %v485 = vlaneseq
    %v486 = vshrl.u32 %v485, 7
    %v487 = vsub.s32 0, %v486
    %v488 = vrot.slane %v458, %v487
    %v489 = vlaneseq
    %v490 = vshrl.u32 %v489, 7
    %v491 = vsub.s32 1, %v490
    %v492 = vrot.slane %v458, %v491
    %v493 = vlaneseq
    %v494 = vshrl.u32 %v493, 7
    %v495 = vsub.s32 2, %v494
    %v496 = vrot.slane %v458, %v495
    %v497 = vlaneseq
    %v498 = vshrl.u32 %v497, 7
    %v499 = vsub.s32 3, %v498
    %v500 = vrot.slane %v458, %v499
    %v501 = vlaneseq
    %v502 = vshrl.u32 %v501, 7
    %v503 = vsub.s32 4, %v502
    %v504 = vrot.slane %v458, %v503
    %v510 = vadd.f32 %v479, %v488
    %v511 = vadd.f32 %v480, %v492
    %v512 = vadd.f32 %v481, %v496
    %v513 = vadd.f32 %v482, %v500
    %v514 = vadd.f32 %v483, %v504
    %v515 = vmax.f32 %v510, 0.0
    %v516 = vmax.f32 %v511, 0.0
    %v517 = vmax.f32 %v512, 0.0
    %v518 = vmax.f32 %v513, 0.0
    %v519 = vmax.f32 %v514, 0.0
    %v524 = vcombine.low %v515, %v516
    %v525 = vcombine.low %v517, %v518
    %528 = vst [vmem:[%s4] sm:$0xff] %v524
    %529 = vst [vmem:[%s4 + $0x8] sm:$0xff] %v525
    %530 = vst.msk [vmem:[%s4 + $0x10] sm:$0xf] %vm297, %v519
    // Predicated region
    $region22: #{_lambda_.7} parent=1 // pred_check
      _
    $region23: #{_lambda_.7} parent=1 // pred_check_branch
      %532 = sbr.rel (0) target = $region25
    $region24: #{_lambda_.7} parent=1 // pred_region
      _
    $region25: #{_lambda_.7} parent=1 // pred_fallthru
      _
    // Predicated region
    $region26: #{_lambda_.7} parent=1 // pred_check
      _
    $region27: #{_lambda_.7} parent=1 // pred_check_branch
      %534 = sbr.rel (0) target = $region29
    $region28: #{_lambda_.7} parent=1 // pred_region
      _
    $region29: #{_lambda_.7} parent=1 // pred_fallthru
      _
    %535 = vsyncpa [#allocation3], 1

// kernel: _lambda_.6
$region0: #{_lambda_.6}
  #allocation0 [shape = 'u32[]', space=smem, size = 0x4, offset = 0x4, fixed_abs, tag = 'smem constant byte address 0x4 - core index']
  #allocation1 [shape = 'u32[144,128]{1,0:T(1,128)}', space=vmem, size = 0x12000, scoped, tag = 'internal scratch']
  %s0 = inlined_call_operand.hbm [shape: f32[4,32], index: 0, kind: input, shape index: {}]
  %s1 = inlined_call_operand.hbm [shape: f32[32,32], index: 1, kind: input, shape index: {}]
  %s2 = inlined_call_operand.vmem [shape: f32[1,32], index: 2, kind: input, shape index: {}]
  %s3 = inlined_call_operand.vmem [shape: f32[1,32], index: 3, kind: input, shape index: {}]
  %s4 = inlined_call_operand.vmem [shape: f32[4,32], index: 4, kind: output, shape index: {}]
  %s5 = sld [smem:[#allocation0]]
  $region34: #{_lambda_.6} parent=0
    _
  %s7 = ssub.s32 1, %s5
  %s8 = scalar_select 0, %s7, %s5
  $region1: #{_lambda_.6} parent=0
    #allocation2 [shape = 'u8[2048]{0}', space=vmem, size = 0x800, scoped, tag = 'input window, operand 0, single buffered']
    #allocation3 [shape = 's32[1]{0}', space=sflag, size = 0x4, scoped, tag = 'scoped memory for _lambda_.6']
    #allocation4 [shape = 'u8[16384]{0}', space=vmem, size = 0x4000, scoped, tag = 'input window, operand 1, single buffered']
    #allocation5 [shape = 's32[1]{0}', space=sflag, size = 0x4, scoped, tag = 'scoped memory for _lambda_.6']
    %9 = vsyncpa [#allocation3], 0
    %10 = vsyncpa [#allocation5], 0
    // Predicated region
    $region2: #{_lambda_.6} parent=1 // pred_check
      _
    $region3: #{_lambda_.6} parent=1 // pred_check_branch
      %12 = sbr.rel (0) target = $region5
    $region4: #{_lambda_.6} parent=1 // pred_region
      %s14 = ssub.s32 64, 64
      %15 = vsyncadd [#allocation3], %s14
      %s17 = sshll.u32 [#allocation2], 4
      %s18 = int_to_ptr.vmem [resolvable:$true] %s17
      %20 = dma.hbm_to_vmem [thread:$0]  %s0, 64, %s18, [#allocation3]
    $region5: #{_lambda_.6} parent=1 // pred_fallthru
      _
    // Predicated region
    $region6: #{_lambda_.6} parent=1 // pred_check
      _
    $region7: #{_lambda_.6} parent=1 // pred_check_branch
      %22 = sbr.rel (0) target = $region9
    $region8: #{_lambda_.6} parent=1 // pred_region
      %s24 = ssub.s32 512, 512
      %25 = vsyncadd [#allocation5], %s24
      %s26 = sshll.u32 [#allocation4], 4
      %s27 = int_to_ptr.vmem [resolvable:$true] %s26
      %32 = dma.hbm_to_vmem [thread:$0]  %s1, 512, %s27, [#allocation5], 128, 128, 8
    $region9: #{_lambda_.6} parent=1 // pred_fallthru
      _
    // Predicated region
    $region10: #{_lambda_.6} parent=1 // pred_check
      _
    $region11: #{_lambda_.6} parent=1 // pred_check_branch
      %34 = sbr.rel (0) target = $region13
    $region12: #{_lambda_.6} parent=1 // pred_region
      _
    $region13: #{_lambda_.6} parent=1 // pred_fallthru
      _
    // Predicated region
    $region14: #{_lambda_.6} parent=1 // pred_check
      _
    $region15: #{_lambda_.6} parent=1 // pred_check_branch
      %36 = sbr.rel (0) target = $region17
    $region16: #{_lambda_.6} parent=1 // pred_region
      _
    $region17: #{_lambda_.6} parent=1 // pred_fallthru
      _
    // Predicated region
    $region18: #{_lambda_.6} parent=1 // pred_check
      _
    $region19: #{_lambda_.6} parent=1 // pred_check_branch
      %38 = sbr.rel (0) target = $region21
    $region20: #{_lambda_.6} parent=1 // pred_region
      %39 = dma.done [#allocation3], 64
    $region21: #{_lambda_.6} parent=1 // pred_fallthru
      _
    // Predicated region
    $region22: #{_lambda_.6} parent=1 // pred_check
      _
    $region23: #{_lambda_.6} parent=1 // pred_check_branch
      %41 = sbr.rel (0) target = $region25
    $region24: #{_lambda_.6} parent=1 // pred_region
      %42 = dma.done [#allocation5], 512
    $region25: #{_lambda_.6} parent=1 // pred_fallthru
      _
    %v43 = vld [vmem:[#allocation2] sm:$0xf]
    %v44 = vld [vmem:[#allocation4] sm:$0xff]
    %v45 = vld [vmem:[#allocation4 + $0x8] sm:$0xff]
    %v46 = vld [vmem:[#allocation4 + $0x10] sm:$0xff]
    %v47 = vld [vmem:[#allocation4 + $0x18] sm:$0xff]
    %vm48 = vcmask 261120
    %v50 = vsel %vm48, %v43, 0
    %52 = vmatprep.subr.mxu0 0.0
    %53 = vmatpush1.msra.mxu0 %v44
    %54 = vmatprep.subr.mxu0 0.0
    %55 = vmatpush1.msra.mxu0 %v45
    %56 = vmatprep.subr.mxu0 0.0
    %57 = vmatpush1.msra.mxu0 %v46
    %58 = vmatprep.subr.mxu0 0.0
    %59 = vmatpush1.msra.mxu0 %v47
    %60 = vmatprep.subr.mxu0 0.0
    %61 = vmatpush1.msra.mxu0 0.0
    %62 = vmatprep.subr.mxu0 0.0
    %63 = vmatpush1.msra.mxu0 0.0
    %64 = vmatprep.subr.mxu0 0.0
    %65 = vmatpush1.msra.mxu0 0.0
    %66 = vmatprep.subr.mxu0 0.0
    %67 = vmatpush1.msra.mxu0 0.0
    %68 = vmatprep.subr.mxu0 0.0
    %69 = vmatpush1.msra.mxu0 0.0
    %70 = vmatprep.subr.mxu0 0.0
    %71 = vmatpush1.msra.mxu0 0.0
    %72 = vmatprep.subr.mxu0 0.0
    %73 = vmatpush1.msra.mxu0 0.0
    %74 = vmatprep.subr.mxu0 0.0
    %75 = vmatpush1.msra.mxu0 0.0
    %76 = vmatprep.subr.mxu0 0.0
    %77 = vmatpush1.msra.mxu0 0.0
    %78 = vmatprep.subr.mxu0 0.0
    %79 = vmatpush1.msra.mxu0 0.0
    %80 = vmatprep.subr.mxu0 0.0
    %81 = vmatpush1.msra.mxu0 0.0
    %82 = vmatprep.subr.mxu0 0.0
    %83 = vmatpush1.msra.mxu0 0.0
    %84 = vmatprep.subr.mxu0 0.0
    %85 = vmatpush1.msra.mxu0 0.0
    %86 = vmatprep.subr.mxu0 0.0
    %87 = vmatpush1.msra.mxu0 0.0
    %88 = vmatprep.subr.mxu0 0.0
    %89 = vmatpush1.msra.mxu0 0.0
    %90 = vmatprep.subr.mxu0 0.0
    %91 = vmatpush1.msra.mxu0 0.0
    %92 = vmatprep.subr.mxu0 0.0
    %93 = vmatpush1.msra.mxu0 0.0
    %94 = vmatprep.subr.mxu0 0.0
    %95 = vmatpush1.msra.mxu0 0.0
    %96 = vmatprep.subr.mxu0 0.0
    %97 = vmatpush1.msra.mxu0 0.0
    %98 = vmatprep.subr.mxu0 0.0
    %99 = vmatpush1.msra.mxu0 0.0
    %100 = vmatprep.subr.mxu0 0.0
    %101 = vmatpush1.msra.mxu0 0.0
    %102 = vmatprep.subr.mxu0 0.0
    %103 = vmatpush1.msra.mxu0 0.0
    %104 = vmatprep.subr.mxu0 0.0
    %105 = vmatpush1.msra.mxu0 0.0
    %106 = vmatprep.subr.mxu0 0.0
    %107 = vmatpush1.msra.mxu0 0.0
    %108 = vmatprep.subr.mxu0 0.0
    %109 = vmatpush1.msra.mxu0 0.0
    %110 = vmatprep.subr.mxu0 0.0
    %111 = vmatpush1.msra.mxu0 0.0
    %112 = vmatprep.subr.mxu0 0.0
    %113 = vmatpush1.msra.mxu0 0.0
    %114 = vmatprep.subr.mxu0 0.0
    %115 = vmatpush1.msra.mxu0 0.0
    %116 = vmatprep.mubr.f32.mxu0 0.0
    %117 = vmatmul.mubr.f32.gmra.mrb[0].mxu0 %v50
    %v118 = vpop.f32.mrb[0].mxu0
    %v119 = vadd.f32 0.0, %v118
    %v120 = vpop.f32.mrb[0].mxu0
    %121 = vdwg.mxu0
    %vm122 = vcmask 257024
    %v123 = vsel %vm122, %v119, 0.0
    %v124 = vrot.slane %v123, 4
    %v125 = vadd.f32 %v123, %v124
    %v126 = vrot.slane %v125, 2
    %v127 = vadd.f32 %v125, %v126
    %v128 = vrot.slane %v127, 1
    %v129 = vadd.f32 %v127, %v128
    %v130 = vmul.f32 %v119, %v119
    %v131 = vsel %vm122, %v130, 0.0
    %v132 = vrot.slane %v131, 4
    %v133 = vadd.f32 %v131, %v132
    %v134 = vrot.slane %v133, 2
    %v135 = vadd.f32 %v133, %v134
    %v136 = vrot.slane %v135, 1
    %v137 = vadd.f32 %v135, %v136
    %v138 = vld [vmem:[%s2] sm:$0x1]
    %v139 = vld [vmem:[%s3] sm:$0x1]
    %v140 = vmul.f32 %v129, 0.25
    %v141 = vmul.f32 %v137, 0.25
    %v142 = vmul.f32 %v140, %v140
    %v143 = vsub.f32 %v141, %v142
    %v144 = vadd.f32 %v143, 1e-05
    %v145 = vrsqrt.pop %v144
    %v146 = vmul.f32 %v145, %v138
    %v147 = vmul.f32 %v140, %v146
    %v148 = vsub.f32 %v139, %v147
    %v149 = vlaneseq
    %v150 = vshrl.u32 %v149, 7
    %v151 = vsub.s32 0, %v150
    %v152 = vrot.slane %v146, %v151
    %v153 = vmul.f32 %v119, %v152
    %v155 = vlaneseq
    %v156 = vshrl.u32 %v155, 7
    %v157 = vsub.s32 0, %v156
    %v158 = vrot.slane %v148, %v157
    %v160 = vadd.f32 %v153, %v158
    %v161 = vmax.f32 %v160, 0.0
    %162 = vst.msk [vmem:[%s4] sm:$0xf] %vm122, %v161
    // Predicated region
    $region26: #{_lambda_.6} parent=1 // pred_check
      _
    $region27: #{_lambda_.6} parent=1 // pred_check_branch
      %164 = sbr.rel (0) target = $region29
    $region28: #{_lambda_.6} parent=1 // pred_region
      _
    $region29: #{_lambda_.6} parent=1 // pred_fallthru
      _
    // Predicated region
    $region30: #{_lambda_.6} parent=1 // pred_check
      _
    $region31: #{_lambda_.6} parent=1 // pred_check_branch
      %166 = sbr.rel (0) target = $region33
    $region32: #{_lambda_.6} parent=1 // pred_region
      _
    $region33: #{_lambda_.6} parent=1 // pred_fallthru
      _
    %167 = vsyncpa [#allocation3], 1
    %168 = vsyncpa [#allocation5], 1

// kernel: _lambda_.8
$region0: #{_lambda_.8}
  #allocation0 [shape = 'u32[]', space=smem, size = 0x4, offset = 0x4, fixed_abs, tag = 'smem constant byte address 0x4 - core index']
  #allocation1 [shape = 'u32[144,128]{1,0:T(1,128)}', space=vmem, size = 0x12000, scoped, tag = 'internal scratch']
  %s0 = inlined_call_operand.vmem [shape: f32[64,315], index: 0, kind: input, shape index: {}]
  %s1 = inlined_call_operand.vmem [shape: f32[315,84], index: 1, kind: input, shape index: {}]
  %s2 = inlined_call_operand.vmem [shape: f32[1,84], index: 2, kind: input, shape index: {}]
  %s3 = inlined_call_operand.vmem [shape: f32[1,84], index: 3, kind: input, shape index: {}]
  %s4 = inlined_call_operand.vmem [shape: f32[64,84], index: 4, kind: output, shape index: {}]
  %s5 = sld [smem:[#allocation0]]
  $region26: #{_lambda_.8} parent=0
    _
  %s7 = ssub.s32 1, %s5
  %s8 = scalar_select 0, %s7, %s5
  // Predicated region
  $region2: #{_lambda_.8} parent=0 // pred_check
    _
  $region3: #{_lambda_.8} parent=0 // pred_check_branch
    %10 = sbr.rel (0) target = $region5
  $region4: #{_lambda_.8} parent=0 // pred_region
    _
  $region5: #{_lambda_.8} parent=0 // pred_fallthru
    _
  // Predicated region
  $region6: #{_lambda_.8} parent=0 // pred_check
    _
  $region7: #{_lambda_.8} parent=0 // pred_check_branch
    %12 = sbr.rel (0) target = $region9
  $region8: #{_lambda_.8} parent=0 // pred_region
    _
  $region9: #{_lambda_.8} parent=0 // pred_fallthru
    _
  // Predicated region
  $region10: #{_lambda_.8} parent=0 // pred_check
    _
  $region11: #{_lambda_.8} parent=0 // pred_check_branch
    %14 = sbr.rel (0) target = $region13
  $region12: #{_lambda_.8} parent=0 // pred_region
    _
  $region13: #{_lambda_.8} parent=0 // pred_fallthru
    _
  // Predicated region
  $region14: #{_lambda_.8} parent=0 // pred_check
    _
  $region15: #{_lambda_.8} parent=0 // pred_check_branch
    %16 = sbr.rel (0) target = $region17
  $region16: #{_lambda_.8} parent=0 // pred_region
    _
  $region17: #{_lambda_.8} parent=0 // pred_fallthru
    _
  %v17 = vld [vmem:[%s0] sm:$0xff]
  %v18 = vld [vmem:[%s0 + $0x8] sm:$0xff]
  %v19 = vld [vmem:[%s0 + $0x10] sm:$0xff]
  %v20 = vld [vmem:[%s0 + $0x18] sm:$0xff]
  %v21 = vld [vmem:[%s0 + $0x20] sm:$0xff]
  %v22 = vld [vmem:[%s0 + $0x28] sm:$0xff]
  %v23 = vld [vmem:[%s0 + $0x30] sm:$0xff]
  %v24 = vld [vmem:[%s0 + $0x38] sm:$0xff]
  %v25 = vld [vmem:[%s0 + $0x40] sm:$0xff]
  %v26 = vld [vmem:[%s0 + $0x48] sm:$0xff]
  %v27 = vld [vmem:[%s0 + $0x50] sm:$0xff]
  %v28 = vld [vmem:[%s0 + $0x58] sm:$0xff]
  %v29 = vld [vmem:[%s0 + $0x60] sm:$0xff]
  %v30 = vld [vmem:[%s0 + $0x68] sm:$0xff]
  %v31 = vld [vmem:[%s0 + $0x70] sm:$0xff]
  %v32 = vld [vmem:[%s0 + $0x78] sm:$0xff]
  %v33 = vld [vmem:[%s0 + $0x80] sm:$0xff]
  %v34 = vld [vmem:[%s0 + $0x88] sm:$0xff]
  %v35 = vld [vmem:[%s0 + $0x90] sm:$0xff]
  %v36 = vld [vmem:[%s0 + $0x98] sm:$0xff]
  %v37 = vld [vmem:[%s0 + $0xa0] sm:$0xff]
  %v38 = vld [vmem:[%s0 + $0xa8] sm:$0xff]
  %v39 = vld [vmem:[%s0 + $0xb0] sm:$0xff]
  %v40 = vld [vmem:[%s0 + $0xb8] sm:$0xff]
  %v41 = vld [vmem:[%s1] sm:$0xff]
  %v42 = vld [vmem:[%s1 + $0x8] sm:$0xff]
  %v43 = vld [vmem:[%s1 + $0x10] sm:$0xff]
  %v44 = vld [vmem:[%s1 + $0x18] sm:$0xff]
  %v45 = vld [vmem:[%s1 + $0x20] sm:$0xff]
  %v46 = vld [vmem:[%s1 + $0x28] sm:$0xff]
  %v47 = vld [vmem:[%s1 + $0x30] sm:$0xff]
  %v48 = vld [vmem:[%s1 + $0x38] sm:$0xff]
  %v49 = vld [vmem:[%s1 + $0x40] sm:$0xff]
  %v50 = vld [vmem:[%s1 + $0x48] sm:$0xff]
  %v51 = vld [vmem:[%s1 + $0x50] sm:$0xff]
  %v52 = vld [vmem:[%s1 + $0x58] sm:$0xff]
  %v53 = vld [vmem:[%s1 + $0x60] sm:$0xff]
  %v54 = vld [vmem:[%s1 + $0x68] sm:$0xff]
  %v55 = vld [vmem:[%s1 + $0x70] sm:$0xff]
  %v56 = vld [vmem:[%s1 + $0x78] sm:$0xff]
  %v57 = vld [vmem:[%s1 + $0x80] sm:$0xff]
  %v58 = vld [vmem:[%s1 + $0x88] sm:$0xff]
  %v59 = vld [vmem:[%s1 + $0x90] sm:$0xff]
  %v60 = vld [vmem:[%s1 + $0x98] sm:$0xff]
  %v61 = vld [vmem:[%s1 + $0xa0] sm:$0xff]
  %v62 = vld [vmem:[%s1 + $0xa8] sm:$0xff]
  %v63 = vld [vmem:[%s1 + $0xb0] sm:$0xff]
  %v64 = vld [vmem:[%s1 + $0xb8] sm:$0xff]
  %v65 = vld [vmem:[%s1 + $0xc0] sm:$0xff]
  %v66 = vld [vmem:[%s1 + $0xc8] sm:$0xff]
  %v67 = vld [vmem:[%s1 + $0xd0] sm:$0xff]
  %v68 = vld [vmem:[%s1 + $0xd8] sm:$0xff]
  %v69 = vld [vmem:[%s1 + $0xe0] sm:$0xff]
  %v70 = vld [vmem:[%s1 + $0xe8] sm:$0xff]
  %v71 = vld [vmem:[%s1 + $0xf0] sm:$0xff]
  %v72 = vld [vmem:[%s1 + $0xf8] sm:$0xff]
  %v73 = vld [vmem:[%s1 + $0x100] sm:$0xff]
  %v74 = vld [vmem:[%s1 + $0x108] sm:$0xff]
  %v75 = vld [vmem:[%s1 + $0x110] sm:$0xff]
  %v76 = vld [vmem:[%s1 + $0x118] sm:$0xff]
  %v77 = vld [vmem:[%s1 + $0x120] sm:$0xff]
  %v78 = vld [vmem:[%s1 + $0x128] sm:$0xff]
  %v79 = vld [vmem:[%s1 + $0x130] sm:$0xff]
  %v80 = vld [vmem:[%s1 + $0x138] sm:$0x7]
  %vm81 = vcmask 482304
  %v83 = vsel %vm81, %v19, 0
  %v86 = vsel %vm81, %v22, 0
  %v89 = vsel %vm81, %v25, 0
  %v92 = vsel %vm81, %v28, 0
  %v95 = vsel %vm81, %v31, 0
  %v98 = vsel %vm81, %v34, 0
  %v101 = vsel %vm81, %v37, 0
  %v104 = vsel %vm81, %v40, 0
  %vm106 = vcmask 1042432
  %v108 = vsel %vm106, %v80, 0
  %110 = vmatprep.subr.mxu0 0.0
  %111 = vmatpush1.msra.mxu0 %v41
  %112 = vmatprep.subr.mxu0 0.0
  %113 = vmatpush1.msra.mxu0 %v42
  %114 = vmatprep.subr.mxu0 0.0
  %115 = vmatpush1.msra.mxu0 %v43
  %116 = vmatprep.subr.mxu0 0.0
  %117 = vmatpush1.msra.mxu0 %v44
  %118 = vmatprep.subr.mxu0 0.0
  %119 = vmatpush1.msra.mxu0 %v45
  %120 = vmatprep.subr.mxu0 0.0
  %121 = vmatpush1.msra.mxu0 %v46
  %122 = vmatprep.subr.mxu0 0.0
  %123 = vmatpush1.msra.mxu0 %v47
  %124 = vmatprep.subr.mxu0 0.0
  %125 = vmatpush1.msra.mxu0 %v48
  %126 = vmatprep.subr.mxu0 0.0
  %127 = vmatpush1.msra.mxu0 %v49
  %128 = vmatprep.subr.mxu0 0.0
  %129 = vmatpush1.msra.mxu0 %v50
  %130 = vmatprep.subr.mxu0 0.0
  %131 = vmatpush1.msra.mxu0 %v51
  %132 = vmatprep.subr.mxu0 0.0
  %133 = vmatpush1.msra.mxu0 %v52
  %134 = vmatprep.subr.mxu0 0.0
  %135 = vmatpush1.msra.mxu0 %v53
  %136 = vmatprep.subr.mxu0 0.0
  %137 = vmatpush1.msra.mxu0 %v54
  %138 = vmatprep.subr.mxu0 0.0
  %139 = vmatpush1.msra.mxu0 %v55
  %140 = vmatprep.subr.mxu0 0.0
  %141 = vmatpush1.msra.mxu0 %v56
  %142 = vmatprep.subr.mxu0 0.0
  %143 = vmatpush1.msra.mxu0 %v57
  %144 = vmatprep.subr.mxu0 0.0
  %145 = vmatpush1.msra.mxu0 %v58
  %146 = vmatprep.subr.mxu0 0.0
  %147 = vmatpush1.msra.mxu0 %v59
  %148 = vmatprep.subr.mxu0 0.0
  %149 = vmatpush1.msra.mxu0 %v60
  %150 = vmatprep.subr.mxu0 0.0
  %151 = vmatpush1.msra.mxu0 %v61
  %152 = vmatprep.subr.mxu0 0.0
  %153 = vmatpush1.msra.mxu0 %v62
  %154 = vmatprep.subr.mxu0 0.0
  %155 = vmatpush1.msra.mxu0 %v63
  %156 = vmatprep.subr.mxu0 0.0
  %157 = vmatpush1.msra.mxu0 %v64
  %158 = vmatprep.subr.mxu0 0.0
  %159 = vmatpush1.msra.mxu0 %v65
  %160 = vmatprep.subr.mxu0 0.0
  %161 = vmatpush1.msra.mxu0 %v66
  %162 = vmatprep.subr.mxu0 0.0
  %163 = vmatpush1.msra.mxu0 %v67
  %164 = vmatprep.subr.mxu0 0.0
  %165 = vmatpush1.msra.mxu0 %v68
  %166 = vmatprep.subr.mxu0 0.0
  %167 = vmatpush1.msra.mxu0 %v69
  %168 = vmatprep.subr.mxu0 0.0
  %169 = vmatpush1.msra.mxu0 %v70
  %170 = vmatprep.subr.mxu0 0.0
  %171 = vmatpush1.msra.mxu0 %v71
  %172 = vmatprep.subr.mxu0 0.0
  %173 = vmatpush1.msra.mxu0 %v72
  %174 = vmatprep.mubr.f32.mxu0 %v18
  %175 = vmatmul.mubr.f32.gmra.mrb[0].mxu0 %v17
  %v176 = vpop.f32.mrb[0].mxu0
  %v177 = vadd.f32 0.0, %v176
  %v178 = vpop.f32.mrb[0].mxu0
  %179 = vmatprep.mubr.f32.mxu0 %v21
  %180 = vmatmul.mubr.f32.gmra.mrb[0].mxu0 %v20
  %v181 = vpop.f32.mrb[0].mxu0
  %v182 = vadd.f32 0.0, %v181
  %v183 = vpop.f32.mrb[0].mxu0
  %184 = vmatprep.mubr.f32.mxu0 %v24
  %185 = vmatmul.mubr.f32.gmra.mrb[0].mxu0 %v23
  %v186 = vpop.f32.mrb[0].mxu0
  %v187 = vadd.f32 0.0, %v186
  %v188 = vpop.f32.mrb[0].mxu0
  %189 = vmatprep.mubr.f32.mxu0 %v27
  %190 = vmatmul.mubr.f32.gmra.mrb[0].mxu0 %v26
  %v191 = vpop.f32.mrb[0].mxu0
  %v192 = vadd.f32 0.0, %v191
  %v193 = vpop.f32.mrb[0].mxu0
  %194 = vmatprep.mubr.f32.mxu0 %v30
  %195 = vmatmul.mubr.f32.gmra.mrb[0].mxu0 %v29
  %v196 = vpop.f32.mrb[0].mxu0
  %v197 = vadd.f32 0.0, %v196
  %v198 = vpop.f32.mrb[0].mxu0
  %199 = vmatprep.mubr.f32.mxu0 %v33
  %200 = vmatmul.mubr.f32.gmra.mrb[0].mxu0 %v32
  %v201 = vpop.f32.mrb[0].mxu0
  %v202 = vadd.f32 0.0, %v201
  %v203 = vpop.f32.mrb[0].mxu0
  %204 = vmatprep.mubr.f32.mxu0 %v36
  %205 = vmatmul.mubr.f32.gmra.mrb[0].mxu0 %v35
  %v206 = vpop.f32.mrb[0].mxu0
  %v207 = vadd.f32 0.0, %v206
  %v208 = vpop.f32.mrb[0].mxu0
  %209 = vmatprep.mubr.f32.mxu0 %v39
  %210 = vmatmul.mubr.f32.gmra.mrb[0].mxu0 %v38
  %v211 = vpop.f32.mrb[0].mxu0
  %v212 = vadd.f32 0.0, %v211
  %v213 = vpop.f32.mrb[0].mxu0
  %214 = vdwg.mxu0
  %215 = vmatprep.subr.mxu0 0.0
  %216 = vmatpush1.msra.mxu0 %v73
  %217 = vmatprep.subr.mxu0 0.0
  %218 = vmatpush1.msra.mxu0 %v74
  %219 = vmatprep.subr.mxu0 0.0
  %220 = vmatpush1.msra.mxu0 %v75
  %221 = vmatprep.subr.mxu0 0.0
  %222 = vmatpush1.msra.mxu0 %v76
  %223 = vmatprep.subr.mxu0 0.0
  %224 = vmatpush1.msra.mxu0 %v77
  %225 = vmatprep.subr.mxu0 0.0
  %226 = vmatpush1.msra.mxu0 %v78
  %227 = vmatprep.subr.mxu0 0.0
  %228 = vmatpush1.msra.mxu0 %v79
  %229 = vmatprep.subr.mxu0 0.0
  %230 = vmatpush1.msra.mxu0 %v108
  %231 = vmatprep.subr.mxu0 0.0
  %232 = vmatpush1.msra.mxu0 0.0
  %233 = vmatprep.subr.mxu0 0.0
  %234 = vmatpush1.msra.mxu0 0.0
  %235 = vmatprep.subr.mxu0 0.0
  %236 = vmatpush1.msra.mxu0 0.0
  %237 = vmatprep.subr.mxu0 0.0
  %238 = vmatpush1.msra.mxu0 0.0
  %239 = vmatprep.subr.mxu0 0.0
  %240 = vmatpush1.msra.mxu0 0.0
  %241 = vmatprep.subr.mxu0 0.0
  %242 = vmatpush1.msra.mxu0 0.0
  %243 = vmatprep.subr.mxu0 0.0
  %244 = vmatpush1.msra.mxu0 0.0
  %245 = vmatprep.subr.mxu0 0.0
  %246 = vmatpush1.msra.mxu0 0.0
  %247 = vmatprep.subr.mxu0 0.0
  %248 = vmatpush1.msra.mxu0 0.0
  %249 = vmatprep.subr.mxu0 0.0
  %250 = vmatpush1.msra.mxu0 0.0
  %251 = vmatprep.subr.mxu0 0.0
  %252 = vmatpush1.msra.mxu0 0.0
  %253 = vmatprep.subr.mxu0 0.0
  %254 = vmatpush1.msra.mxu0 0.0
  %255 = vmatprep.subr.mxu0 0.0
  %256 = vmatpush1.msra.mxu0 0.0
  %257 = vmatprep.subr.mxu0 0.0
  %258 = vmatpush1.msra.mxu0 0.0
  %259 = vmatprep.subr.mxu0 0.0
  %260 = vmatpush1.msra.mxu0 0.0
  %261 = vmatprep.subr.mxu0 0.0
  %262 = vmatpush1.msra.mxu0 0.0
  %263 = vmatprep.subr.mxu0 0.0
  %264 = vmatpush1.msra.mxu0 0.0
  %265 = vmatprep.subr.mxu0 0.0
  %266 = vmatpush1.msra.mxu0 0.0
  %267 = vmatprep.subr.mxu0 0.0
  %268 = vmatpush1.msra.mxu0 0.0
  %269 = vmatprep.subr.mxu0 0.0
  %270 = vmatpush1.msra.mxu0 0.0
  %271 = vmatprep.subr.mxu0 0.0
  %272 = vmatpush1.msra.mxu0 0.0
  %273 = vmatprep.subr.mxu0 0.0
  %274 = vmatpush1.msra.mxu0 0.0
  %275 = vmatprep.subr.mxu0 0.0
  %276 = vmatpush1.msra.mxu0 0.0
  %277 = vmatprep.subr.mxu0 0.0
  %278 = vmatpush1.msra.mxu0 0.0
  %279 = vmatprep.mubr.f32.mxu0 0.0
  %280 = vmatmul.mubr.f32.gmra.mrb[0].mxu0 %v83
  %v281 = vpop.f32.mrb[0].mxu0
  %v282 = vadd.f32 %v177, %v281
  %v283 = vpop.f32.mrb[0].mxu0
  %284 = vmatprep.mubr.f32.mxu0 0.0
  %285 = vmatmul.mubr.f32.gmra.mrb[0].mxu0 %v86
  %v286 = vpop.f32.mrb[0].mxu0
  %v287 = vadd.f32 %v182, %v286
  %v288 = vpop.f32.mrb[0].mxu0
  %289 = vmatprep.mubr.f32.mxu0 0.0
  %290 = vmatmul.mubr.f32.gmra.mrb[0].mxu0 %v89
  %v291 = vpop.f32.mrb[0].mxu0
  %v292 = vadd.f32 %v187, %v291
  %v293 = vpop.f32.mrb[0].mxu0
  %294 = vmatprep.mubr.f32.mxu0 0.0
  %295 = vmatmul.mubr.f32.gmra.mrb[0].mxu0 %v92
  %v296 = vpop.f32.mrb[0].mxu0
  %v297 = vadd.f32 %v192, %v296
  %v298 = vpop.f32.mrb[0].mxu0
  %299 = vmatprep.mubr.f32.mxu0 0.0
  %300 = vmatmul.mubr.f32.gmra.mrb[0].mxu0 %v95
  %v301 = vpop.f32.mrb[0].mxu0
  %v302 = vadd.f32 %v197, %v301
  %v303 = vpop.f32.mrb[0].mxu0
  %304 = vmatprep.mubr.f32.mxu0 0.0
  %305 = vmatmul.mubr.f32.gmra.mrb[0].mxu0 %v98
  %v306 = vpop.f32.mrb[0].mxu0
  %v307 = vadd.f32 %v202, %v306
  %v308 = vpop.f32.mrb[0].mxu0
  %309 = vmatprep.mubr.f32.mxu0 0.0
  %310 = vmatmul.mubr.f32.gmra.mrb[0].mxu0 %v101
  %v311 = vpop.f32.mrb[0].mxu0
  %v312 = vadd.f32 %v207, %v311
  %v313 = vpop.f32.mrb[0].mxu0
  %314 = vmatprep.mubr.f32.mxu0 0.0
  %315 = vmatmul.mubr.f32.gmra.mrb[0].mxu0 %v104
  %v316 = vpop.f32.mrb[0].mxu0
  %v317 = vadd.f32 %v212, %v316
  %v318 = vpop.f32.mrb[0].mxu0
  %319 = vdwg.mxu0
  %vm320 = vcmask 687104
  %v321 = vsel %vm320, %v282, 0.0
  %v322 = vsel %vm320, %v287, 0.0
  %v323 = vadd.f32 %v321, %v322
  %v324 = vsel %vm320, %v292, 0.0
  %v325 = vadd.f32 %v323, %v324
  %v326 = vsel %vm320, %v297, 0.0
  %v327 = vadd.f32 %v325, %v326
  %v328 = vsel %vm320, %v302, 0.0
  %v329 = vadd.f32 %v327, %v328
  %v330 = vsel %vm320, %v307, 0.0
  %v331 = vadd.f32 %v329, %v330
  %v332 = vsel %vm320, %v312, 0.0
  %v333 = vadd.f32 %v331, %v332
  %v334 = vsel %vm320, %v317, 0.0
  %v335 = vadd.f32 %v333, %v334
  %v336 = vrot.slane %v335, 4
  %v337 = vadd.f32 %v335, %v336
  %v338 = vrot.slane %v337, 2
  %v339 = vadd.f32 %v337, %v338
  %v340 = vrot.slane %v339, 1
  %v341 = vadd.f32 %v339, %v340
  %v342 = vmul.f32 %v282, %v282
  %v343 = vmul.f32 %v287, %v287
  %v344 = vmul.f32 %v292, %v292
  %v345 = vmul.f32 %v297, %v297
  %v346 = vmul.f32 %v302, %v302
  %v347 = vmul.f32 %v307, %v307
  %v348 = vmul.f32 %v312, %v312
  %v349 = vmul.f32 %v317, %v317
  %v350 = vsel %vm320, %v342, 0.0
  %v351 = vsel %vm320, %v343, 0.0
  %v352 = vadd.f32 %v350, %v351
  %v353 = vsel %vm320, %v344, 0.0
  %v354 = vadd.f32 %v352, %v353
  %v355 = vsel %vm320, %v345, 0.0
  %v356 = vadd.f32 %v354, %v355
  %v357 = vsel %vm320, %v346, 0.0
  %v358 = vadd.f32 %v356, %v357
  %v359 = vsel %vm320, %v347, 0.0
  %v360 = vadd.f32 %v358, %v359
  %v361 = vsel %vm320, %v348, 0.0
  %v362 = vadd.f32 %v360, %v361
  %v363 = vsel %vm320, %v349, 0.0
  %v364 = vadd.f32 %v362, %v363
  %v365 = vrot.slane %v364, 4
  %v366 = vadd.f32 %v364, %v365
  %v367 = vrot.slane %v366, 2
  %v368 = vadd.f32 %v366, %v367
  %v369 = vrot.slane %v368, 1
  %v370 = vadd.f32 %v368, %v369
  %v371 = vld [vmem:[%s2] sm:$0x1]
  %v372 = vld [vmem:[%s3] sm:$0x1]
  %374 = vrot.lane.b32.xlu0 %v341, 107
  %v375 = vpop.permute.xlu0 %374
  %v377 = vadd.f32 %v341, %v375
  %379 = vrot.lane.b32.xlu0 %v370, 107
  %v380 = vpop.permute.xlu0 %379
  %v382 = vadd.f32 %v370, %v380
  %383 = vrot.lane.b32.xlu0 %v341, 86
  %v384 = vpop.permute.xlu0 %383
  %v386 = vadd.f32 %v377, %v384
  %387 = vrot.lane.b32.xlu0 %v370, 86
  %v388 = vpop.permute.xlu0 %387
  %v390 = vadd.f32 %v382, %v388
  %391 = vrot.lane.b32.xlu0 %v341, 65
  %v392 = vpop.permute.xlu0 %391
  %v394 = vadd.f32 %v386, %v392
  %395 = vrot.lane.b32.xlu0 %v370, 65
  %v396 = vpop.permute.xlu0 %395
  %v398 = vadd.f32 %v390, %v396
  %v399 = vmul.f32 %v394, 0.00390625
  %v400 = vmul.f32 %v398, 0.00390625
  %v401 = vmul.f32 %v399, %v399
  %v402 = vsub.f32 %v400, %v401
  %v403 = vadd.f32 %v402, 1e-05
  %v404 = vrsqrt.pop %v403
  %406 = vrot.lane.b32.xlu0 %v399, 21
  %v407 = vpop.permute.xlu0 %406
  %409 = vrot.lane.b32.xlu0 %v399, 42
  %v410 = vpop.permute.xlu0 %409
  %412 = vrot.lane.b32.xlu0 %v399, 63
  %v413 = vpop.permute.xlu0 %412
  %vm415 = vcmask 171008
  %v416 = vsel %vm415, %v399, %v407
  %vm417 = vcmask 343040
  %v418 = vsel %vm417, %v416, %v410
  %vm419 = vcmask 515072
  %v420 = vsel %vm419, %v418, %v413
  %422 = vrot.lane.b32.xlu0 %v404, 21
  %v423 = vpop.permute.xlu0 %422
  %425 = vrot.lane.b32.xlu0 %v404, 42
  %v426 = vpop.permute.xlu0 %425
  %428 = vrot.lane.b32.xlu0 %v404, 63
  %v429 = vpop.permute.xlu0 %428
  %v431 = vsel %vm415, %v404, %v423
  %v432 = vsel %vm417, %v431, %v426
  %v433 = vsel %vm419, %v432, %v429
  %v434 = vmul.f32 %v433, %v371
  %v435 = vmul.f32 %v420, %v434
  %v436 = vsub.f32 %v372, %v435
  %v437 = vlaneseq
  %v438 = vshrl.u32 %v437, 7
  %v439 = vsub.s32 0, %v438
  %v440 = vrot.slane %v434, %v439
  %v441 = vmul.f32 %v282, %v440
  %v442 = vmul.f32 %v287, %v440
  %v443 = vmul.f32 %v292, %v440
  %v444 = vmul.f32 %v297, %v440
  %v445 = vmul.f32 %v302, %v440
  %v446 = vmul.f32 %v307, %v440
  %v447 = vmul.f32 %v312, %v440
  %v448 = vmul.f32 %v317, %v440
  %v450 = vlaneseq
  %v451 = vshrl.u32 %v450, 7
  %v452 = vsub.s32 0, %v451
  %v453 = vrot.slane %v436, %v452
  %v455 = vadd.f32 %v441, %v453
  %v456 = vadd.f32 %v442, %v453
  %v457 = vadd.f32 %v443, %v453
  %v458 = vadd.f32 %v444, %v453
  %v459 = vadd.f32 %v445, %v453
  %v460 = vadd.f32 %v446, %v453
  %v461 = vadd.f32 %v447, %v453
  %v462 = vadd.f32 %v448, %v453
  %v463 = vmax.f32 %v455, 0.0
  %v464 = vmax.f32 %v456, 0.0
  %v465 = vmax.f32 %v457, 0.0
  %v466 = vmax.f32 %v458, 0.0
  %v467 = vmax.f32 %v459, 0.0
  %v468 = vmax.f32 %v460, 0.0
  %v469 = vmax.f32 %v461, 0.0
  %v470 = vmax.f32 %v462, 0.0
  %471 = vst.msk [vmem:[%s4] sm:$0xff] %vm320, %v463
  %472 = vst.msk [vmem:[%s4 + $0x8] sm:$0xff] %vm320, %v464
  %473 = vst.msk [vmem:[%s4 + $0x10] sm:$0xff] %vm320, %v465
  %474 = vst.msk [vmem:[%s4 + $0x18] sm:$0xff] %vm320, %v466
  %475 = vst.msk [vmem:[%s4 + $0x20] sm:$0xff] %vm320, %v467
  %476 = vst.msk [vmem:[%s4 + $0x28] sm:$0xff] %vm320, %v468
  %477 = vst.msk [vmem:[%s4 + $0x30] sm:$0xff] %vm320, %v469
  %478 = vst.msk [vmem:[%s4 + $0x38] sm:$0xff] %vm320, %v470
  // Predicated region
  $region18: #{_lambda_.8} parent=0 // pred_check
    _
  $region19: #{_lambda_.8} parent=0 // pred_check_branch
    %480 = sbr.rel (0) target = $region21
  $region20: #{_lambda_.8} parent=0 // pred_region
    _
  $region21: #{_lambda_.8} parent=0 // pred_fallthru
    _
  // Predicated region
  $region22: #{_lambda_.8} parent=0 // pred_check
    _
  $region23: #{_lambda_.8} parent=0 // pred_check_branch
    %482 = sbr.rel (0) target = $region25
  $region24: #{_lambda_.8} parent=0 // pred_region
    _
  $region25: #{_lambda_.8} parent=0 // pred_fallthru
    _

// kernel: _lambda_.9
$region0: #{_lambda_.9}
  #allocation0 [shape = 'u32[]', space=smem, size = 0x4, offset = 0x4, fixed_abs, tag = 'smem constant byte address 0x4 - core index']
  #allocation1 [shape = 'u32[144,128]{1,0:T(1,128)}', space=vmem, size = 0x12000, scoped, tag = 'internal scratch']
  %s0 = inlined_call_operand.vmem [shape: f32[256,189], index: 0, kind: input, shape index: {}]
  %s1 = inlined_call_operand.vmem [shape: f32[189,52], index: 1, kind: input, shape index: {}]
  %s2 = inlined_call_operand.vmem [shape: f32[1,52], index: 2, kind: input, shape index: {}]
  %s3 = inlined_call_operand.vmem [shape: f32[1,52], index: 3, kind: input, shape index: {}]
  %s4 = inlined_call_operand.vmem [shape: f32[256,52], index: 4, kind: output, shape index: {}]
  %s5 = sld [smem:[#allocation0]]
  $region26: #{_lambda_.9} parent=0
    _
  %s7 = ssub.s32 1, %s5
  %s8 = scalar_select 0, %s7, %s5
  // Predicated region
  $region2: #{_lambda_.9} parent=0 // pred_check
    _
  $region3: #{_lambda_.9} parent=0 // pred_check_branch
    %10 = sbr.rel (0) target = $region5
  $region4: #{_lambda_.9} parent=0 // pred_region
    _
  $region5: #{_lambda_.9} parent=0 // pred_fallthru
    _
  // Predicated region
  $region6: #{_lambda_.9} parent=0 // pred_check
    _
  $region7: #{_lambda_.9} parent=0 // pred_check_branch
    %12 = sbr.rel (0) target = $region9
  $region8: #{_lambda_.9} parent=0 // pred_region
    _
  $region9: #{_lambda_.9} parent=0 // pred_fallthru
    _
  // Predicated region
  $region10: #{_lambda_.9} parent=0 // pred_check
    _
  $region11: #{_lambda_.9} parent=0 // pred_check_branch
    %14 = sbr.rel (0) target = $region13
  $region12: #{_lambda_.9} parent=0 // pred_region
    _
  $region13: #{_lambda_.9} parent=0 // pred_fallthru
    _
  // Predicated region
  $region14: #{_lambda_.9} parent=0 // pred_check
    _
  $region15: #{_lambda_.9} parent=0 // pred_check_branch
    %16 = sbr.rel (0) target = $region17
  $region16: #{_lambda_.9} parent=0 // pred_region
    _
  $region17: #{_lambda_.9} parent=0 // pred_fallthru
    _
  %v17 = vld [vmem:[%s0] sm:$0xff]
  %v18 = vld [vmem:[%s0 + $0x8] sm:$0xff]
  %v19 = vld [vmem:[%s0 + $0x10] sm:$0xff]
  %v20 = vld [vmem:[%s0 + $0x18] sm:$0xff]
  %v21 = vld [vmem:[%s0 + $0x20] sm:$0xff]
  %v22 = vld [vmem:[%s0 + $0x28] sm:$0xff]
  %v23 = vld [vmem:[%s0 + $0x30] sm:$0xff]
  %v24 = vld [vmem:[%s0 + $0x38] sm:$0xff]
  %v25 = vld [vmem:[%s0 + $0x40] sm:$0xff]
  %v26 = vld [vmem:[%s0 + $0x48] sm:$0xff]
  %v27 = vld [vmem:[%s0 + $0x50] sm:$0xff]
  %v28 = vld [vmem:[%s0 + $0x58] sm:$0xff]
  %v29 = vld [vmem:[%s0 + $0x60] sm:$0xff]
  %v30 = vld [vmem:[%s0 + $0x68] sm:$0xff]
  %v31 = vld [vmem:[%s0 + $0x70] sm:$0xff]
  %v32 = vld [vmem:[%s0 + $0x78] sm:$0xff]
  %v33 = vld [vmem:[%s0 + $0x80] sm:$0xff]
  %v34 = vld [vmem:[%s0 + $0x88] sm:$0xff]
  %v35 = vld [vmem:[%s0 + $0x90] sm:$0xff]
  %v36 = vld [vmem:[%s0 + $0x98] sm:$0xff]
  %v37 = vld [vmem:[%s0 + $0xa0] sm:$0xff]
  %v38 = vld [vmem:[%s0 + $0xa8] sm:$0xff]
  %v39 = vld [vmem:[%s0 + $0xb0] sm:$0xff]
  %v40 = vld [vmem:[%s0 + $0xb8] sm:$0xff]
  %v41 = vld [vmem:[%s0 + $0xc0] sm:$0xff]
  %v42 = vld [vmem:[%s0 + $0xc8] sm:$0xff]
  %v43 = vld [vmem:[%s0 + $0xd0] sm:$0xff]
  %v44 = vld [vmem:[%s0 + $0xd8] sm:$0xff]
  %v45 = vld [vmem:[%s0 + $0xe0] sm:$0xff]
  %v46 = vld [vmem:[%s0 + $0xe8] sm:$0xff]
  %v47 = vld [vmem:[%s0 + $0xf0] sm:$0xff]
  %v48 = vld [vmem:[%s0 + $0xf8] sm:$0xff]
  %v49 = vld [vmem:[%s0 + $0x100] sm:$0xff]
  %v50 = vld [vmem:[%s0 + $0x108] sm:$0xff]
  %v51 = vld [vmem:[%s0 + $0x110] sm:$0xff]
  %v52 = vld [vmem:[%s0 + $0x118] sm:$0xff]
  %v53 = vld [vmem:[%s0 + $0x120] sm:$0xff]
  %v54 = vld [vmem:[%s0 + $0x128] sm:$0xff]
  %v55 = vld [vmem:[%s0 + $0x130] sm:$0xff]
  %v56 = vld [vmem:[%s0 + $0x138] sm:$0xff]
  %v57 = vld [vmem:[%s0 + $0x140] sm:$0xff]
  %v58 = vld [vmem:[%s0 + $0x148] sm:$0xff]
  %v59 = vld [vmem:[%s0 + $0x150] sm:$0xff]
  %v60 = vld [vmem:[%s0 + $0x158] sm:$0xff]
  %v61 = vld [vmem:[%s0 + $0x160] sm:$0xff]
  %v62 = vld [vmem:[%s0 + $0x168] sm:$0xff]
  %v63 = vld [vmem:[%s0 + $0x170] sm:$0xff]
  %v64 = vld [vmem:[%s0 + $0x178] sm:$0xff]
  %v65 = vld [vmem:[%s0 + $0x180] sm:$0xff]
  %v66 = vld [vmem:[%s0 + $0x188] sm:$0xff]
  %v67 = vld [vmem:[%s0 + $0x190] sm:$0xff]
  %v68 = vld [vmem:[%s0 + $0x198] sm:$0xff]
  %v69 = vld [vmem:[%s0 + $0x1a0] sm:$0xff]
  %v70 = vld [vmem:[%s0 + $0x1a8] sm:$0xff]
  %v71 = vld [vmem:[%s0 + $0x1b0] sm:$0xff]
  %v72 = vld [vmem:[%s0 + $0x1b8] sm:$0xff]
  %v73 = vld [vmem:[%s0 + $0x1c0] sm:$0xff]
  %v74 = vld [vmem:[%s0 + $0x1c8] sm:$0xff]
  %v75 = vld [vmem:[%s0 + $0x1d0] sm:$0xff]
  %v76 = vld [vmem:[%s0 + $0x1d8] sm:$0xff]
  %v77 = vld [vmem:[%s0 + $0x1e0] sm:$0xff]
  %v78 = vld [vmem:[%s0 + $0x1e8] sm:$0xff]
  %v79 = vld [vmem:[%s0 + $0x1f0] sm:$0xff]
  %v80 = vld [vmem:[%s0 + $0x1f8] sm:$0xff]
  %v81 = vld [vmem:[%s1] sm:$0xff]
  %v82 = vld [vmem:[%s1 + $0x8] sm:$0xff]
  %v83 = vld [vmem:[%s1 + $0x10] sm:$0xff]
  %v84 = vld [vmem:[%s1 + $0x18] sm:$0xff]
  %v85 = vld [vmem:[%s1 + $0x20] sm:$0xff]
  %v86 = vld [vmem:[%s1 + $0x28] sm:$0xff]
  %v87 = vld [vmem:[%s1 + $0x30] sm:$0xff]
  %v88 = vld [vmem:[%s1 + $0x38] sm:$0xff]
  %v89 = vld [vmem:[%s1 + $0x40] sm:$0xff]
  %v90 = vld [vmem:[%s1 + $0x48] sm:$0xff]
  %v91 = vld [vmem:[%s1 + $0x50] sm:$0xff]
  %v92 = vld [vmem:[%s1 + $0x58] sm:$0xff]
  %v93 = vld [vmem:[%s1 + $0x60] sm:$0xff]
  %v94 = vld [vmem:[%s1 + $0x68] sm:$0xff]
  %v95 = vld [vmem:[%s1 + $0x70] sm:$0xff]
  %v96 = vld [vmem:[%s1 + $0x78] sm:$0xff]
  %v97 = vld [vmem:[%s1 + $0x80] sm:$0xff]
  %v98 = vld [vmem:[%s1 + $0x88] sm:$0xff]
  %v99 = vld [vmem:[%s1 + $0x90] sm:$0xff]
  %v100 = vld [vmem:[%s1 + $0x98] sm:$0xff]
  %v101 = vld [vmem:[%s1 + $0xa0] sm:$0xff]
  %v102 = vld [vmem:[%s1 + $0xa8] sm:$0xff]
  %v103 = vld [vmem:[%s1 + $0xb0] sm:$0xff]
  %v104 = vld [vmem:[%s1 + $0xb8] sm:$0x1f]
  %vm105 = vcmask 498688
  %v107 = vsel %vm105, %v18, 0
  %v110 = vsel %vm105, %v20, 0
  %v113 = vsel %vm105, %v22, 0
  %v116 = vsel %vm105, %v24, 0
  %v119 = vsel %vm105, %v26, 0
  %v122 = vsel %vm105, %v28, 0
  %v125 = vsel %vm105, %v30, 0
  %v128 = vsel %vm105, %v32, 0
  %v131 = vsel %vm105, %v34, 0
  %v134 = vsel %vm105, %v36, 0
  %v137 = vsel %vm105, %v38, 0
  %v140 = vsel %vm105, %v40, 0
  %v143 = vsel %vm105, %v42, 0
  %v146 = vsel %vm105, %v44, 0
  %v149 = vsel %vm105, %v46, 0
  %v152 = vsel %vm105, %v48, 0
  %v155 = vsel %vm105, %v50, 0
  %v158 = vsel %vm105, %v52, 0
  %v161 = vsel %vm105, %v54, 0
  %v164 = vsel %vm105, %v56, 0
  %v167 = vsel %vm105, %v58, 0
  %v170 = vsel %vm105, %v60, 0
  %v173 = vsel %vm105, %v62, 0
  %v176 = vsel %vm105, %v64, 0
  %v179 = vsel %vm105, %v66, 0
  %v182 = vsel %vm105, %v68, 0
  %v185 = vsel %vm105, %v70, 0
  %v188 = vsel %vm105, %v72, 0
  %v191 = vsel %vm105, %v74, 0
  %v194 = vsel %vm105, %v76, 0
  %v197 = vsel %vm105, %v78, 0
  %v200 = vsel %vm105, %v80, 0
  %vm202 = vcmask 1044480
  %v204 = vsel %vm202, %v104, 0
  %206 = vmatprep.subr.mxu0 0.0
  %207 = vmatpush1.msra.mxu0 %v81
  %208 = vmatprep.subr.mxu0 0.0
  %209 = vmatpush1.msra.mxu0 %v82
  %210 = vmatprep.subr.mxu0 0.0
  %211 = vmatpush1.msra.mxu0 %v83
  %212 = vmatprep.subr.mxu0 0.0
  %213 = vmatpush1.msra.mxu0 %v84
  %214 = vmatprep.subr.mxu0 0.0
  %215 = vmatpush1.msra.mxu0 %v85
  %216 = vmatprep.subr.mxu0 0.0
  %217 = vmatpush1.msra.mxu0 %v86
  %218 = vmatprep.subr.mxu0 0.0
  %219 = vmatpush1.msra.mxu0 %v87
  %220 = vmatprep.subr.mxu0 0.0
  %221 = vmatpush1.msra.mxu0 %v88
  %222 = vmatprep.subr.mxu0 0.0
  %223 = vmatpush1.msra.mxu0 %v89
  %224 = vmatprep.subr.mxu0 0.0
  %225 = vmatpush1.msra.mxu0 %v90
  %226 = vmatprep.subr.mxu0 0.0
  %227 = vmatpush1.msra.mxu0 %v91
  %228 = vmatprep.subr.mxu0 0.0
  %229 = vmatpush1.msra.mxu0 %v92
  %230 = vmatprep.subr.mxu0 0.0
  %231 = vmatpush1.msra.mxu0 %v93
  %232 = vmatprep.subr.mxu0 0.0
  %233 = vmatpush1.msra.mxu0 %v94
  %234 = vmatprep.subr.mxu0 0.0
  %235 = vmatpush1.msra.mxu0 %v95
  %236 = vmatprep.subr.mxu0 0.0
  %237 = vmatpush1.msra.mxu0 %v96
  %238 = vmatprep.subr.mxu0 0.0
  %239 = vmatpush1.msra.mxu0 %v97
  %240 = vmatprep.subr.mxu0 0.0
  %241 = vmatpush1.msra.mxu0 %v98
  %242 = vmatprep.subr.mxu0 0.0
  %243 = vmatpush1.msra.mxu0 %v99
  %244 = vmatprep.subr.mxu0 0.0
  %245 = vmatpush1.msra.mxu0 %v100
  %246 = vmatprep.subr.mxu0 0.0
  %247 = vmatpush1.msra.mxu0 %v101
  %248 = vmatprep.subr.mxu0 0.0
  %249 = vmatpush1.msra.mxu0 %v102
  %250 = vmatprep.subr.mxu0 0.0
  %251 = vmatpush1.msra.mxu0 %v103
  %252 = vmatprep.subr.mxu0 0.0
  %253 = vmatpush1.msra.mxu0 %v204
  %254 = vmatprep.subr.mxu0 0.0
  %255 = vmatpush1.msra.mxu0 0.0
  %256 = vmatprep.subr.mxu0 0.0
  %257 = vmatpush1.msra.mxu0 0.0
  %258 = vmatprep.subr.mxu0 0.0
  %259 = vmatpush1.msra.mxu0 0.0
  %260 = vmatprep.subr.mxu0 0.0
  %261 = vmatpush1.msra.mxu0 0.0
  %262 = vmatprep.subr.mxu0 0.0
  %263 = vmatpush1.msra.mxu0 0.0
  %264 = vmatprep.subr.mxu0 0.0
  %265 = vmatpush1.msra.mxu0 0.0
  %266 = vmatprep.subr.mxu0 0.0
  %267 = vmatpush1.msra.mxu0 0.0
  %268 = vmatprep.subr.mxu0 0.0
  %269 = vmatpush1.msra.mxu0 0.0
  %270 = vmatprep.mubr.f32.mxu0 %v107
  %271 = vmatmul.mubr.f32.gmra.mrb[0].mxu0 %v17
  %v272 = vpop.f32.mrb[0].mxu0
  %v273 = vadd.f32 0.0, %v272
  %v274 = vpop.f32.mrb[0].mxu0
  %275 = vmatprep.mubr.f32.mxu0 %v110
  %276 = vmatmul.mubr.f32.gmra.mrb[0].mxu0 %v19
  %v277 = vpop.f32.mrb[0].mxu0
  %v278 = vadd.f32 0.0, %v277
  %v279 = vpop.f32.mrb[0].mxu0
  %280 = vmatprep.mubr.f32.mxu0 %v113
  %281 = vmatmul.mubr.f32.gmra.mrb[0].mxu0 %v21
  %v282 = vpop.f32.mrb[0].mxu0
  %v283 = vadd.f32 0.0, %v282
  %v284 = vpop.f32.mrb[0].mxu0
  %285 = vmatprep.mubr.f32.mxu0 %v116
  %286 = vmatmul.mubr.f32.gmra.mrb[0].mxu0 %v23
  %v287 = vpop.f32.mrb[0].mxu0
  %v288 = vadd.f32 0.0, %v287
  %v289 = vpop.f32.mrb[0].mxu0
  %290 = vmatprep.mubr.f32.mxu0 %v119
  %291 = vmatmul.mubr.f32.gmra.mrb[0].mxu0 %v25
  %v292 = vpop.f32.mrb[0].mxu0
  %v293 = vadd.f32 0.0, %v292
  %v294 = vpop.f32.mrb[0].mxu0
  %295 = vmatprep.mubr.f32.mxu0 %v122
  %296 = vmatmul.mubr.f32.gmra.mrb[0].mxu0 %v27
  %v297 = vpop.f32.mrb[0].mxu0
  %v298 = vadd.f32 0.0, %v297
  %v299 = vpop.f32.mrb[0].mxu0
  %300 = vmatprep.mubr.f32.mxu0 %v125
  %301 = vmatmul.mubr.f32.gmra.mrb[0].mxu0 %v29
  %v302 = vpop.f32.mrb[0].mxu0
  %v303 = vadd.f32 0.0, %v302
  %v304 = vpop.f32.mrb[0].mxu0
  %305 = vmatprep.mubr.f32.mxu0 %v128
  %306 = vmatmul.mubr.f32.gmra.mrb[0].mxu0 %v31
  %v307 = vpop.f32.mrb[0].mxu0
  %v308 = vadd.f32 0.0, %v307
  %v309 = vpop.f32.mrb[0].mxu0
  %310 = vmatprep.mubr.f32.mxu0 %v131
  %311 = vmatmul.mubr.f32.gmra.mrb[0].mxu0 %v33
  %v312 = vpop.f32.mrb[0].mxu0
  %v313 = vadd.f32 0.0, %v312
  %v314 = vpop.f32.mrb[0].mxu0
  %315 = vmatprep.mubr.f32.mxu0 %v134
  %316 = vmatmul.mubr.f32.gmra.mrb[0].mxu0 %v35
  %v317 = vpop.f32.mrb[0].mxu0
  %v318 = vadd.f32 0.0, %v317
  %v319 = vpop.f32.mrb[0].mxu0
  %320 = vmatprep.mubr.f32.mxu0 %v137
  %321 = vmatmul.mubr.f32.gmra.mrb[0].mxu0 %v37
  %v322 = vpop.f32.mrb[0].mxu0
  %v323 = vadd.f32 0.0, %v322
  %v324 = vpop.f32.mrb[0].mxu0
  %325 = vmatprep.mubr.f32.mxu0 %v140
  %326 = vmatmul.mubr.f32.gmra.mrb[0].mxu0 %v39
  %v327 = vpop.f32.mrb[0].mxu0
  %v328 = vadd.f32 0.0, %v327
  %v329 = vpop.f32.mrb[0].mxu0
  %330 = vmatprep.mubr.f32.mxu0 %v143
  %331 = vmatmul.mubr.f32.gmra.mrb[0].mxu0 %v41
  %v332 = vpop.f32.mrb[0].mxu0
  %v333 = vadd.f32 0.0, %v332
  %v334 = vpop.f32.mrb[0].mxu0
  %335 = vmatprep.mubr.f32.mxu0 %v146
  %336 = vmatmul.mubr.f32.gmra.mrb[0].mxu0 %v43
  %v337 = vpop.f32.mrb[0].mxu0
  %v338 = vadd.f32 0.0, %v337
  %v339 = vpop.f32.mrb[0].mxu0
  %340 = vmatprep.mubr.f32.mxu0 %v149
  %341 = vmatmul.mubr.f32.gmra.mrb[0].mxu0 %v45
  %v342 = vpop.f32.mrb[0].mxu0
  %v343 = vadd.f32 0.0, %v342
  %v344 = vpop.f32.mrb[0].mxu0
  %345 = vmatprep.mubr.f32.mxu0 %v152
  %346 = vmatmul.mubr.f32.gmra.mrb[0].mxu0 %v47
  %v347 = vpop.f32.mrb[0].mxu0
  %v348 = vadd.f32 0.0, %v347
  %v349 = vpop.f32.mrb[0].mxu0
  %350 = vmatprep.mubr.f32.mxu0 %v155
  %351 = vmatmul.mubr.f32.gmra.mrb[0].mxu0 %v49
  %v352 = vpop.f32.mrb[0].mxu0
  %v353 = vadd.f32 0.0, %v352
  %v354 = vpop.f32.mrb[0].mxu0
  %355 = vmatprep.mubr.f32.mxu0 %v158
  %356 = vmatmul.mubr.f32.gmra.mrb[0].mxu0 %v51
  %v357 = vpop.f32.mrb[0].mxu0
  %v358 = vadd.f32 0.0, %v357
  %v359 = vpop.f32.mrb[0].mxu0
  %360 = vmatprep.mubr.f32.mxu0 %v161
  %361 = vmatmul.mubr.f32.gmra.mrb[0].mxu0 %v53
  %v362 = vpop.f32.mrb[0].mxu0
  %v363 = vadd.f32 0.0, %v362
  %v364 = vpop.f32.mrb[0].mxu0
  %365 = vmatprep.mubr.f32.mxu0 %v164
  %366 = vmatmul.mubr.f32.gmra.mrb[0].mxu0 %v55
  %v367 = vpop.f32.mrb[0].mxu0
  %v368 = vadd.f32 0.0, %v367
  %v369 = vpop.f32.mrb[0].mxu0
  %370 = vmatprep.mubr.f32.mxu0 %v167
  %371 = vmatmul.mubr.f32.gmra.mrb[0].mxu0 %v57
  %v372 = vpop.f32.mrb[0].mxu0
  %v373 = vadd.f32 0.0, %v372
  %v374 = vpop.f32.mrb[0].mxu0
  %375 = vmatprep.mubr.f32.mxu0 %v170
  %376 = vmatmul.mubr.f32.gmra.mrb[0].mxu0 %v59
  %v377 = vpop.f32.mrb[0].mxu0
  %v378 = vadd.f32 0.0, %v377
  %v379 = vpop.f32.mrb[0].mxu0
  %380 = vmatprep.mubr.f32.mxu0 %v173
  %381 = vmatmul.mubr.f32.gmra.mrb[0].mxu0 %v61
  %v382 = vpop.f32.mrb[0].mxu0
  %v383 = vadd.f32 0.0, %v382
  %v384 = vpop.f32.mrb[0].mxu0
  %385 = vmatprep.mubr.f32.mxu0 %v176
  %386 = vmatmul.mubr.f32.gmra.mrb[0].mxu0 %v63
  %v387 = vpop.f32.mrb[0].mxu0
  %v388 = vadd.f32 0.0, %v387
  %v389 = vpop.f32.mrb[0].mxu0
  %390 = vmatprep.mubr.f32.mxu0 %v179
  %391 = vmatmul.mubr.f32.gmra.mrb[0].mxu0 %v65
  %v392 = vpop.f32.mrb[0].mxu0
  %v393 = vadd.f32 0.0, %v392
  %v394 = vpop.f32.mrb[0].mxu0
  %395 = vmatprep.mubr.f32.mxu0 %v182
  %396 = vmatmul.mubr.f32.gmra.mrb[0].mxu0 %v67
  %v397 = vpop.f32.mrb[0].mxu0
  %v398 = vadd.f32 0.0, %v397
  %v399 = vpop.f32.mrb[0].mxu0
  %400 = vmatprep.mubr.f32.mxu0 %v185
  %401 = vmatmul.mubr.f32.gmra.mrb[0].mxu0 %v69
  %v402 = vpop.f32.mrb[0].mxu0
  %v403 = vadd.f32 0.0, %v402
  %v404 = vpop.f32.mrb[0].mxu0
  %405 = vmatprep.mubr.f32.mxu0 %v188
  %406 = vmatmul.mubr.f32.gmra.mrb[0].mxu0 %v71
  %v407 = vpop.f32.mrb[0].mxu0
  %v408 = vadd.f32 0.0, %v407
  %v409 = vpop.f32.mrb[0].mxu0
  %410 = vmatprep.mubr.f32.mxu0 %v191
  %411 = vmatmul.mubr.f32.gmra.mrb[0].mxu0 %v73
  %v412 = vpop.f32.mrb[0].mxu0
  %v413 = vadd.f32 0.0, %v412
  %v414 = vpop.f32.mrb[0].mxu0
  %415 = vmatprep.mubr.f32.mxu0 %v194
  %416 = vmatmul.mubr.f32.gmra.mrb[0].mxu0 %v75
  %v417 = vpop.f32.mrb[0].mxu0
  %v418 = vadd.f32 0.0, %v417
  %v419 = vpop.f32.mrb[0].mxu0
  %420 = vmatprep.mubr.f32.mxu0 %v197
  %421 = vmatmul.mubr.f32.gmra.mrb[0].mxu0 %v77
  %v422 = vpop.f32.mrb[0].mxu0
  %v423 = vadd.f32 0.0, %v422
  %v424 = vpop.f32.mrb[0].mxu0
  %425 = vmatprep.mubr.f32.mxu0 %v200
  %426 = vmatmul.mubr.f32.gmra.mrb[0].mxu0 %v79
  %v427 = vpop.f32.mrb[0].mxu0
  %v428 = vadd.f32 0.0, %v427
  %v429 = vpop.f32.mrb[0].mxu0
  %430 = vdwg.mxu0
  %vm431 = vcmask 424960
  %v432 = vsel %vm431, %v273, 0.0
  %v433 = vsel %vm431, %v278, 0.0
  %v434 = vadd.f32 %v432, %v433
  %v435 = vsel %vm431, %v283, 0.0
  %v436 = vadd.f32 %v434, %v435
  %v437 = vsel %vm431, %v288, 0.0
  %v438 = vadd.f32 %v436, %v437
  %v439 = vsel %vm431, %v293, 0.0
  %v440 = vadd.f32 %v438, %v439
  %v441 = vsel %vm431, %v298, 0.0
  %v442 = vadd.f32 %v440, %v441
  %v443 = vsel %vm431, %v303, 0.0
  %v444 = vadd.f32 %v442, %v443
  %v445 = vsel %vm431, %v308, 0.0
  %v446 = vadd.f32 %v444, %v445
  %v447 = vsel %vm431, %v313, 0.0
  %v448 = vadd.f32 %v446, %v447
  %v449 = vsel %vm431, %v318, 0.0
  %v450 = vadd.f32 %v448, %v449
  %v451 = vsel %vm431, %v323, 0.0
  %v452 = vadd.f32 %v450, %v451
  %v453 = vsel %vm431, %v328, 0.0
  %v454 = vadd.f32 %v452, %v453
  %v455 = vsel %vm431, %v333, 0.0
  %v456 = vadd.f32 %v454, %v455
  %v457 = vsel %vm431, %v338, 0.0
  %v458 = vadd.f32 %v456, %v457
  %v459 = vsel %vm431, %v343, 0.0
  %v460 = vadd.f32 %v458, %v459
  %v461 = vsel %vm431, %v348, 0.0
  %v462 = vadd.f32 %v460, %v461
  %v463 = vsel %vm431, %v353, 0.0
  %v464 = vadd.f32 %v462, %v463
  %v465 = vsel %vm431, %v358, 0.0
  %v466 = vadd.f32 %v464, %v465
  %v467 = vsel %vm431, %v363, 0.0
  %v468 = vadd.f32 %v466, %v467
  %v469 = vsel %vm431, %v368, 0.0
  %v470 = vadd.f32 %v468, %v469
  %v471 = vsel %vm431, %v373, 0.0
  %v472 = vadd.f32 %v470, %v471
  %v473 = vsel %vm431, %v378, 0.0
  %v474 = vadd.f32 %v472, %v473
  %v475 = vsel %vm431, %v383, 0.0
  %v476 = vadd.f32 %v474, %v475
  %v477 = vsel %vm431, %v388, 0.0
  %v478 = vadd.f32 %v476, %v477
  %v479 = vsel %vm431, %v393, 0.0
  %v480 = vadd.f32 %v478, %v479
  %v481 = vsel %vm431, %v398, 0.0
  %v482 = vadd.f32 %v480, %v481
  %v483 = vsel %vm431, %v403, 0.0
  %v484 = vadd.f32 %v482, %v483
  %v485 = vsel %vm431, %v408, 0.0
  %v486 = vadd.f32 %v484, %v485
  %v487 = vsel %vm431, %v413, 0.0
  %v488 = vadd.f32 %v486, %v487
  %v489 = vsel %vm431, %v418, 0.0
  %v490 = vadd.f32 %v488, %v489
  %v491 = vsel %vm431, %v423, 0.0
  %v492 = vadd.f32 %v490, %v491
  %v493 = vsel %vm431, %v428, 0.0
  %v494 = vadd.f32 %v492, %v493
  %v495 = vrot.slane %v494, 4
  %v496 = vadd.f32 %v494, %v495
  %v497 = vrot.slane %v496, 2
  %v498 = vadd.f32 %v496, %v497
  %v499 = vrot.slane %v498, 1
  %v500 = vadd.f32 %v498, %v499
  %v501 = vmul.f32 %v273, %v273
  %v502 = vmul.f32 %v278, %v278
  %v503 = vmul.f32 %v283, %v283
  %v504 = vmul.f32 %v288, %v288
  %v505 = vmul.f32 %v293, %v293
  %v506 = vmul.f32 %v298, %v298
  %v507 = vmul.f32 %v303, %v303
  %v508 = vmul.f32 %v308, %v308
  %v509 = vmul.f32 %v313, %v313
  %v510 = vmul.f32 %v318, %v318
  %v511 = vmul.f32 %v323, %v323
  %v512 = vmul.f32 %v328, %v328
  %v513 = vmul.f32 %v333, %v333
  %v514 = vmul.f32 %v338, %v338
  %v515 = vmul.f32 %v343, %v343
  %v516 = vmul.f32 %v348, %v348
  %v517 = vmul.f32 %v353, %v353
  %v518 = vmul.f32 %v358, %v358
  %v519 = vmul.f32 %v363, %v363
  %v520 = vmul.f32 %v368, %v368
  %v521 = vmul.f32 %v373, %v373
  %v522 = vmul.f32 %v378, %v378
  %v523 = vmul.f32 %v383, %v383
  %v524 = vmul.f32 %v388, %v388
  %v525 = vmul.f32 %v393, %v393
  %v526 = vmul.f32 %v398, %v398
  %v527 = vmul.f32 %v403, %v403
  %v528 = vmul.f32 %v408, %v408
  %v529 = vmul.f32 %v413, %v413
  %v530 = vmul.f32 %v418, %v418
  %v531 = vmul.f32 %v423, %v423
  %v532 = vmul.f32 %v428, %v428
  %v533 = vsel %vm431, %v501, 0.0
  %v534 = vsel %vm431, %v502, 0.0
  %v535 = vadd.f32 %v533, %v534
  %v536 = vsel %vm431, %v503, 0.0
  %v537 = vadd.f32 %v535, %v536
  %v538 = vsel %vm431, %v504, 0.0
  %v539 = vadd.f32 %v537, %v538
  %v540 = vsel %vm431, %v505, 0.0
  %v541 = vadd.f32 %v539, %v540
  %v542 = vsel %vm431, %v506, 0.0
  %v543 = vadd.f32 %v541, %v542
  %v544 = vsel %vm431, %v507, 0.0
  %v545 = vadd.f32 %v543, %v544
  %v546 = vsel %vm431, %v508, 0.0
  %v547 = vadd.f32 %v545, %v546
  %v548 = vsel %vm431, %v509, 0.0
  %v549 = vadd.f32 %v547, %v548
  %v550 = vsel %vm431, %v510, 0.0
  %v551 = vadd.f32 %v549, %v550
  %v552 = vsel %vm431, %v511, 0.0
  %v553 = vadd.f32 %v551, %v552
  %v554 = vsel %vm431, %v512, 0.0
  %v555 = vadd.f32 %v553, %v554
  %v556 = vsel %vm431, %v513, 0.0
  %v557 = vadd.f32 %v555, %v556
  %v558 = vsel %vm431, %v514, 0.0
  %v559 = vadd.f32 %v557, %v558
  %v560 = vsel %vm431, %v515, 0.0
  %v561 = vadd.f32 %v559, %v560
  %v562 = vsel %vm431, %v516, 0.0
  %v563 = vadd.f32 %v561, %v562
  %v564 = vsel %vm431, %v517, 0.0
  %v565 = vadd.f32 %v563, %v564
  %v566 = vsel %vm431, %v518, 0.0
  %v567 = vadd.f32 %v565, %v566
  %v568 = vsel %vm431, %v519, 0.0
  %v569 = vadd.f32 %v567, %v568
  %v570 = vsel %vm431, %v520, 0.0
  %v571 = vadd.f32 %v569, %v570
  %v572 = vsel %vm431, %v521, 0.0
  %v573 = vadd.f32 %v571, %v572
  %v574 = vsel %vm431, %v522, 0.0
  %v575 = vadd.f32 %v573, %v574
  %v576 = vsel %vm431, %v523, 0.0
  %v577 = vadd.f32 %v575, %v576
  %v578 = vsel %vm431, %v524, 0.0
  %v579 = vadd.f32 %v577, %v578
  %v580 = vsel %vm431, %v525, 0.0
  %v581 = vadd.f32 %v579, %v580
  %v582 = vsel %vm431, %v526, 0.0
  %v583 = vadd.f32 %v581, %v582
  %v584 = vsel %vm431, %v527, 0.0
  %v585 = vadd.f32 %v583, %v584
  %v586 = vsel %vm431, %v528, 0.0
  %v587 = vadd.f32 %v585, %v586
  %v588 = vsel %vm431, %v529, 0.0
  %v589 = vadd.f32 %v587, %v588
  %v590 = vsel %vm431, %v530, 0.0
  %v591 = vadd.f32 %v589, %v590
  %v592 = vsel %vm431, %v531, 0.0
  %v593 = vadd.f32 %v591, %v592
  %v594 = vsel %vm431, %v532, 0.0
  %v595 = vadd.f32 %v593, %v594
  %v596 = vrot.slane %v595, 4
  %v597 = vadd.f32 %v595, %v596
  %v598 = vrot.slane %v597, 2
  %v599 = vadd.f32 %v597, %v598
  %v600 = vrot.slane %v599, 1
  %v601 = vadd.f32 %v599, %v600
  %v602 = vld [vmem:[%s2] sm:$0x1]
  %v603 = vld [vmem:[%s3] sm:$0x1]
  %605 = vrot.lane.b32.xlu0 %v500, 115
  %v606 = vpop.permute.xlu0 %605
  %v608 = vadd.f32 %v500, %v606
  %610 = vrot.lane.b32.xlu0 %v601, 115
  %v611 = vpop.permute.xlu0 %610
  %v613 = vadd.f32 %v601, %v611
  %614 = vrot.lane.b32.xlu0 %v500, 102
  %v615 = vpop.permute.xlu0 %614
  %v617 = vadd.f32 %v608, %v615
  %618 = vrot.lane.b32.xlu0 %v601, 102
  %v619 = vpop.permute.xlu0 %618
  %v621 = vadd.f32 %v613, %v619
  %622 = vrot.lane.b32.xlu0 %v500, 89
  %v623 = vpop.permute.xlu0 %622
  %v625 = vadd.f32 %v617, %v623
  %626 = vrot.lane.b32.xlu0 %v601, 89
  %v627 = vpop.permute.xlu0 %626
  %v629 = vadd.f32 %v621, %v627
  %v630 = vmul.f32 %v625, 0.0009765625
  %v631 = vmul.f32 %v629, 0.0009765625
  %v632 = vmul.f32 %v630, %v630
  %v633 = vsub.f32 %v631, %v632
  %v634 = vadd.f32 %v633, 1e-05
  %v635 = vrsqrt.pop %v634
  %637 = vrot.lane.b32.xlu0 %v630, 13
  %v638 = vpop.permute.xlu0 %637
  %640 = vrot.lane.b32.xlu0 %v630, 26
  %v641 = vpop.permute.xlu0 %640
  %643 = vrot.lane.b32.xlu0 %v630, 39
  %v644 = vpop.permute.xlu0 %643
  %vm646 = vcmask 105472
  %v647 = vsel %vm646, %v630, %v638
  %vm648 = vcmask 211968
  %v649 = vsel %vm648, %v647, %v641
  %vm650 = vcmask 318464
  %v651 = vsel %vm650, %v649, %v644
  %653 = vrot.lane.b32.xlu0 %v635, 13
  %v654 = vpop.permute.xlu0 %653
  %656 = vrot.lane.b32.xlu0 %v635, 26
  %v657 = vpop.permute.xlu0 %656
  %659 = vrot.lane.b32.xlu0 %v635, 39
  %v660 = vpop.permute.xlu0 %659
  %v662 = vsel %vm646, %v635, %v654
  %v663 = vsel %vm648, %v662, %v657
  %v664 = vsel %vm650, %v663, %v660
  %v665 = vmul.f32 %v664, %v602
  %v666 = vmul.f32 %v651, %v665
  %v667 = vsub.f32 %v603, %v666
  %v668 = vlaneseq
  %v669 = vshrl.u32 %v668, 7
  %v670 = vsub.s32 0, %v669
  %v671 = vrot.slane %v665, %v670
  %v672 = vmul.f32 %v273, %v671
  %v673 = vmul.f32 %v278, %v671
  %v674 = vmul.f32 %v283, %v671
  %v675 = vmul.f32 %v288, %v671
  %v676 = vmul.f32 %v293, %v671
  %v677 = vmul.f32 %v298, %v671
  %v678 = vmul.f32 %v303, %v671
  %v679 = vmul.f32 %v308, %v671
  %v680 = vmul.f32 %v313, %v671
  %v681 = vmul.f32 %v318, %v671
  %v682 = vmul.f32 %v323, %v671
  %v683 = vmul.f32 %v328, %v671
  %v684 = vmul.f32 %v333, %v671
  %v685 = vmul.f32 %v338, %v671
  %v686 = vmul.f32 %v343, %v671
  %v687 = vmul.f32 %v348, %v671
  %v688 = vmul.f32 %v353, %v671
  %v689 = vmul.f32 %v358, %v671
  %v690 = vmul.f32 %v363, %v671
  %v691 = vmul.f32 %v368, %v671
  %v692 = vmul.f32 %v373, %v671
  %v693 = vmul.f32 %v378, %v671
  %v694 = vmul.f32 %v383, %v671
  %v695 = vmul.f32 %v388, %v671
  %v696 = vmul.f32 %v393, %v671
  %v697 = vmul.f32 %v398, %v671
  %v698 = vmul.f32 %v403, %v671
  %v699 = vmul.f32 %v408, %v671
  %v700 = vmul.f32 %v413, %v671
  %v701 = vmul.f32 %v418, %v671
  %v702 = vmul.f32 %v423, %v671
  %v703 = vmul.f32 %v428, %v671
  %v705 = vlaneseq
  %v706 = vshrl.u32 %v705, 7
  %v707 = vsub.s32 0, %v706
  %v708 = vrot.slane %v667, %v707
  %v710 = vadd.f32 %v672, %v708
  %v711 = vadd.f32 %v673, %v708
  %v712 = vadd.f32 %v674, %v708
  %v713 = vadd.f32 %v675, %v708
  %v714 = vadd.f32 %v676, %v708
  %v715 = vadd.f32 %v677, %v708
  %v716 = vadd.f32 %v678, %v708
  %v717 = vadd.f32 %v679, %v708
  %v718 = vadd.f32 %v680, %v708
  %v719 = vadd.f32 %v681, %v708
  %v720 = vadd.f32 %v682, %v708
  %v721 = vadd.f32 %v683, %v708
  %v722 = vadd.f32 %v684, %v708
  %v723 = vadd.f32 %v685, %v708
  %v724 = vadd.f32 %v686, %v708
  %v725 = vadd.f32 %v687, %v708
  %v726 = vadd.f32 %v688, %v708
  %v727 = vadd.f32 %v689, %v708
  %v728 = vadd.f32 %v690, %v708
  %v729 = vadd.f32 %v691, %v708
  %v730 = vadd.f32 %v692, %v708
  %v731 = vadd.f32 %v693, %v708
  %v732 = vadd.f32 %v694, %v708
  %v733 = vadd.f32 %v695, %v708
  %v734 = vadd.f32 %v696, %v708
  %v735 = vadd.f32 %v697, %v708
  %v736 = vadd.f32 %v698, %v708
  %v737 = vadd.f32 %v699, %v708
  %v738 = vadd.f32 %v700, %v708
  %v739 = vadd.f32 %v701, %v708
  %v740 = vadd.f32 %v702, %v708
  %v741 = vadd.f32 %v703, %v708
  %v742 = vmax.f32 %v710, 0.0
  %v743 = vmax.f32 %v711, 0.0
  %v744 = vmax.f32 %v712, 0.0
  %v745 = vmax.f32 %v713, 0.0
  %v746 = vmax.f32 %v714, 0.0
  %v747 = vmax.f32 %v715, 0.0
  %v748 = vmax.f32 %v716, 0.0
  %v749 = vmax.f32 %v717, 0.0
  %v750 = vmax.f32 %v718, 0.0
  %v751 = vmax.f32 %v719, 0.0
  %v752 = vmax.f32 %v720, 0.0
  %v753 = vmax.f32 %v721, 0.0
  %v754 = vmax.f32 %v722, 0.0
  %v755 = vmax.f32 %v723, 0.0
  %v756 = vmax.f32 %v724, 0.0
  %v757 = vmax.f32 %v725, 0.0
  %v758 = vmax.f32 %v726, 0.0
  %v759 = vmax.f32 %v727, 0.0
  %v760 = vmax.f32 %v728, 0.0
  %v761 = vmax.f32 %v729, 0.0
  %v762 = vmax.f32 %v730, 0.0
  %v763 = vmax.f32 %v731, 0.0
  %v764 = vmax.f32 %v732, 0.0
  %v765 = vmax.f32 %v733, 0.0
  %v766 = vmax.f32 %v734, 0.0
  %v767 = vmax.f32 %v735, 0.0
  %v768 = vmax.f32 %v736, 0.0
  %v769 = vmax.f32 %v737, 0.0
  %v770 = vmax.f32 %v738, 0.0
  %v771 = vmax.f32 %v739, 0.0
  %v772 = vmax.f32 %v740, 0.0
  %v773 = vmax.f32 %v741, 0.0
  %774 = vst.msk [vmem:[%s4] sm:$0xff] %vm431, %v742
  %775 = vst.msk [vmem:[%s4 + $0x8] sm:$0xff] %vm431, %v743
  %776 = vst.msk [vmem:[%s4 + $0x10] sm:$0xff] %vm431, %v744
  %777 = vst.msk [vmem:[%s4 + $0x18] sm:$0xff] %vm431, %v745
  %778 = vst.msk [vmem:[%s4 + $0x20] sm:$0xff] %vm431, %v746
  %779 = vst.msk [vmem:[%s4 + $0x28] sm:$0xff] %vm431, %v747
  %780 = vst.msk [vmem:[%s4 + $0x30] sm:$0xff] %vm431, %v748
  %781 = vst.msk [vmem:[%s4 + $0x38] sm:$0xff] %vm431, %v749
  %782 = vst.msk [vmem:[%s4 + $0x40] sm:$0xff] %vm431, %v750
  %783 = vst.msk [vmem:[%s4 + $0x48] sm:$0xff] %vm431, %v751
  %784 = vst.msk [vmem:[%s4 + $0x50] sm:$0xff] %vm431, %v752
  %785 = vst.msk [vmem:[%s4 + $0x58] sm:$0xff] %vm431, %v753
  %786 = vst.msk [vmem:[%s4 + $0x60] sm:$0xff] %vm431, %v754
  %787 = vst.msk [vmem:[%s4 + $0x68] sm:$0xff] %vm431, %v755
  %788 = vst.msk [vmem:[%s4 + $0x70] sm:$0xff] %vm431, %v756
  %789 = vst.msk [vmem:[%s4 + $0x78] sm:$0xff] %vm431, %v757
  %790 = vst.msk [vmem:[%s4 + $0x80] sm:$0xff] %vm431, %v758
  %791 = vst.msk [vmem:[%s4 + $0x88] sm:$0xff] %vm431, %v759
  %792 = vst.msk [vmem:[%s4 + $0x90] sm:$0xff] %vm431, %v760
  %793 = vst.msk [vmem:[%s4 + $0x98] sm:$0xff] %vm431, %v761
  %794 = vst.msk [vmem:[%s4 + $0xa0] sm:$0xff] %vm431, %v762
  %795 = vst.msk [vmem:[%s4 + $0xa8] sm:$0xff] %vm431, %v763
  %796 = vst.msk [vmem:[%s4 + $0xb0] sm:$0xff] %vm431, %v764
  %797 = vst.msk [vmem:[%s4 + $0xb8] sm:$0xff] %vm431, %v765
  %798 = vst.msk [vmem:[%s4 + $0xc0] sm:$0xff] %vm431, %v766
  %799 = vst.msk [vmem:[%s4 + $0xc8] sm:$0xff] %vm431, %v767
  %800 = vst.msk [vmem:[%s4 + $0xd0] sm:$0xff] %vm431, %v768
  %801 = vst.msk [vmem:[%s4 + $0xd8] sm:$0xff] %vm431, %v769
  %802 = vst.msk [vmem:[%s4 + $0xe0] sm:$0xff] %vm431, %v770
  %803 = vst.msk [vmem:[%s4 + $0xe8] sm:$0xff] %vm431, %v771
  %804 = vst.msk [vmem:[%s4 + $0xf0] sm:$0xff] %vm431, %v772
  %805 = vst.msk [vmem:[%s4 + $0xf8] sm:$0xff] %vm431, %v773
  // Predicated region
  $region18: #{_lambda_.9} parent=0 // pred_check
    _
  $region19: #{_lambda_.9} parent=0 // pred_check_branch
    %807 = sbr.rel (0) target = $region21
  $region20: #{_lambda_.9} parent=0 // pred_region
    _
  $region21: #{_lambda_.9} parent=0 // pred_fallthru
    _
  // Predicated region
  $region22: #{_lambda_.9} parent=0 // pred_check
    _
  $region23: #{_lambda_.9} parent=0 // pred_check_branch
    %809 = sbr.rel (0) target = $region25
  $region24: #{_lambda_.9} parent=0 // pred_region
    _
  $region25: #{_lambda_.9} parent=0 // pred_fallthru
    _

// kernel: _lambda_.10
$region0: #{_lambda_.10}
  #allocation0 [shape = 'u32[]', space=smem, size = 0x4, offset = 0x4, fixed_abs, tag = 'smem constant byte address 0x4 - core index']
  #allocation1 [shape = 'u32[144,128]{1,0:T(1,128)}', space=vmem, size = 0x12000, scoped, tag = 'internal scratch']
  %s0 = inlined_call_operand.vmem [shape: f32[1024,117], index: 0, kind: input, shape index: {}]
  %s1 = inlined_call_operand.vmem [shape: f32[117,32], index: 1, kind: input, shape index: {}]
  %s2 = inlined_call_operand.vmem [shape: f32[1024,32], index: 2, kind: output, shape index: {0}]
  %s3 = inlined_call_operand.vmem [shape: f32[2,32], index: 3, kind: output, shape index: {1}]
  %4 = xla_tuple %s2, %s3
  %s5 = sld [smem:[#allocation0]]
  $region53: #{_lambda_.10} parent=0
    _
  %s7 = ssub.s32 1, %s5
  %s8 = scalar_select 0, %s7, %s5
  loop: start=0, step=1, limit=6
  $region2: #{_lambda_.10} parent=0 // loop_pre_header
    _
  $region3: #{_lambda_.10} parent=0 // loop_header
    %s10 = sphi 0, %s14
    %p11 = scmp.ge.s32.totalorder %s10, 6
    %s20 = sphi 0, %s22
    %s23 = sphi 0, %s20
    %s24 = sphi 0, %s23
    %s40 = sphi 0, %s24
    %s44 = sphi 0, %s44
    %s46 = sphi 0, %s44
    %s47 = sphi 0, %s46
    %s61 = sphi 0, %s47
    %s67 = sphi 0, %s69
    %s70 = sphi 0, %s67
    %s71 = sphi 0, %s70
    %s87 = sphi 0, %s71
    %s91 = sphi 0, %s91
    %s93 = sphi 0, %s91
    %s94 = sphi 0, %s93
    %s108 = sphi 0, %s94
  $region4: #{_lambda_.10} parent=0 // loop_header_branch
    %13 = sbr.rel (%p11) target = $region8
  $region5: #{_lambda_.10} parent=0 // loop_body
    %s15 = ssub.s32 %s10, 1
    %s16 = ssub.s32 %s10, 2
    %s17 = sadd.s32 %s10, 1
    %s18 = ssub.s32 %s10, %s17
    %p19 = scmp.eq.s32.totalorder %s18, 0
    %s21 = sadd.s32 %s20, 1
    %s22 = scalar_select %p19, %s20, %s21
    %p25 = pneg %p19
    %p26 = scmp.eq.s32.totalorder %s10, 3
    %p27 = por %p25, %p26
    %p28 = scmp.ne.s32.totalorder %s20, %s23
    %p29 = scmp.eq.s32.totalorder %s10, 0
    %p30 = por %p28, %p29
    %p31 = scmp.ne.s32.totalorder %s20, %s23
    %p32 = scmp.eq.s32.totalorder %s15, 3
    %p33 = por %p31, %p32
    %p34 = scmp.ne.s32.totalorder %s23, %s24
    %p35 = scmp.eq.s32.totalorder %s15, 0
    %p36 = por %p34, %p35
    %p37 = scmp.ne.s32.totalorder %s23, %s24
    %p38 = scmp.eq.s32.totalorder %s16, 3
    %p39 = por %p37, %p38
    %p41 = scmp.ne.s32.totalorder %s24, %s40
    %p42 = scmp.eq.s32.totalorder %s16, 0
    %p43 = por %p41, %p42
    %s45 = sadd.s32 %s44, 1
    %p48 = scmp.eq.s32.totalorder %s10, 3
    %p49 = scmp.ne.s32.totalorder %s44, %s46
    %p50 = scmp.eq.s32.totalorder %s10, 0
    %p51 = por %p49, %p50
    %p52 = scmp.ne.s32.totalorder %s44, %s46
    %p53 = scmp.eq.s32.totalorder %s15, 3
    %p54 = por %p52, %p53
    %p55 = scmp.ne.s32.totalorder %s46, %s47
    %p56 = scmp.eq.s32.totalorder %s15, 0
    %p57 = por %p55, %p56
    %p58 = scmp.ne.s32.totalorder %s46, %s47
    %p59 = scmp.eq.s32.totalorder %s16, 3
    %p60 = por %p58, %p59
    %p62 = scmp.ne.s32.totalorder %s47, %s61
    %p63 = scmp.eq.s32.totalorder %s16, 0
    %p64 = por %p62, %p63
    %s65 = ssub.s32 %s10, %s17
    %p66 = scmp.eq.s32.totalorder %s65, 0
    %s68 = sadd.s32 %s67, 1
    %s69 = scalar_select %p66, %s67, %s68
    %p72 = pneg %p66
    %p73 = scmp.eq.s32.totalorder %s10, 3
    %p74 = por %p72, %p73
    %p75 = scmp.ne.s32.totalorder %s67, %s70
    %p76 = scmp.eq.s32.totalorder %s10, 0
    %p77 = por %p75, %p76
    %p78 = scmp.ne.s32.totalorder %s67, %s70
    %p79 = scmp.eq.s32.totalorder %s15, 3
    %p80 = por %p78, %p79
    %p81 = scmp.ne.s32.totalorder %s70, %s71
    %p82 = scmp.eq.s32.totalorder %s15, 0
    %p83 = por %p81, %p82
    %p84 = scmp.ne.s32.totalorder %s70, %s71
    %p85 = scmp.eq.s32.totalorder %s16, 3
    %p86 = por %p84, %p85
    %p88 = scmp.ne.s32.totalorder %s71, %s87
    %p89 = scmp.eq.s32.totalorder %s16, 0
    %p90 = por %p88, %p89
    %s92 = sadd.s32 %s91, 1
    %p95 = scmp.eq.s32.totalorder %s10, 3
    %p96 = scmp.ne.s32.totalorder %s91, %s93
    %p97 = scmp.eq.s32.totalorder %s10, 0
    %p98 = por %p96, %p97
    %p99 = scmp.ne.s32.totalorder %s91, %s93
    %p100 = scmp.eq.s32.totalorder %s15, 3
    %p101 = por %p99, %p100
    %p102 = scmp.ne.s32.totalorder %s93, %s94
    %p103 = scmp.eq.s32.totalorder %s15, 0
    %p104 = por %p102, %p103
    %p105 = scmp.ne.s32.totalorder %s93, %s94
    %p106 = scmp.eq.s32.totalorder %s16, 3
    %p107 = por %p105, %p106
    %p109 = scmp.ne.s32.totalorder %s94, %s108
    %p110 = scmp.eq.s32.totalorder %s16, 0
    %p111 = por %p109, %p110
    %p112 = scmp.le.s32.totalorder 1, %s10
    %p113 = scmp.lt.s32.totalorder %s10, 5
    %p114 = pnand %p112, %p113
    %p115 = pneg %p114
    // Predicated region
    $region9: #{_lambda_.10} parent=5 // pred_check
      _
    $region10: #{_lambda_.10} parent=5 // pred_check_branch
      %117 = sbr.rel (%p114) target = $region12
    $region11: #{_lambda_.10} parent=5 // pred_region
      %s118 = ssub.s32 %s10, 1
      // Predicated region
      $region13: #{_lambda_.10} parent=11 // pred_check
        %p119 = pneg %p57
      $region14: #{_lambda_.10} parent=11 // pred_check_branch
        %121 = sbr.rel (%p119) target = $region16
      $region15: #{_lambda_.10} parent=11 // pred_region
        _
      $region16: #{_lambda_.10} parent=11 // pred_fallthru
        _
    $region12: #{_lambda_.10} parent=5 // pred_fallthru
      _
    %p122 = scmp.lt.s32.totalorder %s10, 4
    // Predicated region
    $region17: #{_lambda_.10} parent=5 // pred_check
      %p123 = pneg %p122
    $region18: #{_lambda_.10} parent=5 // pred_check_branch
      %125 = sbr.rel (%p123) target = $region20
    $region19: #{_lambda_.10} parent=5 // pred_region
      // Predicated region
      $region21: #{_lambda_.10} parent=19 // pred_check
        %p126 = pneg %p30
      $region22: #{_lambda_.10} parent=19 // pred_check_branch
        %128 = sbr.rel (%p126) target = $region24
      $region23: #{_lambda_.10} parent=19 // pred_region
        %s129 = smul.u32 32, %s10
        %p130 = scmp.lt.s32.totalorder %s129, 127
        %s131 = scalar_select %p130, %s129, 127
        %s132 = smul.addr %s131, 8
        %s133 = scalar_lea.vmem %s0, %s132
        %s134 = smul.u32 32, %s10
      $region24: #{_lambda_.10} parent=19 // pred_fallthru
        _
    $region20: #{_lambda_.10} parent=5 // pred_fallthru
      _
    %p135 = scmp.le.s32.totalorder 1, %s10
    %p136 = scmp.lt.s32.totalorder %s10, 5
    %p137 = pnand %p135, %p136
    %p138 = pneg %p137
    // Predicated region
    $region25: #{_lambda_.10} parent=5 // pred_check
      _
    $region26: #{_lambda_.10} parent=5 // pred_check_branch
      %140 = sbr.rel (%p137) target = $region28
    $region27: #{_lambda_.10} parent=5 // pred_region
      %s141 = ssub.s32 %s10, 1
      %s142 = smul.u32 32, %s15
      %p143 = scmp.lt.s32.totalorder %s142, 127
      %s144 = scalar_select %p143, %s142, 127
      %s145 = smul.addr %s144, 8
      %s146 = scalar_lea.vmem %s0, %s145
      %p147 = pneg %p36
      %p148 = pneg %p33
      %p149 = pneg %p57
      %p150 = pneg %p54
      %p151 = pneg %p83
      %p152 = pneg %p80
      %s153 = smul.u32 32, %s15
      %p154 = scmp.lt.s32.totalorder %s153, 127
      %s155 = scalar_select %p154, %s153, 127
      %s156 = smul.addr %s155, 8
      %s157 = scalar_lea.vmem %s2, %s156
      %p158 = pneg %p104
      %p159 = pneg %p101
      %s160 = smul.u32 32, %s15
      %p161 = scmp.lt.s32.totalorder %s160, 127
      %s162 = scalar_select %p161, %s160, 127
      %s163 = smul.addr %s162, 8
      %s164 = scalar_lea.vmem %s0, %s163
      %s165 = smul.u32 32, %s15
      %s166 = smul.u32 32, %s15
      %p167 = scmp.lt.s32.totalorder %s166, 127
      %s168 = scalar_select %p167, %s166, 127
      %s169 = smul.addr %s168, 8
      %s170 = scalar_lea.vmem %s2, %s169
      %s171 = smul.u32 32, %s15
      %p172 = scmp.eq.s32.totalorder %s15, 0
      // Predicated region
      $region29: #{_lambda_.10} parent=27 // pred_check
        %p173 = pneg %p172
      $region30: #{_lambda_.10} parent=27 // pred_check_branch
        %175 = sbr.rel (%p173) target = $region32
      $region31: #{_lambda_.10} parent=27 // pred_region
        %vm176 = vcmask 254976
        %177 = vst.msk [vmem:[%s3] sm:$0x3] %vm176, 0.0
      $region32: #{_lambda_.10} parent=27 // pred_fallthru
        _
      %v178 = vld [vmem:[%s164] sm:$0xff]
      %v179 = vld [vmem:[%s164 + $0x8] sm:$0xff]
      %v180 = vld [vmem:[%s164 + $0x10] sm:$0xff]
      %v181 = vld [vmem:[%s164 + $0x18] sm:$0xff]
      %v182 = vld [vmem:[%s164 + $0x20] sm:$0xff]
      %v183 = vld [vmem:[%s164 + $0x28] sm:$0xff]
      %v184 = vld [vmem:[%s164 + $0x30] sm:$0xff]
      %v185 = vld [vmem:[%s164 + $0x38] sm:$0xff]
      %v186 = vld [vmem:[%s164 + $0x40] sm:$0xff]
      %v187 = vld [vmem:[%s164 + $0x48] sm:$0xff]
      %v188 = vld [vmem:[%s164 + $0x50] sm:$0xff]
      %v189 = vld [vmem:[%s164 + $0x58] sm:$0xff]
      %v190 = vld [vmem:[%s164 + $0x60] sm:$0xff]
      %v191 = vld [vmem:[%s164 + $0x68] sm:$0xff]
      %v192 = vld [vmem:[%s164 + $0x70] sm:$0xff]
      %v193 = vld [vmem:[%s164 + $0x78] sm:$0xff]
      %v194 = vld [vmem:[%s164 + $0x80] sm:$0xff]
      %v195 = vld [vmem:[%s164 + $0x88] sm:$0xff]
      %v196 = vld [vmem:[%s164 + $0x90] sm:$0xff]
      %v197 = vld [vmem:[%s164 + $0x98] sm:$0xff]
      %v198 = vld [vmem:[%s164 + $0xa0] sm:$0xff]
      %v199 = vld [vmem:[%s164 + $0xa8] sm:$0xff]
      %v200 = vld [vmem:[%s164 + $0xb0] sm:$0xff]
      %v201 = vld [vmem:[%s164 + $0xb8] sm:$0xff]
      %v202 = vld [vmem:[%s164 + $0xc0] sm:$0xff]
      %v203 = vld [vmem:[%s164 + $0xc8] sm:$0xff]
      %v204 = vld [vmem:[%s164 + $0xd0] sm:$0xff]
      %v205 = vld [vmem:[%s164 + $0xd8] sm:$0xff]
      %v206 = vld [vmem:[%s164 + $0xe0] sm:$0xff]
      %v207 = vld [vmem:[%s164 + $0xe8] sm:$0xff]
      %v208 = vld [vmem:[%s164 + $0xf0] sm:$0xff]
      %v209 = vld [vmem:[%s164 + $0xf8] sm:$0xff]
      %v210 = vld [vmem:[%s1] sm:$0xff]
      %v211 = vld [vmem:[%s1 + $0x8] sm:$0xff]
      %v212 = vld [vmem:[%s1 + $0x10] sm:$0xff]
      %v213 = vld [vmem:[%s1 + $0x18] sm:$0xff]
      %v214 = vld [vmem:[%s1 + $0x20] sm:$0xff]
      %v215 = vld [vmem:[%s1 + $0x28] sm:$0xff]
      %v216 = vld [vmem:[%s1 + $0x30] sm:$0xff]
      %v217 = vld [vmem:[%s1 + $0x38] sm:$0xff]
      %v218 = vld [vmem:[%s1 + $0x40] sm:$0xff]
      %v219 = vld [vmem:[%s1 + $0x48] sm:$0xff]
      %v220 = vld [vmem:[%s1 + $0x50] sm:$0xff]
      %v221 = vld [vmem:[%s1 + $0x58] sm:$0xff]
      %v222 = vld [vmem:[%s1 + $0x60] sm:$0xff]
      %v223 = vld [vmem:[%s1 + $0x68] sm:$0xff]
      %v224 = vld [vmem:[%s1 + $0x70] sm:$0x1f]
      %vm225 = vcmask 957440
      %v227 = vsel %vm225, %v178, 0
      %v230 = vsel %vm225, %v179, 0
      %v233 = vsel %vm225, %v180, 0
      %v236 = vsel %vm225, %v181, 0
      %v239 = vsel %vm225, %v182, 0
      %v242 = vsel %vm225, %v183, 0
      %v245 = vsel %vm225, %v184, 0
      %v248 = vsel %vm225, %v185, 0
      %v251 = vsel %vm225, %v186, 0
      %v254 = vsel %vm225, %v187, 0
      %v257 = vsel %vm225, %v188, 0
      %v260 = vsel %vm225, %v189, 0
      %v263 = vsel %vm225, %v190, 0
      %v266 = vsel %vm225, %v191, 0
      %v269 = vsel %vm225, %v192, 0
      %v272 = vsel %vm225, %v193, 0
      %v275 = vsel %vm225, %v194, 0
      %v278 = vsel %vm225, %v195, 0
      %v281 = vsel %vm225, %v196, 0
      %v284 = vsel %vm225, %v197, 0
      %v287 = vsel %vm225, %v198, 0
      %v290 = vsel %vm225, %v199, 0
      %v293 = vsel %vm225, %v200, 0
      %v296 = vsel %vm225, %v201, 0
      %v299 = vsel %vm225, %v202, 0
      %v302 = vsel %vm225, %v203, 0
      %v305 = vsel %vm225, %v204, 0
      %v308 = vsel %vm225, %v205, 0
      %v311 = vsel %vm225, %v206, 0
      %v314 = vsel %vm225, %v207, 0
      %v317 = vsel %vm225, %v208, 0
      %v320 = vsel %vm225, %v209, 0
      %vm322 = vcmask 1044480
      %v324 = vsel %vm322, %v224, 0
      %326 = vmatprep.subr.mxu0 0.0
      %327 = vmatpush1.msra.mxu0 %v210
      %328 = vmatprep.subr.mxu0 0.0
      %329 = vmatpush1.msra.mxu0 %v211
      %330 = vmatprep.subr.mxu0 0.0
      %331 = vmatpush1.msra.mxu0 %v212
      %332 = vmatprep.subr.mxu0 0.0
      %333 = vmatpush1.msra.mxu0 %v213
      %334 = vmatprep.subr.mxu0 0.0
      %335 = vmatpush1.msra.mxu0 %v214
      %336 = vmatprep.subr.mxu0 0.0
      %337 = vmatpush1.msra.mxu0 %v215
      %338 = vmatprep.subr.mxu0 0.0
      %339 = vmatpush1.msra.mxu0 %v216
      %340 = vmatprep.subr.mxu0 0.0
      %341 = vmatpush1.msra.mxu0 %v217
      %342 = vmatprep.subr.mxu0 0.0
      %343 = vmatpush1.msra.mxu0 %v218
      %344 = vmatprep.subr.mxu0 0.0
      %345 = vmatpush1.msra.mxu0 %v219
      %346 = vmatprep.subr.mxu0 0.0
      %347 = vmatpush1.msra.mxu0 %v220
      %348 = vmatprep.subr.mxu0 0.0
      %349 = vmatpush1.msra.mxu0 %v221
      %350 = vmatprep.subr.mxu0 0.0
      %351 = vmatpush1.msra.mxu0 %v222
      %352 = vmatprep.subr.mxu0 0.0
      %353 = vmatpush1.msra.mxu0 %v223
      %354 = vmatprep.subr.mxu0 0.0
      %355 = vmatpush1.msra.mxu0 %v324
      %356 = vmatprep.subr.mxu0 0.0
      %357 = vmatpush1.msra.mxu0 0.0
      %358 = vmatprep.subr.mxu0 0.0
      %359 = vmatpush1.msra.mxu0 0.0
      %360 = vmatprep.subr.mxu0 0.0
      %361 = vmatpush1.msra.mxu0 0.0
      %362 = vmatprep.subr.mxu0 0.0
      %363 = vmatpush1.msra.mxu0 0.0
      %364 = vmatprep.subr.mxu0 0.0
      %365 = vmatpush1.msra.mxu0 0.0
      %366 = vmatprep.subr.mxu0 0.0
      %367 = vmatpush1.msra.mxu0 0.0
      %368 = vmatprep.subr.mxu0 0.0
      %369 = vmatpush1.msra.mxu0 0.0
      %370 = vmatprep.subr.mxu0 0.0
      %371 = vmatpush1.msra.mxu0 0.0
      %372 = vmatprep.subr.mxu0 0.0
      %373 = vmatpush1.msra.mxu0 0.0
      %374 = vmatprep.subr.mxu0 0.0
      %375 = vmatpush1.msra.mxu0 0.0
      %376 = vmatprep.subr.mxu0 0.0
      %377 = vmatpush1.msra.mxu0 0.0
      %378 = vmatprep.subr.mxu0 0.0
      %379 = vmatpush1.msra.mxu0 0.0
      %380 = vmatprep.subr.mxu0 0.0
      %381 = vmatpush1.msra.mxu0 0.0
      %382 = vmatprep.subr.mxu0 0.0
      %383 = vmatpush1.msra.mxu0 0.0
      %384 = vmatprep.subr.mxu0 0.0
      %385 = vmatpush1.msra.mxu0 0.0
      %386 = vmatprep.subr.mxu0 0.0
      %387 = vmatpush1.msra.mxu0 0.0
      %388 = vmatprep.subr.mxu0 0.0
      %389 = vmatpush1.msra.mxu0 0.0
      %390 = vmatprep.mubr.f32.mxu0 0.0
      %391 = vmatmul.mubr.f32.gmra.mrb[0].mxu0 %v227
      %v392 = vpop.f32.mrb[0].mxu0
      %v393 = vadd.f32 0.0, %v392
      %v394 = vpop.f32.mrb[0].mxu0
      %395 = vmatprep.mubr.f32.mxu0 0.0
      %396 = vmatmul.mubr.f32.gmra.mrb[0].mxu0 %v230
      %v397 = vpop.f32.mrb[0].mxu0
      %v398 = vadd.f32 0.0, %v397
      %v399 = vpop.f32.mrb[0].mxu0
      %400 = vmatprep.mubr.f32.mxu0 0.0
      %401 = vmatmul.mubr.f32.gmra.mrb[0].mxu0 %v233
      %v402 = vpop.f32.mrb[0].mxu0
      %v403 = vadd.f32 0.0, %v402
      %v404 = vpop.f32.mrb[0].mxu0
      %405 = vmatprep.mubr.f32.mxu0 0.0
      %406 = vmatmul.mubr.f32.gmra.mrb[0].mxu0 %v236
      %v407 = vpop.f32.mrb[0].mxu0
      %v408 = vadd.f32 0.0, %v407
      %v409 = vpop.f32.mrb[0].mxu0
      %410 = vmatprep.mubr.f32.mxu0 0.0
      %411 = vmatmul.mubr.f32.gmra.mrb[0].mxu0 %v239
      %v412 = vpop.f32.mrb[0].mxu0
      %v413 = vadd.f32 0.0, %v412
      %v414 = vpop.f32.mrb[0].mxu0
      %415 = vmatprep.mubr.f32.mxu0 0.0
      %416 = vmatmul.mubr.f32.gmra.mrb[0].mxu0 %v242
      %v417 = vpop.f32.mrb[0].mxu0
      %v418 = vadd.f32 0.0, %v417
      %v419 = vpop.f32.mrb[0].mxu0
      %420 = vmatprep.mubr.f32.mxu0 0.0
      %421 = vmatmul.mubr.f32.gmra.mrb[0].mxu0 %v245
      %v422 = vpop.f32.mrb[0].mxu0
      %v423 = vadd.f32 0.0, %v422
      %v424 = vpop.f32.mrb[0].mxu0
      %425 = vmatprep.mubr.f32.mxu0 0.0
      %426 = vmatmul.mubr.f32.gmra.mrb[0].mxu0 %v248
      %v427 = vpop.f32.mrb[0].mxu0
      %v428 = vadd.f32 0.0, %v427
      %v429 = vpop.f32.mrb[0].mxu0
      %430 = vmatprep.mubr.f32.mxu0 0.0
      %431 = vmatmul.mubr.f32.gmra.mrb[0].mxu0 %v251
      %v432 = vpop.f32.mrb[0].mxu0
      %v433 = vadd.f32 0.0, %v432
      %v434 = vpop.f32.mrb[0].mxu0
      %435 = vmatprep.mubr.f32.mxu0 0.0
      %436 = vmatmul.mubr.f32.gmra.mrb[0].mxu0 %v254
      %v437 = vpop.f32.mrb[0].mxu0
      %v438 = vadd.f32 0.0, %v437
      %v439 = vpop.f32.mrb[0].mxu0
      %440 = vmatprep.mubr.f32.mxu0 0.0
      %441 = vmatmul.mubr.f32.gmra.mrb[0].mxu0 %v257
      %v442 = vpop.f32.mrb[0].mxu0
      %v443 = vadd.f32 0.0, %v442
      %v444 = vpop.f32.mrb[0].mxu0
      %445 = vmatprep.mubr.f32.mxu0 0.0
      %446 = vmatmul.mubr.f32.gmra.mrb[0].mxu0 %v260
      %v447 = vpop.f32.mrb[0].mxu0
      %v448 = vadd.f32 0.0, %v447
      %v449 = vpop.f32.mrb[0].mxu0
      %450 = vmatprep.mubr.f32.mxu0 0.0
      %451 = vmatmul.mubr.f32.gmra.mrb[0].mxu0 %v263
      %v452 = vpop.f32.mrb[0].mxu0
      %v453 = vadd.f32 0.0, %v452
      %v454 = vpop.f32.mrb[0].mxu0
      %455 = vmatprep.mubr.f32.mxu0 0.0
      %456 = vmatmul.mubr.f32.gmra.mrb[0].mxu0 %v266
      %v457 = vpop.f32.mrb[0].mxu0
      %v458 = vadd.f32 0.0, %v457
      %v459 = vpop.f32.mrb[0].mxu0
      %460 = vmatprep.mubr.f32.mxu0 0.0
      %461 = vmatmul.mubr.f32.gmra.mrb[0].mxu0 %v269
      %v462 = vpop.f32.mrb[0].mxu0
      %v463 = vadd.f32 0.0, %v462
      %v464 = vpop.f32.mrb[0].mxu0
      %465 = vmatprep.mubr.f32.mxu0 0.0
      %466 = vmatmul.mubr.f32.gmra.mrb[0].mxu0 %v272
      %v467 = vpop.f32.mrb[0].mxu0
      %v468 = vadd.f32 0.0, %v467
      %v469 = vpop.f32.mrb[0].mxu0
      %470 = vmatprep.mubr.f32.mxu0 0.0
      %471 = vmatmul.mubr.f32.gmra.mrb[0].mxu0 %v275
      %v472 = vpop.f32.mrb[0].mxu0
      %v473 = vadd.f32 0.0, %v472
      %v474 = vpop.f32.mrb[0].mxu0
      %475 = vmatprep.mubr.f32.mxu0 0.0
      %476 = vmatmul.mubr.f32.gmra.mrb[0].mxu0 %v278
      %v477 = vpop.f32.mrb[0].mxu0
      %v478 = vadd.f32 0.0, %v477
      %v479 = vpop.f32.mrb[0].mxu0
      %480 = vmatprep.mubr.f32.mxu0 0.0
      %481 = vmatmul.mubr.f32.gmra.mrb[0].mxu0 %v281
      %v482 = vpop.f32.mrb[0].mxu0
      %v483 = vadd.f32 0.0, %v482
      %v484 = vpop.f32.mrb[0].mxu0
      %485 = vmatprep.mubr.f32.mxu0 0.0
      %486 = vmatmul.mubr.f32.gmra.mrb[0].mxu0 %v284
      %v487 = vpop.f32.mrb[0].mxu0
      %v488 = vadd.f32 0.0, %v487
      %v489 = vpop.f32.mrb[0].mxu0
      %490 = vmatprep.mubr.f32.mxu0 0.0
      %491 = vmatmul.mubr.f32.gmra.mrb[0].mxu0 %v287
      %v492 = vpop.f32.mrb[0].mxu0
      %v493 = vadd.f32 0.0, %v492
      %v494 = vpop.f32.mrb[0].mxu0
      %495 = vmatprep.mubr.f32.mxu0 0.0
      %496 = vmatmul.mubr.f32.gmra.mrb[0].mxu0 %v290
      %v497 = vpop.f32.mrb[0].mxu0
      %v498 = vadd.f32 0.0, %v497
      %v499 = vpop.f32.mrb[0].mxu0
      %500 = vmatprep.mubr.f32.mxu0 0.0
      %501 = vmatmul.mubr.f32.gmra.mrb[0].mxu0 %v293
      %v502 = vpop.f32.mrb[0].mxu0
      %v503 = vadd.f32 0.0, %v502
      %v504 = vpop.f32.mrb[0].mxu0
      %505 = vmatprep.mubr.f32.mxu0 0.0
      %506 = vmatmul.mubr.f32.gmra.mrb[0].mxu0 %v296
      %v507 = vpop.f32.mrb[0].mxu0
      %v508 = vadd.f32 0.0, %v507
      %v509 = vpop.f32.mrb[0].mxu0
      %510 = vmatprep.mubr.f32.mxu0 0.0
      %511 = vmatmul.mubr.f32.gmra.mrb[0].mxu0 %v299
      %v512 = vpop.f32.mrb[0].mxu0
      %v513 = vadd.f32 0.0, %v512
      %v514 = vpop.f32.mrb[0].mxu0
      %515 = vmatprep.mubr.f32.mxu0 0.0
      %516 = vmatmul.mubr.f32.gmra.mrb[0].mxu0 %v302
      %v517 = vpop.f32.mrb[0].mxu0
      %v518 = vadd.f32 0.0, %v517
      %v519 = vpop.f32.mrb[0].mxu0
      %520 = vmatprep.mubr.f32.mxu0 0.0
      %521 = vmatmul.mubr.f32.gmra.mrb[0].mxu0 %v305
      %v522 = vpop.f32.mrb[0].mxu0
      %v523 = vadd.f32 0.0, %v522
      %v524 = vpop.f32.mrb[0].mxu0
      %525 = vmatprep.mubr.f32.mxu0 0.0
      %526 = vmatmul.mubr.f32.gmra.mrb[0].mxu0 %v308
      %v527 = vpop.f32.mrb[0].mxu0
      %v528 = vadd.f32 0.0, %v527
      %v529 = vpop.f32.mrb[0].mxu0
      %530 = vmatprep.mubr.f32.mxu0 0.0
      %531 = vmatmul.mubr.f32.gmra.mrb[0].mxu0 %v311
      %v532 = vpop.f32.mrb[0].mxu0
      %v533 = vadd.f32 0.0, %v532
      %v534 = vpop.f32.mrb[0].mxu0
      %535 = vmatprep.mubr.f32.mxu0 0.0
      %536 = vmatmul.mubr.f32.gmra.mrb[0].mxu0 %v314
      %v537 = vpop.f32.mrb[0].mxu0
      %v538 = vadd.f32 0.0, %v537
      %v539 = vpop.f32.mrb[0].mxu0
      %540 = vmatprep.mubr.f32.mxu0 0.0
      %541 = vmatmul.mubr.f32.gmra.mrb[0].mxu0 %v317
      %v542 = vpop.f32.mrb[0].mxu0
      %v543 = vadd.f32 0.0, %v542
      %v544 = vpop.f32.mrb[0].mxu0
      %545 = vmatprep.mubr.f32.mxu0 0.0
      %546 = vmatmul.mubr.f32.gmra.mrb[0].mxu0 %v320
      %v547 = vpop.f32.mrb[0].mxu0
      %v548 = vadd.f32 0.0, %v547
      %v549 = vpop.f32.mrb[0].mxu0
      %550 = vdwg.mxu0
      %vm551 = vcmask 261120
      %552 = vst.msk [vmem:[%s170] sm:$0xff] %vm551, %v393
      %553 = vst.msk [vmem:[%s170 + $0x8] sm:$0xff] %vm551, %v398
      %554 = vst.msk [vmem:[%s170 + $0x10] sm:$0xff] %vm551, %v403
      %555 = vst.msk [vmem:[%s170 + $0x18] sm:$0xff] %vm551, %v408
      %556 = vst.msk [vmem:[%s170 + $0x20] sm:$0xff] %vm551, %v413
      %557 = vst.msk [vmem:[%s170 + $0x28] sm:$0xff] %vm551, %v418
      %558 = vst.msk [vmem:[%s170 + $0x30] sm:$0xff] %vm551, %v423
      %559 = vst.msk [vmem:[%s170 + $0x38] sm:$0xff] %vm551, %v428
      %560 = vst.msk [vmem:[%s170 + $0x40] sm:$0xff] %vm551, %v433
      %561 = vst.msk [vmem:[%s170 + $0x48] sm:$0xff] %vm551, %v438
      %562 = vst.msk [vmem:[%s170 + $0x50] sm:$0xff] %vm551, %v443
      %563 = vst.msk [vmem:[%s170 + $0x58] sm:$0xff] %vm551, %v448
      %564 = vst.msk [vmem:[%s170 + $0x60] sm:$0xff] %vm551, %v453
      %565 = vst.msk [vmem:[%s170 + $0x68] sm:$0xff] %vm551, %v458
      %566 = vst.msk [vmem:[%s170 + $0x70] sm:$0xff] %vm551, %v463
      %567 = vst.msk [vmem:[%s170 + $0x78] sm:$0xff] %vm551, %v468
      %568 = vst.msk [vmem:[%s170 + $0x80] sm:$0xff] %vm551, %v473
      %569 = vst.msk [vmem:[%s170 + $0x88] sm:$0xff] %vm551, %v478
      %570 = vst.msk [vmem:[%s170 + $0x90] sm:$0xff] %vm551, %v483
      %571 = vst.msk [vmem:[%s170 + $0x98] sm:$0xff] %vm551, %v488
      %572 = vst.msk [vmem:[%s170 + $0xa0] sm:$0xff] %vm551, %v493
      %573 = vst.msk [vmem:[%s170 + $0xa8] sm:$0xff] %vm551, %v498
      %574 = vst.msk [vmem:[%s170 + $0xb0] sm:$0xff] %vm551, %v503
      %575 = vst.msk [vmem:[%s170 + $0xb8] sm:$0xff] %vm551, %v508
      %576 = vst.msk [vmem:[%s170 + $0xc0] sm:$0xff] %vm551, %v513
      %577 = vst.msk [vmem:[%s170 + $0xc8] sm:$0xff] %vm551, %v518
      %578 = vst.msk [vmem:[%s170 + $0xd0] sm:$0xff] %vm551, %v523
      %579 = vst.msk [vmem:[%s170 + $0xd8] sm:$0xff] %vm551, %v528
      %580 = vst.msk [vmem:[%s170 + $0xe0] sm:$0xff] %vm551, %v533
      %581 = vst.msk [vmem:[%s170 + $0xe8] sm:$0xff] %vm551, %v538
      %582 = vst.msk [vmem:[%s170 + $0xf0] sm:$0xff] %vm551, %v543
      %583 = vst.msk [vmem:[%s170 + $0xf8] sm:$0xff] %vm551, %v548
      %v584 = vld [vmem:[%s3] sm:$0x3]
      %v585 = vsel %vm551, %v393, 0.0
      %v586 = vsel %vm551, %v398, 0.0
      %v587 = vadd.f32 %v585, %v586
      %v588 = vsel %vm551, %v403, 0.0
      %v589 = vadd.f32 %v587, %v588
      %v590 = vsel %vm551, %v408, 0.0
      %v591 = vadd.f32 %v589, %v590
      %v592 = vsel %vm551, %v413, 0.0
      %v593 = vadd.f32 %v591, %v592
      %v594 = vsel %vm551, %v418, 0.0
      %v595 = vadd.f32 %v593, %v594
      %v596 = vsel %vm551, %v423, 0.0
      %v597 = vadd.f32 %v595, %v596
      %v598 = vsel %vm551, %v428, 0.0
      %v599 = vadd.f32 %v597, %v598
      %v600 = vsel %vm551, %v433, 0.0
      %v601 = vadd.f32 %v599, %v600
      %v602 = vsel %vm551, %v438, 0.0
      %v603 = vadd.f32 %v601, %v602
      %v604 = vsel %vm551, %v443, 0.0
      %v605 = vadd.f32 %v603, %v604
      %v606 = vsel %vm551, %v448, 0.0
      %v607 = vadd.f32 %v605, %v606
      %v608 = vsel %vm551, %v453, 0.0
      %v609 = vadd.f32 %v607, %v608
      %v610 = vsel %vm551, %v458, 0.0
      %v611 = vadd.f32 %v609, %v610
      %v612 = vsel %vm551, %v463, 0.0
      %v613 = vadd.f32 %v611, %v612
      %v614 = vsel %vm551, %v468, 0.0
      %v615 = vadd.f32 %v613, %v614
      %v616 = vsel %vm551, %v473, 0.0
      %v617 = vadd.f32 %v615, %v616
      %v618 = vsel %vm551, %v478, 0.0
      %v619 = vadd.f32 %v617, %v618
      %v620 = vsel %vm551, %v483, 0.0
      %v621 = vadd.f32 %v619, %v620
      %v622 = vsel %vm551, %v488, 0.0
      %v623 = vadd.f32 %v621, %v622
      %v624 = vsel %vm551, %v493, 0.0
      %v625 = vadd.f32 %v623, %v624
      %v626 = vsel %vm551, %v498, 0.0
      %v627 = vadd.f32 %v625, %v626
      %v628 = vsel %vm551, %v503, 0.0
      %v629 = vadd.f32 %v627, %v628
      %v630 = vsel %vm551, %v508, 0.0
      %v631 = vadd.f32 %v629, %v630
      %v632 = vsel %vm551, %v513, 0.0
      %v633 = vadd.f32 %v631, %v632
      %v634 = vsel %vm551, %v518, 0.0
      %v635 = vadd.f32 %v633, %v634
      %v636 = vsel %vm551, %v523, 0.0
      %v637 = vadd.f32 %v635, %v636
      %v638 = vsel %vm551, %v528, 0.0
      %v639 = vadd.f32 %v637, %v638
      %v640 = vsel %vm551, %v533, 0.0
      %v641 = vadd.f32 %v639, %v640
      %v642 = vsel %vm551, %v538, 0.0
      %v643 = vadd.f32 %v641, %v642
      %v644 = vsel %vm551, %v543, 0.0
      %v645 = vadd.f32 %v643, %v644
      %v646 = vsel %vm551, %v548, 0.0
      %v647 = vadd.f32 %v645, %v646
      %v648 = vrot.slane %v647, 4
      %v649 = vadd.f32 %v647, %v648
      %v650 = vrot.slane %v649, 2
      %v651 = vadd.f32 %v649, %v650
      %v652 = vrot.slane %v651, 1
      %v653 = vadd.f32 %v651, %v652
      %v654 = vmul.f32 %v393, %v393
      %v655 = vmul.f32 %v398, %v398
      %v656 = vmul.f32 %v403, %v403
      %v657 = vmul.f32 %v408, %v408
      %v658 = vmul.f32 %v413, %v413
      %v659 = vmul.f32 %v418, %v418
      %v660 = vmul.f32 %v423, %v423
      %v661 = vmul.f32 %v428, %v428
      %v662 = vmul.f32 %v433, %v433
      %v663 = vmul.f32 %v438, %v438
      %v664 = vmul.f32 %v443, %v443
      %v665 = vmul.f32 %v448, %v448
      %v666 = vmul.f32 %v453, %v453
      %v667 = vmul.f32 %v458, %v458
      %v668 = vmul.f32 %v463, %v463
      %v669 = vmul.f32 %v468, %v468
      %v670 = vmul.f32 %v473, %v473
      %v671 = vmul.f32 %v478, %v478
      %v672 = vmul.f32 %v483, %v483
      %v673 = vmul.f32 %v488, %v488
      %v674 = vmul.f32 %v493, %v493
      %v675 = vmul.f32 %v498, %v498
      %v676 = vmul.f32 %v503, %v503
      %v677 = vmul.f32 %v508, %v508
      %v678 = vmul.f32 %v513, %v513
      %v679 = vmul.f32 %v518, %v518
      %v680 = vmul.f32 %v523, %v523
      %v681 = vmul.f32 %v528, %v528
      %v682 = vmul.f32 %v533, %v533
      %v683 = vmul.f32 %v538, %v538
      %v684 = vmul.f32 %v543, %v543
      %v685 = vmul.f32 %v548, %v548
      %v686 = vsel %vm551, %v654, 0.0
      %v687 = vsel %vm551, %v655, 0.0
      %v688 = vadd.f32 %v686, %v687
      %v689 = vsel %vm551, %v656, 0.0
      %v690 = vadd.f32 %v688, %v689
      %v691 = vsel %vm551, %v657, 0.0
      %v692 = vadd.f32 %v690, %v691
      %v693 = vsel %vm551, %v658, 0.0
      %v694 = vadd.f32 %v692, %v693
      %v695 = vsel %vm551, %v659, 0.0
      %v696 = vadd.f32 %v694, %v695
      %v697 = vsel %vm551, %v660, 0.0
      %v698 = vadd.f32 %v696, %v697
      %v699 = vsel %vm551, %v661, 0.0
      %v700 = vadd.f32 %v698, %v699
      %v701 = vsel %vm551, %v662, 0.0
      %v702 = vadd.f32 %v700, %v701
      %v703 = vsel %vm551, %v663, 0.0
      %v704 = vadd.f32 %v702, %v703
      %v705 = vsel %vm551, %v664, 0.0
      %v706 = vadd.f32 %v704, %v705
      %v707 = vsel %vm551, %v665, 0.0
      %v708 = vadd.f32 %v706, %v707
      %v709 = vsel %vm551, %v666, 0.0
      %v710 = vadd.f32 %v708, %v709
      %v711 = vsel %vm551, %v667, 0.0
      %v712 = vadd.f32 %v710, %v711
      %v713 = vsel %vm551, %v668, 0.0
      %v714 = vadd.f32 %v712, %v713
      %v715 = vsel %vm551, %v669, 0.0
      %v716 = vadd.f32 %v714, %v715
      %v717 = vsel %vm551, %v670, 0.0
      %v718 = vadd.f32 %v716, %v717
      %v719 = vsel %vm551, %v671, 0.0
      %v720 = vadd.f32 %v718, %v719
      %v721 = vsel %vm551, %v672, 0.0
      %v722 = vadd.f32 %v720, %v721
      %v723 = vsel %vm551, %v673, 0.0
      %v724 = vadd.f32 %v722, %v723
      %v725 = vsel %vm551, %v674, 0.0
      %v726 = vadd.f32 %v724, %v725
      %v727 = vsel %vm551, %v675, 0.0
      %v728 = vadd.f32 %v726, %v727
      %v729 = vsel %vm551, %v676, 0.0
      %v730 = vadd.f32 %v728, %v729
      %v731 = vsel %vm551, %v677, 0.0
      %v732 = vadd.f32 %v730, %v731
      %v733 = vsel %vm551, %v678, 0.0
      %v734 = vadd.f32 %v732, %v733
      %v735 = vsel %vm551, %v679, 0.0
      %v736 = vadd.f32 %v734, %v735
      %v737 = vsel %vm551, %v680, 0.0
      %v738 = vadd.f32 %v736, %v737
      %v739 = vsel %vm551, %v681, 0.0
      %v740 = vadd.f32 %v738, %v739
      %v741 = vsel %vm551, %v682, 0.0
      %v742 = vadd.f32 %v740, %v741
      %v743 = vsel %vm551, %v683, 0.0
      %v744 = vadd.f32 %v742, %v743
      %v745 = vsel %vm551, %v684, 0.0
      %v746 = vadd.f32 %v744, %v745
      %v747 = vsel %vm551, %v685, 0.0
      %v748 = vadd.f32 %v746, %v747
      %v749 = vrot.slane %v748, 4
      %v750 = vadd.f32 %v748, %v749
      %v751 = vrot.slane %v750, 2
      %v752 = vadd.f32 %v750, %v751
      %v753 = vrot.slane %v752, 1
      %v754 = vadd.f32 %v752, %v753
      %vm755 = vcmask 1040384
      %v756 = vsel %vm755, %v653, %v754
      %v757 = vadd.f32 %v584, %v756
      %vm758 = vcmask 254976
      %759 = vst.msk [vmem:[%s3] sm:$0x3] %vm758, %v757
      %s760 = smul.u32 32, %s15
      %p761 = scmp.lt.s32.totalorder %s760, 127
      %s762 = scalar_select %p761, %s760, 127
      %s763 = smul.addr %s762, 8
      %s764 = scalar_lea.vmem %s2, %s763
      // Predicated region
      $region33: #{_lambda_.10} parent=27 // pred_check
        %p765 = pneg %p80
      $region34: #{_lambda_.10} parent=27 // pred_check_branch
        %767 = sbr.rel (%p765) target = $region36
      $region35: #{_lambda_.10} parent=27 // pred_region
        %s768 = smul.u32 32, %s15
      $region36: #{_lambda_.10} parent=27 // pred_fallthru
        _
      // Predicated region
      $region37: #{_lambda_.10} parent=27 // pred_check
        %p769 = pneg %p101
      $region38: #{_lambda_.10} parent=27 // pred_check_branch
        %771 = sbr.rel (%p769) target = $region40
      $region39: #{_lambda_.10} parent=27 // pred_region
        _
      $region40: #{_lambda_.10} parent=27 // pred_fallthru
        _
      // Predicated region
      $region41: #{_lambda_.10} parent=27 // pred_check
        %p772 = pneg %p101
      $region42: #{_lambda_.10} parent=27 // pred_check_branch
        %774 = sbr.rel (%p772) target = $region44
      $region43: #{_lambda_.10} parent=27 // pred_region
        _
      $region44: #{_lambda_.10} parent=27 // pred_fallthru
        _
    $region28: #{_lambda_.10} parent=5 // pred_fallthru
      _
    %p775 = scmp.le.s32.totalorder 2, %s10
    // Predicated region
    $region45: #{_lambda_.10} parent=5 // pred_check
      %p776 = pneg %p775
    $region46: #{_lambda_.10} parent=5 // pred_check_branch
      %778 = sbr.rel (%p776) target = $region48
    $region47: #{_lambda_.10} parent=5 // pred_region
      %s779 = ssub.s32 %s10, 2
      // Predicated region
      $region49: #{_lambda_.10} parent=47 // pred_check
        %p780 = pneg %p86
      $region50: #{_lambda_.10} parent=47 // pred_check_branch
        %782 = sbr.rel (%p780) target = $region52
      $region51: #{_lambda_.10} parent=47 // pred_region
        %s783 = smul.u32 32, %s16
        %p784 = scmp.lt.s32.totalorder %s783, 127
        %s785 = scalar_select %p784, %s783, 127
        %s786 = smul.addr %s785, 8
        %s787 = scalar_lea.vmem %s2, %s786
      $region52: #{_lambda_.10} parent=47 // pred_fallthru
        _
    $region48: #{_lambda_.10} parent=5 // pred_fallthru
      _
  $region6: #{_lambda_.10} parent=0 // loop_footer
    %s14 = sadd.s32 1, %s10
  $region7: #{_lambda_.10} parent=0 // loop_footer_branch
    %9 = sbr.rel target = $region3
  $region8: #{_lambda_.10} parent=0 // loop_exit
    _

// kernel: _lambda_.11
$region0: #{_lambda_.11}
  #allocation0 [shape = 'u32[]', space=smem, size = 0x4, offset = 0x4, fixed_abs, tag = 'smem constant byte address 0x4 - core index']
  #allocation1 [shape = 'u32[144,128]{1,0:T(1,128)}', space=vmem, size = 0x12000, scoped, tag = 'internal scratch']
  %s0 = inlined_call_operand.vmem [shape: f32[1024,32], index: 0, kind: input, shape index: {}]
  %s1 = inlined_call_operand.vmem [shape: f32[2,32], index: 1, kind: input, shape index: {}]
  %s2 = inlined_call_operand.vmem [shape: f32[1,32], index: 2, kind: input, shape index: {}]
  %s3 = inlined_call_operand.vmem [shape: f32[1,32], index: 3, kind: input, shape index: {}]
  %s4 = inlined_call_operand.vmem [shape: f32[32,12], index: 4, kind: input, shape index: {}]
  %s5 = inlined_call_operand.vmem [shape: f32[1,12], index: 5, kind: input, shape index: {}]
  %s6 = inlined_call_operand.vmem [shape: f32[1024,12], index: 6, kind: output, shape index: {}]
  %s7 = sld [smem:[#allocation0]]
  $region57: #{_lambda_.11} parent=0
    _
  %s9 = ssub.s32 1, %s7
  %s10 = scalar_select 0, %s9, %s7
  loop: start=0, step=1, limit=6
  $region2: #{_lambda_.11} parent=0 // loop_pre_header
    _
  $region3: #{_lambda_.11} parent=0 // loop_header
    %s12 = sphi 0, %s16
    %p13 = scmp.ge.s32.totalorder %s12, 6
    %s22 = sphi 0, %s24
    %s25 = sphi 0, %s22
    %s26 = sphi 0, %s25
    %s42 = sphi 0, %s26
    %s46 = sphi 0, %s46
    %s48 = sphi 0, %s46
    %s49 = sphi 0, %s48
    %s63 = sphi 0, %s49
    %s67 = sphi 0, %s67
    %s69 = sphi 0, %s67
    %s70 = sphi 0, %s69
    %s84 = sphi 0, %s70
    %s88 = sphi 0, %s88
    %s90 = sphi 0, %s88
    %s91 = sphi 0, %s90
    %s105 = sphi 0, %s91
    %s109 = sphi 0, %s109
    %s111 = sphi 0, %s109
    %s112 = sphi 0, %s111
    %s126 = sphi 0, %s112
    %s130 = sphi 0, %s130
    %s132 = sphi 0, %s130
    %s133 = sphi 0, %s132
    %s147 = sphi 0, %s133
    %s153 = sphi 0, %s155
    %s156 = sphi 0, %s153
    %s157 = sphi 0, %s156
    %s173 = sphi 0, %s157
  $region4: #{_lambda_.11} parent=0 // loop_header_branch
    %15 = sbr.rel (%p13) target = $region8
  $region5: #{_lambda_.11} parent=0 // loop_body
    %s17 = ssub.s32 %s12, 1
    %s18 = ssub.s32 %s12, 2
    %s19 = sadd.s32 %s12, 1
    %s20 = ssub.s32 %s12, %s19
    %p21 = scmp.eq.s32.totalorder %s20, 0
    %s23 = sadd.s32 %s22, 1
    %s24 = scalar_select %p21, %s22, %s23
    %p27 = pneg %p21
    %p28 = scmp.eq.s32.totalorder %s12, 3
    %p29 = por %p27, %p28
    %p30 = scmp.ne.s32.totalorder %s22, %s25
    %p31 = scmp.eq.s32.totalorder %s12, 0
    %p32 = por %p30, %p31
    %p33 = scmp.ne.s32.totalorder %s22, %s25
    %p34 = scmp.eq.s32.totalorder %s17, 3
    %p35 = por %p33, %p34
    %p36 = scmp.ne.s32.totalorder %s25, %s26
    %p37 = scmp.eq.s32.totalorder %s17, 0
    %p38 = por %p36, %p37
    %p39 = scmp.ne.s32.totalorder %s25, %s26
    %p40 = scmp.eq.s32.totalorder %s18, 3
    %p41 = por %p39, %p40
    %p43 = scmp.ne.s32.totalorder %s26, %s42
    %p44 = scmp.eq.s32.totalorder %s18, 0
    %p45 = por %p43, %p44
    %s47 = sadd.s32 %s46, 1
    %p50 = scmp.eq.s32.totalorder %s12, 3
    %p51 = scmp.ne.s32.totalorder %s46, %s48
    %p52 = scmp.eq.s32.totalorder %s12, 0
    %p53 = por %p51, %p52
    %p54 = scmp.ne.s32.totalorder %s46, %s48
    %p55 = scmp.eq.s32.totalorder %s17, 3
    %p56 = por %p54, %p55
    %p57 = scmp.ne.s32.totalorder %s48, %s49
    %p58 = scmp.eq.s32.totalorder %s17, 0
    %p59 = por %p57, %p58
    %p60 = scmp.ne.s32.totalorder %s48, %s49
    %p61 = scmp.eq.s32.totalorder %s18, 3
    %p62 = por %p60, %p61
    %p64 = scmp.ne.s32.totalorder %s49, %s63
    %p65 = scmp.eq.s32.totalorder %s18, 0
    %p66 = por %p64, %p65
    %s68 = sadd.s32 %s67, 1
    %p71 = scmp.eq.s32.totalorder %s12, 3
    %p72 = scmp.ne.s32.totalorder %s67, %s69
    %p73 = scmp.eq.s32.totalorder %s12, 0
    %p74 = por %p72, %p73
    %p75 = scmp.ne.s32.totalorder %s67, %s69
    %p76 = scmp.eq.s32.totalorder %s17, 3
    %p77 = por %p75, %p76
    %p78 = scmp.ne.s32.totalorder %s69, %s70
    %p79 = scmp.eq.s32.totalorder %s17, 0
    %p80 = por %p78, %p79
    %p81 = scmp.ne.s32.totalorder %s69, %s70
    %p82 = scmp.eq.s32.totalorder %s18, 3
    %p83 = por %p81, %p82
    %p85 = scmp.ne.s32.totalorder %s70, %s84
    %p86 = scmp.eq.s32.totalorder %s18, 0
    %p87 = por %p85, %p86
    %s89 = sadd.s32 %s88, 1
    %p92 = scmp.eq.s32.totalorder %s12, 3
    %p93 = scmp.ne.s32.totalorder %s88, %s90
    %p94 = scmp.eq.s32.totalorder %s12, 0
    %p95 = por %p93, %p94
    %p96 = scmp.ne.s32.totalorder %s88, %s90
    %p97 = scmp.eq.s32.totalorder %s17, 3
    %p98 = por %p96, %p97
    %p99 = scmp.ne.s32.totalorder %s90, %s91
    %p100 = scmp.eq.s32.totalorder %s17, 0
    %p101 = por %p99, %p100
    %p102 = scmp.ne.s32.totalorder %s90, %s91
    %p103 = scmp.eq.s32.totalorder %s18, 3
    %p104 = por %p102, %p103
    %p106 = scmp.ne.s32.totalorder %s91, %s105
    %p107 = scmp.eq.s32.totalorder %s18, 0
    %p108 = por %p106, %p107
    %s110 = sadd.s32 %s109, 1
    %p113 = scmp.eq.s32.totalorder %s12, 3
    %p114 = scmp.ne.s32.totalorder %s109, %s111
    %p115 = scmp.eq.s32.totalorder %s12, 0
    %p116 = por %p114, %p115
    %p117 = scmp.ne.s32.totalorder %s109, %s111
    %p118 = scmp.eq.s32.totalorder %s17, 3
    %p119 = por %p117, %p118
    %p120 = scmp.ne.s32.totalorder %s111, %s112
    %p121 = scmp.eq.s32.totalorder %s17, 0
    %p122 = por %p120, %p121
    %p123 = scmp.ne.s32.totalorder %s111, %s112
    %p124 = scmp.eq.s32.totalorder %s18, 3
    %p125 = por %p123, %p124
    %p127 = scmp.ne.s32.totalorder %s112, %s126
    %p128 = scmp.eq.s32.totalorder %s18, 0
    %p129 = por %p127, %p128
    %s131 = sadd.s32 %s130, 1
    %p134 = scmp.eq.s32.totalorder %s12, 3
    %p135 = scmp.ne.s32.totalorder %s130, %s132
    %p136 = scmp.eq.s32.totalorder %s12, 0
    %p137 = por %p135, %p136
    %p138 = scmp.ne.s32.totalorder %s130, %s132
    %p139 = scmp.eq.s32.totalorder %s17, 3
    %p140 = por %p138, %p139
    %p141 = scmp.ne.s32.totalorder %s132, %s133
    %p142 = scmp.eq.s32.totalorder %s17, 0
    %p143 = por %p141, %p142
    %p144 = scmp.ne.s32.totalorder %s132, %s133
    %p145 = scmp.eq.s32.totalorder %s18, 3
    %p146 = por %p144, %p145
    %p148 = scmp.ne.s32.totalorder %s133, %s147
    %p149 = scmp.eq.s32.totalorder %s18, 0
    %p150 = por %p148, %p149
    %s151 = ssub.s32 %s12, %s19
    %p152 = scmp.eq.s32.totalorder %s151, 0
    %s154 = sadd.s32 %s153, 1
    %s155 = scalar_select %p152, %s153, %s154
    %p158 = pneg %p152
    %p159 = scmp.eq.s32.totalorder %s12, 3
    %p160 = por %p158, %p159
    %p161 = scmp.ne.s32.totalorder %s153, %s156
    %p162 = scmp.eq.s32.totalorder %s12, 0
    %p163 = por %p161, %p162
    %p164 = scmp.ne.s32.totalorder %s153, %s156
    %p165 = scmp.eq.s32.totalorder %s17, 3
    %p166 = por %p164, %p165
    %p167 = scmp.ne.s32.totalorder %s156, %s157
    %p168 = scmp.eq.s32.totalorder %s17, 0
    %p169 = por %p167, %p168
    %p170 = scmp.ne.s32.totalorder %s156, %s157
    %p171 = scmp.eq.s32.totalorder %s18, 3
    %p172 = por %p170, %p171
    %p174 = scmp.ne.s32.totalorder %s157, %s173
    %p175 = scmp.eq.s32.totalorder %s18, 0
    %p176 = por %p174, %p175
    %p177 = scmp.le.s32.totalorder 1, %s12
    %p178 = scmp.lt.s32.totalorder %s12, 5
    %p179 = pnand %p177, %p178
    %p180 = pneg %p179
    // Predicated region
    $region9: #{_lambda_.11} parent=5 // pred_check
      _
    $region10: #{_lambda_.11} parent=5 // pred_check_branch
      %182 = sbr.rel (%p179) target = $region12
    $region11: #{_lambda_.11} parent=5 // pred_region
      %s183 = ssub.s32 %s12, 1
      // Predicated region
      $region13: #{_lambda_.11} parent=11 // pred_check
        %p184 = pneg %p59
      $region14: #{_lambda_.11} parent=11 // pred_check_branch
        %186 = sbr.rel (%p184) target = $region16
      $region15: #{_lambda_.11} parent=11 // pred_region
        _
      $region16: #{_lambda_.11} parent=11 // pred_fallthru
        _
      // Predicated region
      $region17: #{_lambda_.11} parent=11 // pred_check
        %p187 = pneg %p80
      $region18: #{_lambda_.11} parent=11 // pred_check_branch
        %189 = sbr.rel (%p187) target = $region20
      $region19: #{_lambda_.11} parent=11 // pred_region
        _
      $region20: #{_lambda_.11} parent=11 // pred_fallthru
        _
      // Predicated region
      $region21: #{_lambda_.11} parent=11 // pred_check
        %p190 = pneg %p101
      $region22: #{_lambda_.11} parent=11 // pred_check_branch
        %192 = sbr.rel (%p190) target = $region24
      $region23: #{_lambda_.11} parent=11 // pred_region
        _
      $region24: #{_lambda_.11} parent=11 // pred_fallthru
        _
      // Predicated region
      $region25: #{_lambda_.11} parent=11 // pred_check
        %p193 = pneg %p122
      $region26: #{_lambda_.11} parent=11 // pred_check_branch
        %195 = sbr.rel (%p193) target = $region28
      $region27: #{_lambda_.11} parent=11 // pred_region
        _
      $region28: #{_lambda_.11} parent=11 // pred_fallthru
        _
      // Predicated region
      $region29: #{_lambda_.11} parent=11 // pred_check
        %p196 = pneg %p143
      $region30: #{_lambda_.11} parent=11 // pred_check_branch
        %198 = sbr.rel (%p196) target = $region32
      $region31: #{_lambda_.11} parent=11 // pred_region
        _
      $region32: #{_lambda_.11} parent=11 // pred_fallthru
        _
    $region12: #{_lambda_.11} parent=5 // pred_fallthru
      _
    %p199 = scmp.lt.s32.totalorder %s12, 4
    // Predicated region
    $region33: #{_lambda_.11} parent=5 // pred_check
      %p200 = pneg %p199
    $region34: #{_lambda_.11} parent=5 // pred_check_branch
      %202 = sbr.rel (%p200) target = $region36
    $region35: #{_lambda_.11} parent=5 // pred_region
      // Predicated region
      $region37: #{_lambda_.11} parent=35 // pred_check
        %p203 = pneg %p32
      $region38: #{_lambda_.11} parent=35 // pred_check_branch
        %205 = sbr.rel (%p203) target = $region40
      $region39: #{_lambda_.11} parent=35 // pred_region
        %s206 = smul.u32 32, %s12
        %p207 = scmp.lt.s32.totalorder %s206, 127
        %s208 = scalar_select %p207, %s206, 127
        %s209 = smul.addr %s208, 8
        %s210 = scalar_lea.vmem %s0, %s209
        %s211 = smul.u32 32, %s12
      $region40: #{_lambda_.11} parent=35 // pred_fallthru
        _
    $region36: #{_lambda_.11} parent=5 // pred_fallthru
      _
    %p212 = scmp.le.s32.totalorder 1, %s12
    %p213 = scmp.lt.s32.totalorder %s12, 5
    %p214 = pnand %p212, %p213
    %p215 = pneg %p214
    // Predicated region
    $region41: #{_lambda_.11} parent=5 // pred_check
      _
    $region42: #{_lambda_.11} parent=5 // pred_check_branch
      %217 = sbr.rel (%p214) target = $region44
    $region43: #{_lambda_.11} parent=5 // pred_region
      %s218 = ssub.s32 %s12, 1
      %s219 = smul.u32 32, %s17
      %p220 = scmp.lt.s32.totalorder %s219, 127
      %s221 = scalar_select %p220, %s219, 127
      %s222 = smul.addr %s221, 8
      %s223 = scalar_lea.vmem %s0, %s222
      %p224 = pneg %p38
      %p225 = pneg %p35
      %p226 = pneg %p59
      %p227 = pneg %p56
      %p228 = pneg %p80
      %p229 = pneg %p77
      %p230 = pneg %p101
      %p231 = pneg %p98
      %p232 = pneg %p122
      %p233 = pneg %p119
      %p234 = pneg %p143
      %p235 = pneg %p140
      %p236 = pneg %p169
      %p237 = pneg %p166
      %s238 = smul.u32 32, %s17
      %p239 = scmp.lt.s32.totalorder %s238, 127
      %s240 = scalar_select %p239, %s238, 127
      %s241 = smul.addr %s240, 8
      %s242 = scalar_lea.vmem %s6, %s241
      %s243 = smul.u32 32, %s17
      %p244 = scmp.lt.s32.totalorder %s243, 127
      %s245 = scalar_select %p244, %s243, 127
      %s246 = smul.addr %s245, 8
      %s247 = scalar_lea.vmem %s0, %s246
      %s248 = smul.u32 32, %s17
      %s249 = smul.u32 32, %s17
      %p250 = scmp.lt.s32.totalorder %s249, 127
      %s251 = scalar_select %p250, %s249, 127
      %s252 = smul.addr %s251, 8
      %s253 = scalar_lea.vmem %s6, %s252
      %s254 = smul.u32 32, %s17
      %v255 = vld [vmem:[%s1] sm:$0x1]
      %v256 = vld [vmem:[%s1 + $0x1] sm:$0x1]
      %v257 = vld [vmem:[%s2] sm:$0x1]
      %v258 = vld [vmem:[%s3] sm:$0x1]
      %260 = vrot.lane.b32.xlu0 %v255, 120
      %v261 = vpop.permute.xlu0 %260
      %v263 = vadd.f32 %v255, %v261
      %265 = vrot.lane.b32.xlu0 %v256, 120
      %v266 = vpop.permute.xlu0 %265
      %v268 = vadd.f32 %v256, %v266
      %269 = vrot.lane.b32.xlu0 %v255, 112
      %v270 = vpop.permute.xlu0 %269
      %v272 = vadd.f32 %v263, %v270
      %273 = vrot.lane.b32.xlu0 %v256, 112
      %v274 = vpop.permute.xlu0 %273
      %v276 = vadd.f32 %v268, %v274
      %277 = vrot.lane.b32.xlu0 %v255, 104
      %v278 = vpop.permute.xlu0 %277
      %v280 = vadd.f32 %v272, %v278
      %281 = vrot.lane.b32.xlu0 %v256, 104
      %v282 = vpop.permute.xlu0 %281
      %v284 = vadd.f32 %v276, %v282
      %v285 = vmul.f32 %v280, 0.00024414063
      %v286 = vmul.f32 %v284, 0.00024414063
      %v287 = vmul.f32 %v285, %v285
      %v288 = vsub.f32 %v286, %v287
      %v289 = vadd.f32 %v288, 1e-05
      %v290 = vrsqrt.pop %v289
      %292 = vrot.lane.b32.xlu0 %v285, 8
      %v293 = vpop.permute.xlu0 %292
      %295 = vrot.lane.b32.xlu0 %v285, 16
      %v296 = vpop.permute.xlu0 %295
      %298 = vrot.lane.b32.xlu0 %v285, 24
      %v299 = vpop.permute.xlu0 %298
      %vm301 = vcmask 64512
      %v302 = vsel %vm301, %v285, %v293
      %vm303 = vcmask 130048
      %v304 = vsel %vm303, %v302, %v296
      %vm305 = vcmask 195584
      %v306 = vsel %vm305, %v304, %v299
      %308 = vrot.lane.b32.xlu0 %v290, 8
      %v309 = vpop.permute.xlu0 %308
      %311 = vrot.lane.b32.xlu0 %v290, 16
      %v312 = vpop.permute.xlu0 %311
      %314 = vrot.lane.b32.xlu0 %v290, 24
      %v315 = vpop.permute.xlu0 %314
      %v317 = vsel %vm301, %v290, %v309
      %v318 = vsel %vm303, %v317, %v312
      %v319 = vsel %vm305, %v318, %v315
      %v320 = vmul.f32 %v319, %v257
      %v321 = vmul.f32 %v306, %v320
      %v322 = vsub.f32 %v258, %v321
      %v323 = vld [vmem:[%s247] sm:$0xff]
      %v324 = vld [vmem:[%s247 + $0x8] sm:$0xff]
      %v325 = vld [vmem:[%s247 + $0x10] sm:$0xff]
      %v326 = vld [vmem:[%s247 + $0x18] sm:$0xff]
      %v327 = vld [vmem:[%s247 + $0x20] sm:$0xff]
      %v328 = vld [vmem:[%s247 + $0x28] sm:$0xff]
      %v329 = vld [vmem:[%s247 + $0x30] sm:$0xff]
      %v330 = vld [vmem:[%s247 + $0x38] sm:$0xff]
      %v331 = vld [vmem:[%s247 + $0x40] sm:$0xff]
      %v332 = vld [vmem:[%s247 + $0x48] sm:$0xff]
      %v333 = vld [vmem:[%s247 + $0x50] sm:$0xff]
      %v334 = vld [vmem:[%s247 + $0x58] sm:$0xff]
      %v335 = vld [vmem:[%s247 + $0x60] sm:$0xff]
      %v336 = vld [vmem:[%s247 + $0x68] sm:$0xff]
      %v337 = vld [vmem:[%s247 + $0x70] sm:$0xff]
      %v338 = vld [vmem:[%s247 + $0x78] sm:$0xff]
      %v339 = vld [vmem:[%s247 + $0x80] sm:$0xff]
      %v340 = vld [vmem:[%s247 + $0x88] sm:$0xff]
      %v341 = vld [vmem:[%s247 + $0x90] sm:$0xff]
      %v342 = vld [vmem:[%s247 + $0x98] sm:$0xff]
      %v343 = vld [vmem:[%s247 + $0xa0] sm:$0xff]
      %v344 = vld [vmem:[%s247 + $0xa8] sm:$0xff]
      %v345 = vld [vmem:[%s247 + $0xb0] sm:$0xff]
      %v346 = vld [vmem:[%s247 + $0xb8] sm:$0xff]
      %v347 = vld [vmem:[%s247 + $0xc0] sm:$0xff]
      %v348 = vld [vmem:[%s247 + $0xc8] sm:$0xff]
      %v349 = vld [vmem:[%s247 + $0xd0] sm:$0xff]
      %v350 = vld [vmem:[%s247 + $0xd8] sm:$0xff]
      %v351 = vld [vmem:[%s247 + $0xe0] sm:$0xff]
      %v352 = vld [vmem:[%s247 + $0xe8] sm:$0xff]
      %v353 = vld [vmem:[%s247 + $0xf0] sm:$0xff]
      %v354 = vld [vmem:[%s247 + $0xf8] sm:$0xff]
      %v355 = vlaneseq
      %v356 = vshrl.u32 %v355, 7
      %v357 = vsub.s32 0, %v356
      %v358 = vrot.slane %v320, %v357
      %v359 = vmul.f32 %v323, %v358
      %v360 = vmul.f32 %v324, %v358
      %v361 = vmul.f32 %v325, %v358
      %v362 = vmul.f32 %v326, %v358
      %v363 = vmul.f32 %v327, %v358
      %v364 = vmul.f32 %v328, %v358
      %v365 = vmul.f32 %v329, %v358
      %v366 = vmul.f32 %v330, %v358
      %v367 = vmul.f32 %v331, %v358
      %v368 = vmul.f32 %v332, %v358
      %v369 = vmul.f32 %v333, %v358
      %v370 = vmul.f32 %v334, %v358
      %v371 = vmul.f32 %v335, %v358
      %v372 = vmul.f32 %v336, %v358
      %v373 = vmul.f32 %v337, %v358
      %v374 = vmul.f32 %v338, %v358
      %v375 = vmul.f32 %v339, %v358
      %v376 = vmul.f32 %v340, %v358
      %v377 = vmul.f32 %v341, %v358
      %v378 = vmul.f32 %v342, %v358
      %v379 = vmul.f32 %v343, %v358
      %v380 = vmul.f32 %v344, %v358
      %v381 = vmul.f32 %v345, %v358
      %v382 = vmul.f32 %v346, %v358
      %v383 = vmul.f32 %v347, %v358
      %v384 = vmul.f32 %v348, %v358
      %v385 = vmul.f32 %v349, %v358
      %v386 = vmul.f32 %v350, %v358
      %v387 = vmul.f32 %v351, %v358
      %v388 = vmul.f32 %v352, %v358
      %v389 = vmul.f32 %v353, %v358
      %v390 = vmul.f32 %v354, %v358
      %v392 = vlaneseq
      %v393 = vshrl.u32 %v392, 7
      %v394 = vsub.s32 0, %v393
      %v395 = vrot.slane %v322, %v394
      %v397 = vadd.f32 %v359, %v395
      %v398 = vadd.f32 %v360, %v395
      %v399 = vadd.f32 %v361, %v395
      %v400 = vadd.f32 %v362, %v395
      %v401 = vadd.f32 %v363, %v395
      %v402 = vadd.f32 %v364, %v395
      %v403 = vadd.f32 %v365, %v395
      %v404 = vadd.f32 %v366, %v395
      %v405 = vadd.f32 %v367, %v395
      %v406 = vadd.f32 %v368, %v395
      %v407 = vadd.f32 %v369, %v395
      %v408 = vadd.f32 %v370, %v395
      %v409 = vadd.f32 %v371, %v395
      %v410 = vadd.f32 %v372, %v395
      %v411 = vadd.f32 %v373, %v395
      %v412 = vadd.f32 %v374, %v395
      %v413 = vadd.f32 %v375, %v395
      %v414 = vadd.f32 %v376, %v395
      %v415 = vadd.f32 %v377, %v395
      %v416 = vadd.f32 %v378, %v395
      %v417 = vadd.f32 %v379, %v395
      %v418 = vadd.f32 %v380, %v395
      %v419 = vadd.f32 %v381, %v395
      %v420 = vadd.f32 %v382, %v395
      %v421 = vadd.f32 %v383, %v395
      %v422 = vadd.f32 %v384, %v395
      %v423 = vadd.f32 %v385, %v395
      %v424 = vadd.f32 %v386, %v395
      %v425 = vadd.f32 %v387, %v395
      %v426 = vadd.f32 %v388, %v395
      %v427 = vadd.f32 %v389, %v395
      %v428 = vadd.f32 %v390, %v395
      %v429 = vmax.f32 %v397, 0.0
      %v430 = vmax.f32 %v398, 0.0
      %v431 = vmax.f32 %v399, 0.0
      %v432 = vmax.f32 %v400, 0.0
      %v433 = vmax.f32 %v401, 0.0
      %v434 = vmax.f32 %v402, 0.0
      %v435 = vmax.f32 %v403, 0.0
      %v436 = vmax.f32 %v404, 0.0
      %v437 = vmax.f32 %v405, 0.0
      %v438 = vmax.f32 %v406, 0.0
      %v439 = vmax.f32 %v407, 0.0
      %v440 = vmax.f32 %v408, 0.0
      %v441 = vmax.f32 %v409, 0.0
      %v442 = vmax.f32 %v410, 0.0
      %v443 = vmax.f32 %v411, 0.0
      %v444 = vmax.f32 %v412, 0.0
      %v445 = vmax.f32 %v413, 0.0
      %v446 = vmax.f32 %v414, 0.0
      %v447 = vmax.f32 %v415, 0.0
      %v448 = vmax.f32 %v416, 0.0
      %v449 = vmax.f32 %v417, 0.0
      %v450 = vmax.f32 %v418, 0.0
      %v451 = vmax.f32 %v419, 0.0
      %v452 = vmax.f32 %v420, 0.0
      %v453 = vmax.f32 %v421, 0.0
      %v454 = vmax.f32 %v422, 0.0
      %v455 = vmax.f32 %v423, 0.0
      %v456 = vmax.f32 %v424, 0.0
      %v457 = vmax.f32 %v425, 0.0
      %v458 = vmax.f32 %v426, 0.0
      %v459 = vmax.f32 %v427, 0.0
      %v460 = vmax.f32 %v428, 0.0
      %v461 = vld [vmem:[%s4] sm:$0xff]
      %v462 = vld [vmem:[%s4 + $0x8] sm:$0xff]
      %v463 = vld [vmem:[%s4 + $0x10] sm:$0xff]
      %v464 = vld [vmem:[%s4 + $0x18] sm:$0xff]
      %v465 = vld [vmem:[%s5] sm:$0x1]
      %v467 = vlaneseq
      %v468 = vshrl.u32 %v467, 7
      %v469 = vsub.s32 0, %v468
      %v470 = vrot.slane %v465, %v469
      %vm472 = vcmask 261120
      %v474 = vsel %vm472, %v429, 0
      %v477 = vsel %vm472, %v430, 0
      %v480 = vsel %vm472, %v431, 0
      %v483 = vsel %vm472, %v432, 0
      %v486 = vsel %vm472, %v433, 0
      %v489 = vsel %vm472, %v434, 0
      %v492 = vsel %vm472, %v435, 0
      %v495 = vsel %vm472, %v436, 0
      %v498 = vsel %vm472, %v437, 0
      %v501 = vsel %vm472, %v438, 0
      %v504 = vsel %vm472, %v439, 0
      %v507 = vsel %vm472, %v440, 0
      %v510 = vsel %vm472, %v441, 0
      %v513 = vsel %vm472, %v442, 0
      %v516 = vsel %vm472, %v443, 0
      %v519 = vsel %vm472, %v444, 0
      %v522 = vsel %vm472, %v445, 0
      %v525 = vsel %vm472, %v446, 0
      %v528 = vsel %vm472, %v447, 0
      %v531 = vsel %vm472, %v448, 0
      %v534 = vsel %vm472, %v449, 0
      %v537 = vsel %vm472, %v450, 0
      %v540 = vsel %vm472, %v451, 0
      %v543 = vsel %vm472, %v452, 0
      %v546 = vsel %vm472, %v453, 0
      %v549 = vsel %vm472, %v454, 0
      %v552 = vsel %vm472, %v455, 0
      %v555 = vsel %vm472, %v456, 0
      %v558 = vsel %vm472, %v457, 0
      %v561 = vsel %vm472, %v458, 0
      %v564 = vsel %vm472, %v459, 0
      %v567 = vsel %vm472, %v460, 0
      %569 = vmatprep.subr.mxu0 0.0
      %570 = vmatpush1.msra.mxu0 %v461
      %571 = vmatprep.subr.mxu0 0.0
      %572 = vmatpush1.msra.mxu0 %v462
      %573 = vmatprep.subr.mxu0 0.0
      %574 = vmatpush1.msra.mxu0 %v463
      %575 = vmatprep.subr.mxu0 0.0
      %576 = vmatpush1.msra.mxu0 %v464
      %577 = vmatprep.subr.mxu0 0.0
      %578 = vmatpush1.msra.mxu0 0.0
      %579 = vmatprep.subr.mxu0 0.0
      %580 = vmatpush1.msra.mxu0 0.0
      %581 = vmatprep.subr.mxu0 0.0
      %582 = vmatpush1.msra.mxu0 0.0
      %583 = vmatprep.subr.mxu0 0.0
      %584 = vmatpush1.msra.mxu0 0.0
      %585 = vmatprep.subr.mxu0 0.0
      %586 = vmatpush1.msra.mxu0 0.0
      %587 = vmatprep.subr.mxu0 0.0
      %588 = vmatpush1.msra.mxu0 0.0
      %589 = vmatprep.subr.mxu0 0.0
      %590 = vmatpush1.msra.mxu0 0.0
      %591 = vmatprep.subr.mxu0 0.0
      %592 = vmatpush1.msra.mxu0 0.0
      %593 = vmatprep.subr.mxu0 0.0
      %594 = vmatpush1.msra.mxu0 0.0
      %595 = vmatprep.subr.mxu0 0.0
      %596 = vmatpush1.msra.mxu0 0.0
      %597 = vmatprep.subr.mxu0 0.0
      %598 = vmatpush1.msra.mxu0 0.0
      %599 = vmatprep.subr.mxu0 0.0
      %600 = vmatpush1.msra.mxu0 0.0
      %601 = vmatprep.subr.mxu0 0.0
      %602 = vmatpush1.msra.mxu0 0.0
      %603 = vmatprep.subr.mxu0 0.0
      %604 = vmatpush1.msra.mxu0 0.0
      %605 = vmatprep.subr.mxu0 0.0
      %606 = vmatpush1.msra.mxu0 0.0
      %607 = vmatprep.subr.mxu0 0.0
      %608 = vmatpush1.msra.mxu0 0.0
      %609 = vmatprep.subr.mxu0 0.0
      %610 = vmatpush1.msra.mxu0 0.0
      %611 = vmatprep.subr.mxu0 0.0
      %612 = vmatpush1.msra.mxu0 0.0
      %613 = vmatprep.subr.mxu0 0.0
      %614 = vmatpush1.msra.mxu0 0.0
      %615 = vmatprep.subr.mxu0 0.0
      %616 = vmatpush1.msra.mxu0 0.0
      %617 = vmatprep.subr.mxu0 0.0
      %618 = vmatpush1.msra.mxu0 0.0
      %619 = vmatprep.subr.mxu0 0.0
      %620 = vmatpush1.msra.mxu0 0.0
      %621 = vmatprep.subr.mxu0 0.0
      %622 = vmatpush1.msra.mxu0 0.0
      %623 = vmatprep.subr.mxu0 0.0
      %624 = vmatpush1.msra.mxu0 0.0
      %625 = vmatprep.subr.mxu0 0.0
      %626 = vmatpush1.msra.mxu0 0.0
      %627 = vmatprep.subr.mxu0 0.0
      %628 = vmatpush1.msra.mxu0 0.0
      %629 = vmatprep.subr.mxu0 0.0
      %630 = vmatpush1.msra.mxu0 0.0
      %631 = vmatprep.subr.mxu0 0.0
      %632 = vmatpush1.msra.mxu0 0.0
      %633 = vmatprep.mubr.f32.mxu0 0.0
      %634 = vmatmul.mubr.f32.gmra.mrb[0].mxu0 %v474
      %v635 = vpop.f32.mrb[0].mxu0
      %v636 = vadd.f32 %v470, %v635
      %v637 = vpop.f32.mrb[0].mxu0
      %638 = vmatprep.mubr.f32.mxu0 0.0
      %639 = vmatmul.mubr.f32.gmra.mrb[0].mxu0 %v477
      %v640 = vpop.f32.mrb[0].mxu0
      %v641 = vadd.f32 %v470, %v640
      %v642 = vpop.f32.mrb[0].mxu0
      %643 = vmatprep.mubr.f32.mxu0 0.0
      %644 = vmatmul.mubr.f32.gmra.mrb[0].mxu0 %v480
      %v645 = vpop.f32.mrb[0].mxu0
      %v646 = vadd.f32 %v470, %v645
      %v647 = vpop.f32.mrb[0].mxu0
      %648 = vmatprep.mubr.f32.mxu0 0.0
      %649 = vmatmul.mubr.f32.gmra.mrb[0].mxu0 %v483
      %v650 = vpop.f32.mrb[0].mxu0
      %v651 = vadd.f32 %v470, %v650
      %v652 = vpop.f32.mrb[0].mxu0
      %653 = vmatprep.mubr.f32.mxu0 0.0
      %654 = vmatmul.mubr.f32.gmra.mrb[0].mxu0 %v486
      %v655 = vpop.f32.mrb[0].mxu0
      %v656 = vadd.f32 %v470, %v655
      %v657 = vpop.f32.mrb[0].mxu0
      %658 = vmatprep.mubr.f32.mxu0 0.0
      %659 = vmatmul.mubr.f32.gmra.mrb[0].mxu0 %v489
      %v660 = vpop.f32.mrb[0].mxu0
      %v661 = vadd.f32 %v470, %v660
      %v662 = vpop.f32.mrb[0].mxu0
      %663 = vmatprep.mubr.f32.mxu0 0.0
      %664 = vmatmul.mubr.f32.gmra.mrb[0].mxu0 %v492
      %v665 = vpop.f32.mrb[0].mxu0
      %v666 = vadd.f32 %v470, %v665
      %v667 = vpop.f32.mrb[0].mxu0
      %668 = vmatprep.mubr.f32.mxu0 0.0
      %669 = vmatmul.mubr.f32.gmra.mrb[0].mxu0 %v495
      %v670 = vpop.f32.mrb[0].mxu0
      %v671 = vadd.f32 %v470, %v670
      %v672 = vpop.f32.mrb[0].mxu0
      %673 = vmatprep.mubr.f32.mxu0 0.0
      %674 = vmatmul.mubr.f32.gmra.mrb[0].mxu0 %v498
      %v675 = vpop.f32.mrb[0].mxu0
      %v676 = vadd.f32 %v470, %v675
      %v677 = vpop.f32.mrb[0].mxu0
      %678 = vmatprep.mubr.f32.mxu0 0.0
      %679 = vmatmul.mubr.f32.gmra.mrb[0].mxu0 %v501
      %v680 = vpop.f32.mrb[0].mxu0
      %v681 = vadd.f32 %v470, %v680
      %v682 = vpop.f32.mrb[0].mxu0
      %683 = vmatprep.mubr.f32.mxu0 0.0
      %684 = vmatmul.mubr.f32.gmra.mrb[0].mxu0 %v504
      %v685 = vpop.f32.mrb[0].mxu0
      %v686 = vadd.f32 %v470, %v685
      %v687 = vpop.f32.mrb[0].mxu0
      %688 = vmatprep.mubr.f32.mxu0 0.0
      %689 = vmatmul.mubr.f32.gmra.mrb[0].mxu0 %v507
      %v690 = vpop.f32.mrb[0].mxu0
      %v691 = vadd.f32 %v470, %v690
      %v692 = vpop.f32.mrb[0].mxu0
      %693 = vmatprep.mubr.f32.mxu0 0.0
      %694 = vmatmul.mubr.f32.gmra.mrb[0].mxu0 %v510
      %v695 = vpop.f32.mrb[0].mxu0
      %v696 = vadd.f32 %v470, %v695
      %v697 = vpop.f32.mrb[0].mxu0
      %698 = vmatprep.mubr.f32.mxu0 0.0
      %699 = vmatmul.mubr.f32.gmra.mrb[0].mxu0 %v513
      %v700 = vpop.f32.mrb[0].mxu0
      %v701 = vadd.f32 %v470, %v700
      %v702 = vpop.f32.mrb[0].mxu0
      %703 = vmatprep.mubr.f32.mxu0 0.0
      %704 = vmatmul.mubr.f32.gmra.mrb[0].mxu0 %v516
      %v705 = vpop.f32.mrb[0].mxu0
      %v706 = vadd.f32 %v470, %v705
      %v707 = vpop.f32.mrb[0].mxu0
      %708 = vmatprep.mubr.f32.mxu0 0.0
      %709 = vmatmul.mubr.f32.gmra.mrb[0].mxu0 %v519
      %v710 = vpop.f32.mrb[0].mxu0
      %v711 = vadd.f32 %v470, %v710
      %v712 = vpop.f32.mrb[0].mxu0
      %713 = vmatprep.mubr.f32.mxu0 0.0
      %714 = vmatmul.mubr.f32.gmra.mrb[0].mxu0 %v522
      %v715 = vpop.f32.mrb[0].mxu0
      %v716 = vadd.f32 %v470, %v715
      %v717 = vpop.f32.mrb[0].mxu0
      %718 = vmatprep.mubr.f32.mxu0 0.0
      %719 = vmatmul.mubr.f32.gmra.mrb[0].mxu0 %v525
      %v720 = vpop.f32.mrb[0].mxu0
      %v721 = vadd.f32 %v470, %v720
      %v722 = vpop.f32.mrb[0].mxu0
      %723 = vmatprep.mubr.f32.mxu0 0.0
      %724 = vmatmul.mubr.f32.gmra.mrb[0].mxu0 %v528
      %v725 = vpop.f32.mrb[0].mxu0
      %v726 = vadd.f32 %v470, %v725
      %v727 = vpop.f32.mrb[0].mxu0
      %728 = vmatprep.mubr.f32.mxu0 0.0
      %729 = vmatmul.mubr.f32.gmra.mrb[0].mxu0 %v531
      %v730 = vpop.f32.mrb[0].mxu0
      %v731 = vadd.f32 %v470, %v730
      %v732 = vpop.f32.mrb[0].mxu0
      %733 = vmatprep.mubr.f32.mxu0 0.0
      %734 = vmatmul.mubr.f32.gmra.mrb[0].mxu0 %v534
      %v735 = vpop.f32.mrb[0].mxu0
      %v736 = vadd.f32 %v470, %v735
      %v737 = vpop.f32.mrb[0].mxu0
      %738 = vmatprep.mubr.f32.mxu0 0.0
      %739 = vmatmul.mubr.f32.gmra.mrb[0].mxu0 %v537
      %v740 = vpop.f32.mrb[0].mxu0
      %v741 = vadd.f32 %v470, %v740
      %v742 = vpop.f32.mrb[0].mxu0
      %743 = vmatprep.mubr.f32.mxu0 0.0
      %744 = vmatmul.mubr.f32.gmra.mrb[0].mxu0 %v540
      %v745 = vpop.f32.mrb[0].mxu0
      %v746 = vadd.f32 %v470, %v745
      %v747 = vpop.f32.mrb[0].mxu0
      %748 = vmatprep.mubr.f32.mxu0 0.0
      %749 = vmatmul.mubr.f32.gmra.mrb[0].mxu0 %v543
      %v750 = vpop.f32.mrb[0].mxu0
      %v751 = vadd.f32 %v470, %v750
      %v752 = vpop.f32.mrb[0].mxu0
      %753 = vmatprep.mubr.f32.mxu0 0.0
      %754 = vmatmul.mubr.f32.gmra.mrb[0].mxu0 %v546
      %v755 = vpop.f32.mrb[0].mxu0
      %v756 = vadd.f32 %v470, %v755
      %v757 = vpop.f32.mrb[0].mxu0
      %758 = vmatprep.mubr.f32.mxu0 0.0
      %759 = vmatmul.mubr.f32.gmra.mrb[0].mxu0 %v549
      %v760 = vpop.f32.mrb[0].mxu0
      %v761 = vadd.f32 %v470, %v760
      %v762 = vpop.f32.mrb[0].mxu0
      %763 = vmatprep.mubr.f32.mxu0 0.0
      %764 = vmatmul.mubr.f32.gmra.mrb[0].mxu0 %v552
      %v765 = vpop.f32.mrb[0].mxu0
      %v766 = vadd.f32 %v470, %v765
      %v767 = vpop.f32.mrb[0].mxu0
      %768 = vmatprep.mubr.f32.mxu0 0.0
      %769 = vmatmul.mubr.f32.gmra.mrb[0].mxu0 %v555
      %v770 = vpop.f32.mrb[0].mxu0
      %v771 = vadd.f32 %v470, %v770
      %v772 = vpop.f32.mrb[0].mxu0
      %773 = vmatprep.mubr.f32.mxu0 0.0
      %774 = vmatmul.mubr.f32.gmra.mrb[0].mxu0 %v558
      %v775 = vpop.f32.mrb[0].mxu0
      %v776 = vadd.f32 %v470, %v775
      %v777 = vpop.f32.mrb[0].mxu0
      %778 = vmatprep.mubr.f32.mxu0 0.0
      %779 = vmatmul.mubr.f32.gmra.mrb[0].mxu0 %v561
      %v780 = vpop.f32.mrb[0].mxu0
      %v781 = vadd.f32 %v470, %v780
      %v782 = vpop.f32.mrb[0].mxu0
      %783 = vmatprep.mubr.f32.mxu0 0.0
      %784 = vmatmul.mubr.f32.gmra.mrb[0].mxu0 %v564
      %v785 = vpop.f32.mrb[0].mxu0
      %v786 = vadd.f32 %v470, %v785
      %v787 = vpop.f32.mrb[0].mxu0
      %788 = vmatprep.mubr.f32.mxu0 0.0
      %789 = vmatmul.mubr.f32.gmra.mrb[0].mxu0 %v567
      %v790 = vpop.f32.mrb[0].mxu0
      %v791 = vadd.f32 %v470, %v790
      %v792 = vpop.f32.mrb[0].mxu0
      %793 = vdwg.mxu0
      %v794 = vmul.f32 %v636, 0.5
      %v795 = vmul.f32 %v641, 0.5
      %v796 = vmul.f32 %v646, 0.5
      %v797 = vmul.f32 %v651, 0.5
      %v798 = vmul.f32 %v656, 0.5
      %v799 = vmul.f32 %v661, 0.5
      %v800 = vmul.f32 %v666, 0.5
      %v801 = vmul.f32 %v671, 0.5
      %v802 = vmul.f32 %v676, 0.5
      %v803 = vmul.f32 %v681, 0.5
      %v804 = vmul.f32 %v686, 0.5
      %v805 = vmul.f32 %v691, 0.5
      %v806 = vmul.f32 %v696, 0.5
      %v807 = vmul.f32 %v701, 0.5
      %v808 = vmul.f32 %v706, 0.5
      %v809 = vmul.f32 %v711, 0.5
      %v810 = vmul.f32 %v716, 0.5
      %v811 = vmul.f32 %v721, 0.5
      %v812 = vmul.f32 %v726, 0.5
      %v813 = vmul.f32 %v731, 0.5
      %v814 = vmul.f32 %v736, 0.5
      %v815 = vmul.f32 %v741, 0.5
      %v816 = vmul.f32 %v746, 0.5
      %v817 = vmul.f32 %v751, 0.5
      %v818 = vmul.f32 %v756, 0.5
      %v819 = vmul.f32 %v761, 0.5
      %v820 = vmul.f32 %v766, 0.5
      %v821 = vmul.f32 %v771, 0.5
      %v822 = vmul.f32 %v776, 0.5
      %v823 = vmul.f32 %v781, 0.5
      %v824 = vmul.f32 %v786, 0.5
      %v825 = vmul.f32 %v791, 0.5
      %v826 = vtanh.pop %v794
      %v827 = vtanh.pop %v795
      %v828 = vtanh.pop %v796
      %v829 = vtanh.pop %v797
      %v830 = vtanh.pop %v798
      %v831 = vtanh.pop %v799
      %v832 = vtanh.pop %v800
      %v833 = vtanh.pop %v801
      %v834 = vtanh.pop %v802
      %v835 = vtanh.pop %v803
      %v836 = vtanh.pop %v804
      %v837 = vtanh.pop %v805
      %v838 = vtanh.pop %v806
      %v839 = vtanh.pop %v807
      %v840 = vtanh.pop %v808
      %v841 = vtanh.pop %v809
      %v842 = vtanh.pop %v810
      %v843 = vtanh.pop %v811
      %v844 = vtanh.pop %v812
      %v845 = vtanh.pop %v813
      %v846 = vtanh.pop %v814
      %v847 = vtanh.pop %v815
      %v848 = vtanh.pop %v816
      %v849 = vtanh.pop %v817
      %v850 = vtanh.pop %v818
      %v851 = vtanh.pop %v819
      %v852 = vtanh.pop %v820
      %v853 = vtanh.pop %v821
      %v854 = vtanh.pop %v822
      %v855 = vtanh.pop %v823
      %v856 = vtanh.pop %v824
      %v857 = vtanh.pop %v825
      %v858 = vadd.f32 %v826, 1.0
      %v859 = vadd.f32 %v827, 1.0
      %v860 = vadd.f32 %v828, 1.0
      %v861 = vadd.f32 %v829, 1.0
      %v862 = vadd.f32 %v830, 1.0
      %v863 = vadd.f32 %v831, 1.0
      %v864 = vadd.f32 %v832, 1.0
      %v865 = vadd.f32 %v833, 1.0
      %v866 = vadd.f32 %v834, 1.0
      %v867 = vadd.f32 %v835, 1.0
      %v868 = vadd.f32 %v836, 1.0
      %v869 = vadd.f32 %v837, 1.0
      %v870 = vadd.f32 %v838, 1.0
      %v871 = vadd.f32 %v839, 1.0
      %v872 = vadd.f32 %v840, 1.0
      %v873 = vadd.f32 %v841, 1.0
      %v874 = vadd.f32 %v842, 1.0
      %v875 = vadd.f32 %v843, 1.0
      %v876 = vadd.f32 %v844, 1.0
      %v877 = vadd.f32 %v845, 1.0
      %v878 = vadd.f32 %v846, 1.0
      %v879 = vadd.f32 %v847, 1.0
      %v880 = vadd.f32 %v848, 1.0
      %v881 = vadd.f32 %v849, 1.0
      %v882 = vadd.f32 %v850, 1.0
      %v883 = vadd.f32 %v851, 1.0
      %v884 = vadd.f32 %v852, 1.0
      %v885 = vadd.f32 %v853, 1.0
      %v886 = vadd.f32 %v854, 1.0
      %v887 = vadd.f32 %v855, 1.0
      %v888 = vadd.f32 %v856, 1.0
      %v889 = vadd.f32 %v857, 1.0
      %v890 = vmul.f32 %v858, 0.5
      %v891 = vmul.f32 %v859, 0.5
      %v892 = vmul.f32 %v860, 0.5
      %v893 = vmul.f32 %v861, 0.5
      %v894 = vmul.f32 %v862, 0.5
      %v895 = vmul.f32 %v863, 0.5
      %v896 = vmul.f32 %v864, 0.5
      %v897 = vmul.f32 %v865, 0.5
      %v898 = vmul.f32 %v866, 0.5
      %v899 = vmul.f32 %v867, 0.5
      %v900 = vmul.f32 %v868, 0.5
      %v901 = vmul.f32 %v869, 0.5
      %v902 = vmul.f32 %v870, 0.5
      %v903 = vmul.f32 %v871, 0.5
      %v904 = vmul.f32 %v872, 0.5
      %v905 = vmul.f32 %v873, 0.5
      %v906 = vmul.f32 %v874, 0.5
      %v907 = vmul.f32 %v875, 0.5
      %v908 = vmul.f32 %v876, 0.5
      %v909 = vmul.f32 %v877, 0.5
      %v910 = vmul.f32 %v878, 0.5
      %v911 = vmul.f32 %v879, 0.5
      %v912 = vmul.f32 %v880, 0.5
      %v913 = vmul.f32 %v881, 0.5
      %v914 = vmul.f32 %v882, 0.5
      %v915 = vmul.f32 %v883, 0.5
      %v916 = vmul.f32 %v884, 0.5
      %v917 = vmul.f32 %v885, 0.5
      %v918 = vmul.f32 %v886, 0.5
      %v919 = vmul.f32 %v887, 0.5
      %v920 = vmul.f32 %v888, 0.5
      %v921 = vmul.f32 %v889, 0.5
      %vm922 = vcmask 97280
      %923 = vst.msk [vmem:[%s253] sm:$0xff] %vm922, %v890
      %924 = vst.msk [vmem:[%s253 + $0x8] sm:$0xff] %vm922, %v891
      %925 = vst.msk [vmem:[%s253 + $0x10] sm:$0xff] %vm922, %v892
      %926 = vst.msk [vmem:[%s253 + $0x18] sm:$0xff] %vm922, %v893
      %927 = vst.msk [vmem:[%s253 + $0x20] sm:$0xff] %vm922, %v894
      %928 = vst.msk [vmem:[%s253 + $0x28] sm:$0xff] %vm922, %v895
      %929 = vst.msk [vmem:[%s253 + $0x30] sm:$0xff] %vm922, %v896
      %930 = vst.msk [vmem:[%s253 + $0x38] sm:$0xff] %vm922, %v897
      %931 = vst.msk [vmem:[%s253 + $0x40] sm:$0xff] %vm922, %v898
      %932 = vst.msk [vmem:[%s253 + $0x48] sm:$0xff] %vm922, %v899
      %933 = vst.msk [vmem:[%s253 + $0x50] sm:$0xff] %vm922, %v900
      %934 = vst.msk [vmem:[%s253 + $0x58] sm:$0xff] %vm922, %v901
      %935 = vst.msk [vmem:[%s253 + $0x60] sm:$0xff] %vm922, %v902
      %936 = vst.msk [vmem:[%s253 + $0x68] sm:$0xff] %vm922, %v903
      %937 = vst.msk [vmem:[%s253 + $0x70] sm:$0xff] %vm922, %v904
      %938 = vst.msk [vmem:[%s253 + $0x78] sm:$0xff] %vm922, %v905
      %939 = vst.msk [vmem:[%s253 + $0x80] sm:$0xff] %vm922, %v906
      %940 = vst.msk [vmem:[%s253 + $0x88] sm:$0xff] %vm922, %v907
      %941 = vst.msk [vmem:[%s253 + $0x90] sm:$0xff] %vm922, %v908
      %942 = vst.msk [vmem:[%s253 + $0x98] sm:$0xff] %vm922, %v909
      %943 = vst.msk [vmem:[%s253 + $0xa0] sm:$0xff] %vm922, %v910
      %944 = vst.msk [vmem:[%s253 + $0xa8] sm:$0xff] %vm922, %v911
      %945 = vst.msk [vmem:[%s253 + $0xb0] sm:$0xff] %vm922, %v912
      %946 = vst.msk [vmem:[%s253 + $0xb8] sm:$0xff] %vm922, %v913
      %947 = vst.msk [vmem:[%s253 + $0xc0] sm:$0xff] %vm922, %v914
      %948 = vst.msk [vmem:[%s253 + $0xc8] sm:$0xff] %vm922, %v915
      %949 = vst.msk [vmem:[%s253 + $0xd0] sm:$0xff] %vm922, %v916
      %950 = vst.msk [vmem:[%s253 + $0xd8] sm:$0xff] %vm922, %v917
      %951 = vst.msk [vmem:[%s253 + $0xe0] sm:$0xff] %vm922, %v918
      %952 = vst.msk [vmem:[%s253 + $0xe8] sm:$0xff] %vm922, %v919
      %953 = vst.msk [vmem:[%s253 + $0xf0] sm:$0xff] %vm922, %v920
      %954 = vst.msk [vmem:[%s253 + $0xf8] sm:$0xff] %vm922, %v921
      %s955 = smul.u32 32, %s17
      %p956 = scmp.lt.s32.totalorder %s955, 127
      %s957 = scalar_select %p956, %s955, 127
      %s958 = smul.addr %s957, 8
      %s959 = scalar_lea.vmem %s6, %s958
      // Predicated region
      $region45: #{_lambda_.11} parent=43 // pred_check
        %p960 = pneg %p166
      $region46: #{_lambda_.11} parent=43 // pred_check_branch
        %962 = sbr.rel (%p960) target = $region48
      $region47: #{_lambda_.11} parent=43 // pred_region
        %s963 = smul.u32 32, %s17
      $region48: #{_lambda_.11} parent=43 // pred_fallthru
        _
    $region44: #{_lambda_.11} parent=5 // pred_fallthru
      _
    %p964 = scmp.le.s32.totalorder 2, %s12
    // Predicated region
    $region49: #{_lambda_.11} parent=5 // pred_check
      %p965 = pneg %p964
    $region50: #{_lambda_.11} parent=5 // pred_check_branch
      %967 = sbr.rel (%p965) target = $region52
    $region51: #{_lambda_.11} parent=5 // pred_region
      %s968 = ssub.s32 %s12, 2
      // Predicated region
      $region53: #{_lambda_.11} parent=51 // pred_check
        %p969 = pneg %p172
      $region54: #{_lambda_.11} parent=51 // pred_check_branch
        %971 = sbr.rel (%p969) target = $region56
      $region55: #{_lambda_.11} parent=51 // pred_region
        %s972 = smul.u32 32, %s18
        %p973 = scmp.lt.s32.totalorder %s972, 127
        %s974 = scalar_select %p973, %s972, 127
        %s975 = smul.addr %s974, 8
        %s976 = scalar_lea.vmem %s6, %s975
      $region56: #{_lambda_.11} parent=51 // pred_fallthru
        _
    $region52: #{_lambda_.11} parent=5 // pred_fallthru
      _
  $region6: #{_lambda_.11} parent=0 // loop_footer
    %s16 = sadd.s32 1, %s12
  $region7: #{_lambda_.11} parent=0 // loop_footer_branch
    %11 = sbr.rel target = $region3
  $region8: #{_lambda_.11} parent=0 // loop_exit
    _

</llo_original>
